<compile_context>
chip_gen: v5e
topology: v5e:2x2
jax: 0.10.0
libtpu: 0.0.40
codegen_flags: <defaults>
</compile_context>

<pallas_src>
import functools

import jax
import jax.numpy as jnp
import numpy as np
from jax.experimental import pallas as pl
from jax.experimental.pallas import tpu as pltpu

EPS = 1e-5


# ----------------------------- tiling helpers -----------------------------

def _round_up(x, m):
    return (x + m - 1) // m * m


def _vmem_limit_bytes():
    # ~half of physical VMEM: 64 MiB on v5e/v6e (128 MiB), 32 MiB on v7x (64 MiB).
    try:
        cap = pltpu.get_tpu_info().vmem_capacity_bytes
        return min(int(cap) // 2, 96 * 1024 * 1024)
    except Exception:
        return 32 * 1024 * 1024


def _compiler_params(semantics):
    return pltpu.CompilerParams(dimension_semantics=semantics,
                                vmem_limit_bytes=_vmem_limit_bytes())


def _choose_tn(n):
    for tn in (512, 256, 128):
        if n % tn == 0:
            return tn
    return 128


def _choose_tk(k):
    kp = _round_up(k, 128)
    if kp <= 1024:
        return kp, kp
    for tk in (1024, 512, 384, 256, 128):
        if kp % tk == 0:
            return tk, kp
    return 128, kp


def _choose_tm(m, other_blocks, cap=512):
    """Largest multiple-of-8 divisor of m (<= cap) so the A operand needs no pad copy."""
    cand = (min(cap, max(m, 8)) // 8) * 8
    tm = None
    while cand >= 8:
        if m % cand == 0:
            tm = cand
            break
        cand -= 8
    if tm is None:                               # fallback: pad M (not hit by conv shapes here)
        tm = min(cap, _round_up(m, 8))
        return tm, _round_up(m, tm)
    # keep >= 2 parallel blocks so both TensorCores (megacore) get work
    if (m // tm) * other_blocks < 2 and tm % 16 == 0:
        tm //= 2
    return tm, m


# ----------------------------- tiled GEMM (im2col conv1 / 1x1 shortcut) -----------------------------

def _make_gemm_kernel(has_bias_relu):
    def kernel(*refs):
        if has_bias_relu:
            a_ref, b_ref, bias_ref, o_ref, acc_ref = refs
        else:
            a_ref, b_ref, o_ref, acc_ref = refs

        @pl.when(pl.program_id(2) == 0)
        def _():
            acc_ref[...] = jnp.zeros_like(acc_ref)

        acc_ref[...] += jnp.dot(a_ref[...], b_ref[...],
                                preferred_element_type=jnp.float32)

        @pl.when(pl.program_id(2) == pl.num_programs(2) - 1)
        def _():
            if has_bias_relu:
                y = jnp.maximum(acc_ref[...] + bias_ref[...], 0.0)
            else:
                y = acc_ref[...]
            o_ref[...] = y.astype(o_ref.dtype)

    return kernel


def tiled_gemm(a, b, bias=None, out_dtype=jnp.float32):
    """(M,N,K)-tiled GEMM: bf16 MXU inputs, f32 VMEM accumulator, optional bias+ReLU epilogue."""
    m, k = a.shape
    _, n = b.shape                               # n is a multiple of 128 (lane-dense)
    tn = _choose_tn(n)
    tk, kp = _choose_tk(k)
    tm, mp = _choose_tm(m, n // tn)
    if mp != m or kp != k:
        a = jnp.pad(a, ((0, mp - m), (0, kp - k)))
    if kp != k:
        b = jnp.pad(b, ((0, kp - k), (0, 0)))
    a = a.astype(jnp.bfloat16)
    b = b.astype(jnp.bfloat16)

    in_specs = [pl.BlockSpec((tm, tk), lambda i, j, kk: (i, kk)),
                pl.BlockSpec((tk, tn), lambda i, j, kk: (kk, j))]
    inputs = [a, b]
    if bias is not None:
        in_specs.append(pl.BlockSpec((1, tn), lambda i, j, kk: (0, j)))
        inputs.append(bias.astype(jnp.float32))

    out = pl.pallas_call(
        _make_gemm_kernel(bias is not None),
        out_shape=jax.ShapeDtypeStruct((mp, n), out_dtype),
        grid_spec=pltpu.PrefetchScalarGridSpec(
            num_scalar_prefetch=0,
            grid=(mp // tm, n // tn, kp // tk),   # reduction (K) last
            in_specs=in_specs,
            out_specs=pl.BlockSpec((tm, tn), lambda i, j, kk: (i, j)),
            scratch_shapes=[pltpu.VMEM((tm, tn), jnp.float32)]),
        compiler_params=_compiler_params(("parallel", "parallel", "arbitrary")),
    )(*inputs)
    return out[:m] if mp != m else out


# ----------------------------- BN1 + ReLU1 + conv-layout pad -----------------------------

def _make_bn_relu_pad_kernel(h, w):
    def kernel(x_ref, scale_ref, shift_ref, o_ref):
        v = jnp.maximum(x_ref[...] * scale_ref[...] + shift_ref[...], 0.0)
        o_ref[...] = jnp.zeros_like(o_ref)                       # zero padding border
        o_ref[0, 1:h + 1, 1:w + 1, :] = v[0].astype(o_ref.dtype)
    return kernel


def bn_relu_pad(x_nhwc, scale, shift):
    """relu(x*scale+shift) written straight into the zero-padded bf16 conv layout
    (N, H+3, W+2, C): real pixel (h, w) sits at (h+1, w+1); everything else is 0."""
    n, h, w, c = x_nhwc.shape
    return pl.pallas_call(
        _make_bn_relu_pad_kernel(h, w),
        out_shape=jax.ShapeDtypeStruct((n, h + 3, w + 2, c), jnp.bfloat16),
        grid=(n,),
        in_specs=[pl.BlockSpec((1, h, w, c), lambda i: (i, 0, 0, 0)),
                  pl.BlockSpec((1, 1, 1, c), lambda i: (0, 0, 0, 0)),
                  pl.BlockSpec((1, 1, 1, c), lambda i: (0, 0, 0, 0))],
        out_specs=pl.BlockSpec((1, h + 3, w + 2, c), lambda i: (i, 0, 0, 0)),
        compiler_params=_compiler_params(("parallel",)),
    )(x_nhwc, scale, shift)


# ----------------------------- implicit-GEMM 3x3 conv (stride 1, pad 1) -----------------------------

def _make_conv3x3_kernel(h, w, has_bias_relu, has_residual, padded_out):
    pitch = w + 2
    length = h * pitch

    def kernel(*refs):
        it = iter(refs)
        x_ref = next(it)
        w_ref = next(it)
        mask_ref = next(it)
        bias_ref = next(it) if has_bias_relu else None
        res_ref = next(it) if has_residual else None
        o_ref = next(it)

        # 9 taps: tap (kh, kw) is a contiguous row-offset slice of the flat padded block.
        acc = None
        for kh in range(3):
            for kw in range(3):
                off = kh * pitch + kw
                a = x_ref[0, off:off + length, :]
                d = jnp.dot(a, w_ref[kh * 3 + kw], preferred_element_type=jnp.float32)
                acc = d if acc is None else acc + d

        if has_bias_relu:
            acc = jnp.maximum(acc + bias_ref[...], 0.0)
        if has_residual:
            acc = acc + res_ref[0]
        acc = acc * mask_ref[...]           # zero the 2 junk columns of every pitch row

        if padded_out:
            # write into the zero-padded layout the next 3x3 conv consumes directly
            o_ref[...] = jnp.zeros_like(o_ref)
            o_ref[0, w + 3:w + 3 + length, :] = acc.astype(o_ref.dtype)
        else:
            o_ref[0] = acc.astype(o_ref.dtype)

    return kernel


def _valid_col_mask(h, w):
    pitch = w + 2
    cols = np.arange(h * pitch) % pitch
    return jnp.asarray((cols < w).astype(np.float32).reshape(h * pitch, 1))


def conv3x3(x_pad_flat, w9, mask, *, h, w, bias=None, residual=None,
            padded_out=False, out_dtype=jnp.float32):
    """Implicit-GEMM 3x3 stride-1 conv (pad=1) on the flat zero-padded layout.

    x_pad_flat: (N, (h+3)*(w+2), Cin) bf16 -- pixel (y, x) at flat (y+1)*(w+2)+(x+1), pads are 0
    w9:         (9, Cin, Cout) bf16, tap order (kh, kw)
    mask:       (h*(w+2), 1) f32, 1.0 on the w valid columns of each pitch row
    residual:   optional (N, h*(w+2), Cout), added in f32 in the epilogue
    output:     padded_out -> same padded layout (zero borders, bf16/f32);
                else (N, h*(w+2), Cout) with pixel (y, x) at flat y*(w+2)+x.
    """
    n, lin, cin = x_pad_flat.shape
    cout = w9.shape[2]
    pitch = w + 2
    length = h * pitch
    lout = lin if padded_out else length

    tn = _choose_tn(cout)
    if n * (cout // tn) < 2 and tn % 256 == 0:   # keep both TensorCores busy when possible
        tn //= 2

    in_specs = [pl.BlockSpec((1, lin, cin), lambda i, j: (i, 0, 0)),
                pl.BlockSpec((9, cin, tn), lambda i, j: (0, 0, j)),
                pl.BlockSpec((length, 1), lambda i, j: (0, 0))]
    inputs = [x_pad_flat, w9, mask]
    if bias is not None:
        in_specs.append(pl.BlockSpec((1, tn), lambda i, j: (0, j)))
        inputs.append(bias.astype(jnp.float32))
    if residual is not None:
        in_specs.append(pl.BlockSpec((1, length, tn), lambda i, j: (i, 0, j)))
        inputs.append(residual.astype(jnp.float32))

    return pl.pallas_call(
        _make_conv3x3_kernel(h, w, bias is not None, residual is not None, padded_out),
        out_shape=jax.ShapeDtypeStruct((n, lout, cout), out_dtype),
        grid_spec=pltpu.PrefetchScalarGridSpec(
            num_scalar_prefetch=0,
            grid=(n, cout // tn),
            in_specs=in_specs,
            out_specs=pl.BlockSpec((1, lout, tn), lambda i, j: (i, 0, j)),
            scratch_shapes=[]),
        compiler_params=_compiler_params(("parallel", "parallel")),
    )(*inputs)


# ----------------------------- BasicBlock forward -----------------------------

def _conv_w9(w_oihw, cin_pad, cout_pad):
    """PyTorch (Cout, Cin, 3, 3) -> channel-padded (9, cin_pad, cout_pad), tap order (kh, kw)."""
    cout, cin, kh, kw = w_oihw.shape
    wt = jnp.transpose(w_oihw, (2, 3, 1, 0))
    wt = jnp.pad(wt, ((0, 0), (0, 0), (0, cin_pad - cin), (0, cout_pad - cout)))
    return wt.reshape(kh * kw, cin_pad, cout_pad)


@functools.partial(jax.jit, static_argnames=("stride",))
def basic_block_forward(x_nchw, p, stride):
    x = jnp.transpose(x_nchw, (0, 2, 3, 1)).astype(jnp.float32)       # NHWC
    n, h, w, cin = x.shape
    cout = p["conv1_w"].shape[0]
    equal = (cin == cout)
    assert (not equal) or stride == 1, "identity shortcut requires stride == 1"
    cinp = _round_up(cin, 128)
    coutp = _round_up(cout, 128)
    ho = (h - 1) // stride + 1
    wo = (w - 1) // stride + 1

    xp = jnp.pad(x, ((0, 0), (0, 0), (0, 0), (0, cinp - cin)))        # lane-dense channels

    # folded BN affines (inference, running stats)
    s1 = p["bn1_gamma"] / jnp.sqrt(p["bn1_var"] + EPS)
    b1 = p["bn1_beta"] - p["bn1_mean"] * s1
    s2 = p["bn2_gamma"] / jnp.sqrt(p["bn2_var"] + EPS)
    b2 = p["bn2_beta"] - p["bn2_mean"] * s2
    s1p = jnp.pad(s1, (0, cinp - cin)).reshape(1, 1, 1, cinp)
    b1p = jnp.pad(b1, (0, cinp - cin)).reshape(1, 1, 1, cinp)
    s2p = jnp.pad(s2, (0, coutp - cout))
    b2p = jnp.pad(b2, (0, coutp - cout)).reshape(1, coutp)

    # BN1 + ReLU1 fused with the conv-layout conversion (bf16, zero-padded borders)
    act_pad = bn_relu_pad(xp, s1p, b1p)                               # (N, H+3, W+2, Cinp)

    # conv weights; BN2 scale folded into conv1's output channels
    w1 = (_conv_w9(p["conv1_w"], cinp, coutp) * s2p[None, None, :]).astype(jnp.bfloat16)
    w2 = _conv_w9(p["conv2_w"], coutp, coutp).astype(jnp.bfloat16)
    mask_out = _valid_col_mask(ho, wo)

    # ---- conv1 (3x3, stride) + BN2 + ReLU2 ----
    if stride == 1:
        act_flat = act_pad.reshape(n, (h + 3) * (w + 2), cinp)
        out1_flat = conv3x3(act_flat, w1, mask_out, h=h, w=w, bias=b2p,
                            padded_out=True, out_dtype=jnp.bfloat16)
    else:
        # downsample block only: strided conv1 via im2col + tiled GEMM (bf16 epilogue)
        cols = [act_pad[:, kh:kh + stride * ho:stride, kw:kw + stride * wo:stride, :]
                for kh in range(3) for kw in range(3)]
        patches = jnp.concatenate(cols, axis=-1).reshape(n * ho * wo, 9 * cinp)
        out1 = tiled_gemm(patches, w1.reshape(9 * cinp, coutp), bias=b2p,
                          out_dtype=jnp.bfloat16)
        out1 = jnp.pad(out1.reshape(n, ho, wo, coutp), ((0, 0), (1, 2), (1, 1), (0, 0)))
        out1_flat = out1.reshape(n, (ho + 3) * (wo + 2), coutp)

    # ---- shortcut branch ----
    if equal:
        # identity: original (pre-BN) x, laid out to match conv2's accumulator rows
        res = jnp.pad(xp, ((0, 0), (0, 0), (0, 2), (0, 0))).reshape(n, h * (w + 2), cinp)
    else:
        # 1x1 (strided) convShortcut on relu(bn1(x)) as a small K=Cin Pallas GEMM
        act_s = act_pad[:, 1:1 + stride * ho:stride, 1:1 + stride * wo:stride, :]
        wsc = jnp.pad(p["convShortcut_w"][:, :, 0, 0].T,
                      ((0, cinp - cin), (0, coutp - cout)))
        short = tiled_gemm(act_s.reshape(n * ho * wo, cinp), wsc, out_dtype=jnp.float32)
        res = jnp.pad(short.reshape(n, ho, wo, coutp),
                      ((0, 0), (0, 0), (0, 2), (0, 0))).reshape(n, ho * (wo + 2), coutp)

    # ---- conv2 (3x3, stride 1) with the shortcut fused as a residual epilogue ----
    y_flat = conv3x3(out1_flat, w2, mask_out, h=ho, w=wo, residual=res,
                     padded_out=False, out_dtype=jnp.float32)
    y = y_flat.reshape(n, ho, wo + 2, coutp)[:, :, :wo, :cout]
    return jnp.transpose(y, (0, 3, 1, 2))                             # back to NCHW


# ----------------------------- reference (pure JAX) -----------------------------

def _bn_ref(x, gamma, beta, mean, var):
    return (x - mean[None, :, None, None]) / jnp.sqrt(var[None, :, None, None] + EPS) \
        * gamma[None, :, None, None] + beta[None, :, None, None]


def _conv_ref(x, w, stride, pad):
    return jax.lax.conv_general_dilated(
        x, w, (stride, stride), ((pad, pad), (pad, pad)),
        dimension_numbers=("NCHW", "OIHW", "NCHW"))


def basic_block_ref(x, p, stride):
    cin = x.shape[1]
    cout = p["conv1_w"].shape[0]
    equal = (cin == cout)
    if not equal:
        x = jax.nn.relu(_bn_ref(x, p["bn1_gamma"], p["bn1_beta"], p["bn1_mean"], p["bn1_var"]))
        out = x
    else:
        out = jax.nn.relu(_bn_ref(x, p["bn1_gamma"], p["bn1_beta"], p["bn1_mean"], p["bn1_var"]))
    out = _conv_ref(out, p["conv1_w"], stride, 1)
    out = jax.nn.relu(_bn_ref(out, p["bn2_gamma"], p["bn2_beta"], p["bn2_mean"], p["bn2_var"]))
    out = _conv_ref(out, p["conv2_w"], 1, 1)
    short = x if equal else _conv_ref(x, p["convShortcut_w"], stride, 0)
    return short + out


# ----------------------------- param init -----------------------------

def make_params(key, in_planes, out_planes):
    ks = jax.random.split(key, 8)
    p = {
        "bn1_gamma": jax.random.uniform(ks[0], (in_planes,), jnp.float32, 0.5, 1.5),
        "bn1_beta": jax.random.normal(ks[1], (in_planes,), jnp.float32) * 0.1,
        "bn1_mean": jax.random.normal(ks[2], (in_planes,), jnp.float32) * 0.1,
        "bn1_var": jax.random.uniform(ks[3], (in_planes,), jnp.float32, 0.5, 1.5),
        "bn2_gamma": jax.random.uniform(ks[4], (out_planes,), jnp.float32, 0.5, 1.5),
        "bn2_beta": jax.random.normal(ks[5], (out_planes,), jnp.float32) * 0.1,
        "bn2_mean": jax.random.normal(ks[6], (out_planes,), jnp.float32) * 0.1,
        "bn2_var": jax.random.uniform(ks[7], (out_planes,), jnp.float32, 0.5, 1.5),
        "conv1_w": jax.random.normal(jax.random.fold_in(key, 100),
                                     (out_planes, in_planes, 3, 3), jnp.float32) * 0.1,
        "conv2_w": jax.random.normal(jax.random.fold_in(key, 101),
                                     (out_planes, out_planes, 3, 3), jnp.float32) * 0.1,
    }
    if in_planes != out_planes:
        p["convShortcut_w"] = jax.random.normal(
            jax.random.fold_in(key, 102), (out_planes, in_planes, 1, 1), jnp.float32) * 0.1
    return p


# ----------------------------- main -----------------------------

if __name__ == "__main__":
    key = jax.random.PRNGKey(0)

    # Case 1: in_planes != out_planes, stride 2 (im2col GEMM conv1 + 1x1 shortcut GEMM + fused add)
    x1 = jax.random.normal(jax.random.fold_in(key, 1), (2, 4, 16, 16), jnp.float32)
    p1 = make_params(jax.random.fold_in(key, 2), 4, 8)
    y1 = jax.block_until_ready(basic_block_forward(x1, p1, stride=2))
    r1 = basic_block_ref(x1, p1, stride=2)
    # bf16 MXU inputs -> relaxed tolerance
    np.testing.assert_allclose(np.asarray(y1), np.asarray(r1), rtol=2e-2, atol=2e-2)

    # Case 2: in_planes == out_planes, stride 1 (implicit-GEMM convs + identity residual epilogue)
    x2 = jax.random.normal(jax.random.fold_in(key, 3), (2, 8, 16, 16), jnp.float32)
    p2 = make_params(jax.random.fold_in(key, 4), 8, 8)
    y2 = jax.block_until_ready(basic_block_forward(x2, p2, stride=1))
    r2 = basic_block_ref(x2, p2, stride=1)
    np.testing.assert_allclose(np.asarray(y2), np.asarray(r2), rtol=2e-2, atol=2e-2)

    print("KERNEL_OK")
</pallas_src>

<mosaic_0001>
module attributes {stable_mosaic.version = 11 : i64} {
  func.func @kernel(%arg0: i32, %arg1: memref<1x16x16x128xf32, #tpu.memory_space<vmem>>, %arg2: memref<1x1x1x128xf32, #tpu.memory_space<vmem>>, %arg3: memref<1x1x1x128xf32, #tpu.memory_space<vmem>>, %arg4: memref<1x19x18x128xbf16, #tpu.memory_space<vmem>>) attributes {dimension_semantics = [#tpu.dimension_semantics<parallel>], iteration_bounds = array<i64: 2>, scalar_prefetch = 0 : i64, scratch_operands = 0 : i64, tpu.core_type = #tpu.core_type<tc>, window_params = [{transform_indices = @transform_0, window_bounds = array<i64: 1, 16, 16, 128>}, {pipeline_mode = #tpu.pipeline_mode<synchronous>, transform_indices = @transform_1, window_bounds = array<i64: 1, 1, 1, 128>}, {pipeline_mode = #tpu.pipeline_mode<synchronous>, transform_indices = @transform_2, window_bounds = array<i64: 1, 1, 1, 128>}, {transform_indices = @transform_3, window_bounds = array<i64: 1, 19, 18, 128>}]} {
    %c0 = arith.constant 0 : index
    %c0_0 = arith.constant 0 : index
    %c0_1 = arith.constant 0 : index
    %c0_2 = arith.constant 0 : index
    %0 = vector.load %arg1[%c0, %c0_0, %c0_1, %c0_2] : memref<1x16x16x128xf32, #tpu.memory_space<vmem>>, vector<1x16x16x128xf32>
    %c0_3 = arith.constant 0 : index
    %c0_4 = arith.constant 0 : index
    %c0_5 = arith.constant 0 : index
    %c0_6 = arith.constant 0 : index
    %1 = vector.load %arg2[%c0_3, %c0_4, %c0_5, %c0_6] : memref<1x1x1x128xf32, #tpu.memory_space<vmem>>, vector<1x1x1x128xf32>
    %2 = vector.broadcast %1 : vector<1x1x1x128xf32> to vector<1x16x16x128xf32>
    %3 = arith.mulf %0, %2 : vector<1x16x16x128xf32>
    %c0_7 = arith.constant 0 : index
    %c0_8 = arith.constant 0 : index
    %c0_9 = arith.constant 0 : index
    %c0_10 = arith.constant 0 : index
    %4 = vector.load %arg3[%c0_7, %c0_8, %c0_9, %c0_10] : memref<1x1x1x128xf32, #tpu.memory_space<vmem>>, vector<1x1x1x128xf32>
    %5 = vector.broadcast %4 : vector<1x1x1x128xf32> to vector<1x16x16x128xf32>
    %6 = arith.addf %3, %5 : vector<1x16x16x128xf32>
    %cst = arith.constant 0.000000e+00 : f32
    %7 = vector.broadcast %cst : f32 to vector<1x16x16x128xf32>
    %8 = arith.maximumf %6, %7 : vector<1x16x16x128xf32>
    %cst_11 = arith.constant 0.000000e+00 : bf16
    %9 = vector.broadcast %cst_11 : bf16 to vector<1x19x18x128xbf16>
    %c0_12 = arith.constant 0 : index
    %c0_13 = arith.constant 0 : index
    %c0_14 = arith.constant 0 : index
    %c0_15 = arith.constant 0 : index
    %10 = vector.load %arg4[%c0_12, %c0_13, %c0_14, %c0_15] : memref<1x19x18x128xbf16, #tpu.memory_space<vmem>>, vector<1x19x18x128xbf16>
    tpu.vector_store %arg4[%c0_12, %c0_13, %c0_14, %c0_15], %9 {strides = array<i32>} : memref<1x19x18x128xbf16, #tpu.memory_space<vmem>>, vector<1x19x18x128xbf16>,
    %11 = vector.shape_cast %8 : vector<1x16x16x128xf32> to vector<16x16x128xf32>
    %12 = arith.truncf %11 : vector<16x16x128xf32> to vector<16x16x128xbf16>
    %c0_16 = arith.constant 0 : index
    %c1 = arith.constant 1 : index
    %c1_17 = arith.constant 1 : index
    %c0_18 = arith.constant 0 : index
    %13 = vector.load %arg4[%c0_16, %c1, %c1_17, %c0_18] : memref<1x19x18x128xbf16, #tpu.memory_space<vmem>>, vector<1x16x16x128xbf16>
    %14 = vector.shape_cast %13 : vector<1x16x16x128xbf16> to vector<16x16x128xbf16>
    %15 = vector.shape_cast %12 : vector<16x16x128xbf16> to vector<1x16x16x128xbf16>
    tpu.vector_store %arg4[%c0_16, %c1, %c1_17, %c0_18], %15 {strides = array<i32>} : memref<1x19x18x128xbf16, #tpu.memory_space<vmem>>, vector<1x16x16x128xbf16>,
    return
  }
  func.func @transform_0(%arg0: i32) -> (i32, i32, i32, i32) {
    %c0_i32 = arith.constant 0 : i32
    %c0_i32_0 = arith.constant 0 : i32
    %c0_i32_1 = arith.constant 0 : i32
    %c0_i32_2 = arith.constant 0 : i32
    return %arg0, %c0_i32, %c0_i32_0, %c0_i32_1 : i32, i32, i32, i32
  }
  func.func @transform_1(%arg0: i32) -> (i32, i32, i32, i32) {
    %c0_i32 = arith.constant 0 : i32
    %c0_i32_0 = arith.constant 0 : i32
    %c0_i32_1 = arith.constant 0 : i32
    %c0_i32_2 = arith.constant 0 : i32
    %c0_i32_3 = arith.constant 0 : i32
    return %c0_i32, %c0_i32_0, %c0_i32_1, %c0_i32_2 : i32, i32, i32, i32
  }
  func.func @transform_2(%arg0: i32) -> (i32, i32, i32, i32) {
    %c0_i32 = arith.constant 0 : i32
    %c0_i32_0 = arith.constant 0 : i32
    %c0_i32_1 = arith.constant 0 : i32
    %c0_i32_2 = arith.constant 0 : i32
    %c0_i32_3 = arith.constant 0 : i32
    return %c0_i32, %c0_i32_0, %c0_i32_1, %c0_i32_2 : i32, i32, i32, i32
  }
  func.func @transform_3(%arg0: i32) -> (i32, i32, i32, i32) {
    %c0_i32 = arith.constant 0 : i32
    %c0_i32_0 = arith.constant 0 : i32
    %c0_i32_1 = arith.constant 0 : i32
    %c0_i32_2 = arith.constant 0 : i32
    return %arg0, %c0_i32, %c0_i32_0, %c0_i32_1 : i32, i32, i32, i32
  }
}

module attributes {stable_mosaic.version = 11 : i64} {
  func.func @kernel(%arg0: i32, %arg1: i32, %arg2: i32, %arg3: memref<64x384xbf16, #tpu.memory_space<vmem>>, %arg4: memref<384x128xbf16, #tpu.memory_space<vmem>>, %arg5: memref<1x128xf32, #tpu.memory_space<vmem>>, %arg6: memref<64x128xbf16, #tpu.memory_space<vmem>>, %arg7: memref<64x128xf32, #tpu.memory_space<vmem>>) attributes {dimension_semantics = [#tpu.dimension_semantics<parallel>, #tpu.dimension_semantics<parallel>, #tpu.dimension_semantics<arbitrary>], iteration_bounds = array<i64: 2, 1, 3>, scalar_prefetch = 0 : i64, scratch_operands = 1 : i64, tpu.core_type = #tpu.core_type<tc>, window_params = [{transform_indices = @transform_0, window_bounds = array<i64: 64, 384>}, {transform_indices = @transform_1, window_bounds = array<i64: 384, 128>}, {transform_indices = @transform_2, window_bounds = array<i64: 1, 128>}, {transform_indices = @transform_3, window_bounds = array<i64: 64, 128>}]} {
    %c0_i32 = arith.constant 0 : i32
    %0 = arith.cmpi eq, %arg2, %c0_i32 : i32
    %1 = arith.extui %0 : i1 to i32
    %c0_i32_0 = arith.constant 0 : i32
    %2 = arith.cmpi ne, %1, %c0_i32_0 : i32
    scf.if %2 {
      %cst_9 = arith.constant 0.000000e+00 : f32
      %12 = vector.broadcast %cst_9 : f32 to vector<64x128xf32>
      %c0_10 = arith.constant 0 : index
      %c0_11 = arith.constant 0 : index
      %13 = vector.load %arg7[%c0_10, %c0_11] : memref<64x128xf32, #tpu.memory_space<vmem>>, vector<64x128xf32>
      tpu.vector_store %arg7[%c0_10, %c0_11], %12 {strides = array<i32>} : memref<64x128xf32, #tpu.memory_space<vmem>>, vector<64x128xf32>,
    } else {
    }
    %c0 = arith.constant 0 : index
    %c0_1 = arith.constant 0 : index
    %3 = vector.load %arg7[%c0, %c0_1] : memref<64x128xf32, #tpu.memory_space<vmem>>, vector<64x128xf32>
    %c0_2 = arith.constant 0 : index
    %c0_3 = arith.constant 0 : index
    %4 = vector.load %arg3[%c0_2, %c0_3] : memref<64x384xbf16, #tpu.memory_space<vmem>>, vector<64x384xbf16>
    %c0_4 = arith.constant 0 : index
    %c0_5 = arith.constant 0 : index
    %5 = vector.load %arg4[%c0_4, %c0_5] : memref<384x128xbf16, #tpu.memory_space<vmem>>, vector<384x128xbf16>
    %cst = arith.constant dense<0.000000e+00> : vector<64x128xf32>
    %6 = tpu.matmul %4, %5, %cst {dimension_numbers = #tpu.dot_dimension_numbers<[1], [0], [0], [1], [0, 0, 1, 1], [], []>} : vector<64x384xbf16>, vector<384x128xbf16>, vector<64x128xf32> -> vector<64x128xf32>
    %7 = arith.addf %3, %6 : vector<64x128xf32>
    %c0_6 = arith.constant 0 : index
    %c0_7 = arith.constant 0 : index
    %8 = vector.load %arg7[%c0_6, %c0_7] : memref<64x128xf32, #tpu.memory_space<vmem>>, vector<64x128xf32>
    tpu.vector_store %arg7[%c0_6, %c0_7], %7 {strides = array<i32>} : memref<64x128xf32, #tpu.memory_space<vmem>>, vector<64x128xf32>,
    %c2_i32 = arith.constant 2 : i32
    %9 = arith.cmpi eq, %arg2, %c2_i32 : i32
    %10 = arith.extui %9 : i1 to i32
    %c0_i32_8 = arith.constant 0 : i32
    %11 = arith.cmpi ne, %10, %c0_i32_8 : i32
    scf.if %11 {
      %c0_9 = arith.constant 0 : index
      %c0_10 = arith.constant 0 : index
      %12 = vector.load %arg7[%c0_9, %c0_10] : memref<64x128xf32, #tpu.memory_space<vmem>>, vector<64x128xf32>
      %c0_11 = arith.constant 0 : index
      %c0_12 = arith.constant 0 : index
      %13 = vector.load %arg5[%c0_11, %c0_12] : memref<1x128xf32, #tpu.memory_space<vmem>>, vector<1x128xf32>
      %14 = vector.broadcast %13 : vector<1x128xf32> to vector<64x128xf32>
      %15 = arith.addf %12, %14 : vector<64x128xf32>
      %cst_13 = arith.constant 0.000000e+00 : f32
      %16 = vector.broadcast %cst_13 : f32 to vector<64x128xf32>
      %17 = arith.maximumf %15, %16 : vector<64x128xf32>
      %18 = arith.truncf %17 : vector<64x128xf32> to vector<64x128xbf16>
      %c0_14 = arith.constant 0 : index
      %c0_15 = arith.constant 0 : index
      %19 = vector.load %arg6[%c0_14, %c0_15] : memref<64x128xbf16, #tpu.memory_space<vmem>>, vector<64x128xbf16>
      tpu.vector_store %arg6[%c0_14, %c0_15], %18 {strides = array<i32>} : memref<64x128xbf16, #tpu.memory_space<vmem>>, vector<64x128xbf16>,
    } else {
    }
    return
  }
  func.func @transform_0(%arg0: i32, %arg1: i32, %arg2: i32) -> (i32, i32) {
    %c0_i32 = arith.constant 0 : i32
    return %arg0, %arg2 : i32, i32
  }
  func.func @transform_1(%arg0: i32, %arg1: i32, %arg2: i32) -> (i32, i32) {
    %c0_i32 = arith.constant 0 : i32
    return %arg2, %arg1 : i32, i32
  }
  func.func @transform_2(%arg0: i32, %arg1: i32, %arg2: i32) -> (i32, i32) {
    %c0_i32 = arith.constant 0 : i32
    %c0_i32_0 = arith.constant 0 : i32
    return %c0_i32, %arg1 : i32, i32
  }
  func.func @transform_3(%arg0: i32, %arg1: i32, %arg2: i32) -> (i32, i32) {
    %c0_i32 = arith.constant 0 : i32
    return %arg0, %arg1 : i32, i32
  }
}

module attributes {stable_mosaic.version = 11 : i64} {
  func.func @kernel(%arg0: i32, %arg1: i32, %arg2: i32, %arg3: memref<64x128xbf16, #tpu.memory_space<vmem>>, %arg4: memref<128x128xbf16, #tpu.memory_space<vmem>>, %arg5: memref<64x128xf32, #tpu.memory_space<vmem>>, %arg6: memref<64x128xf32, #tpu.memory_space<vmem>>) attributes {dimension_semantics = [#tpu.dimension_semantics<parallel>, #tpu.dimension_semantics<parallel>, #tpu.dimension_semantics<arbitrary>], iteration_bounds = array<i64: 2, 1, 1>, scalar_prefetch = 0 : i64, scratch_operands = 1 : i64, tpu.core_type = #tpu.core_type<tc>, window_params = [{transform_indices = @transform_0, window_bounds = array<i64: 64, 128>}, {transform_indices = @transform_1, window_bounds = array<i64: 128, 128>}, {transform_indices = @transform_2, window_bounds = array<i64: 64, 128>}]} {
    %c0_i32 = arith.constant 0 : i32
    %0 = arith.cmpi eq, %arg2, %c0_i32 : i32
    %1 = arith.extui %0 : i1 to i32
    %c0_i32_0 = arith.constant 0 : i32
    %2 = arith.cmpi ne, %1, %c0_i32_0 : i32
    scf.if %2 {
      %cst_10 = arith.constant 0.000000e+00 : f32
      %12 = vector.broadcast %cst_10 : f32 to vector<64x128xf32>
      %c0_11 = arith.constant 0 : index
      %c0_12 = arith.constant 0 : index
      %13 = vector.load %arg6[%c0_11, %c0_12] : memref<64x128xf32, #tpu.memory_space<vmem>>, vector<64x128xf32>
      tpu.vector_store %arg6[%c0_11, %c0_12], %12 {strides = array<i32>} : memref<64x128xf32, #tpu.memory_space<vmem>>, vector<64x128xf32>,
    } else {
    }
    %c0 = arith.constant 0 : index
    %c0_1 = arith.constant 0 : index
    %3 = vector.load %arg6[%c0, %c0_1] : memref<64x128xf32, #tpu.memory_space<vmem>>, vector<64x128xf32>
    %c0_2 = arith.constant 0 : index
    %c0_3 = arith.constant 0 : index
    %4 = vector.load %arg3[%c0_2, %c0_3] : memref<64x128xbf16, #tpu.memory_space<vmem>>, vector<64x128xbf16>
    %c0_4 = arith.constant 0 : index
    %c0_5 = arith.constant 0 : index
    %5 = vector.load %arg4[%c0_4, %c0_5] : memref<128x128xbf16, #tpu.memory_space<vmem>>, vector<128x128xbf16>
    %cst = arith.constant dense<0.000000e+00> : vector<64x128xf32>
    %6 = tpu.matmul %4, %5, %cst {dimension_numbers = #tpu.dot_dimension_numbers<[1], [0], [0], [1], [0, 0, 1, 1], [], []>} : vector<64x128xbf16>, vector<128x128xbf16>, vector<64x128xf32> -> vector<64x128xf32>
    %7 = arith.addf %3, %6 : vector<64x128xf32>
    %c0_6 = arith.constant 0 : index
    %c0_7 = arith.constant 0 : index
    %8 = vector.load %arg6[%c0_6, %c0_7] : memref<64x128xf32, #tpu.memory_space<vmem>>, vector<64x128xf32>
    tpu.vector_store %arg6[%c0_6, %c0_7], %7 {strides = array<i32>} : memref<64x128xf32, #tpu.memory_space<vmem>>, vector<64x128xf32>,
    %c0_i32_8 = arith.constant 0 : i32
    %9 = arith.cmpi eq, %arg2, %c0_i32_8 : i32
    %10 = arith.extui %9 : i1 to i32
    %c0_i32_9 = arith.constant 0 : i32
    %11 = arith.cmpi ne, %10, %c0_i32_9 : i32
    scf.if %11 {
      %c0_10 = arith.constant 0 : index
      %c0_11 = arith.constant 0 : index
      %12 = vector.load %arg6[%c0_10, %c0_11] : memref<64x128xf32, #tpu.memory_space<vmem>>, vector<64x128xf32>
      %c0_12 = arith.constant 0 : index
      %c0_13 = arith.constant 0 : index
      %13 = vector.load %arg5[%c0_12, %c0_13] : memref<64x128xf32, #tpu.memory_space<vmem>>, vector<64x128xf32>
      tpu.vector_store %arg5[%c0_12, %c0_13], %12 {strides = array<i32>} : memref<64x128xf32, #tpu.memory_space<vmem>>, vector<64x128xf32>,
    } else {
    }
    return
  }
  func.func @transform_0(%arg0: i32, %arg1: i32, %arg2: i32) -> (i32, i32) {
    %c0_i32 = arith.constant 0 : i32
    return %arg0, %arg2 : i32, i32
  }
  func.func @transform_1(%arg0: i32, %arg1: i32, %arg2: i32) -> (i32, i32) {
    %c0_i32 = arith.constant 0 : i32
    return %arg2, %arg1 : i32, i32
  }
  func.func @transform_2(%arg0: i32, %arg1: i32, %arg2: i32) -> (i32, i32) {
    %c0_i32 = arith.constant 0 : i32
    return %arg0, %arg1 : i32, i32
  }
}

module attributes {stable_mosaic.version = 11 : i64} {
  func.func @kernel(%arg0: i32, %arg1: i32, %arg2: memref<1x110x128xbf16, #tpu.memory_space<vmem>>, %arg3: memref<9x128x128xbf16, #tpu.memory_space<vmem>>, %arg4: memref<80x1xf32, #tpu.memory_space<vmem>>, %arg5: memref<1x80x128xf32, #tpu.memory_space<vmem>>, %arg6: memref<1x80x128xf32, #tpu.memory_space<vmem>>) attributes {dimension_semantics = [#tpu.dimension_semantics<parallel>, #tpu.dimension_semantics<parallel>], iteration_bounds = array<i64: 2, 1>, scalar_prefetch = 0 : i64, scratch_operands = 0 : i64, tpu.core_type = #tpu.core_type<tc>, window_params = [{transform_indices = @transform_0, window_bounds = array<i64: 1, 110, 128>}, {transform_indices = @transform_1, window_bounds = array<i64: 9, 128, 128>}, {pipeline_mode = #tpu.pipeline_mode<synchronous>, transform_indices = @transform_2, window_bounds = array<i64: 80, 1>}, {transform_indices = @transform_3, window_bounds = array<i64: 1, 80, 128>}, {transform_indices = @transform_4, window_bounds = array<i64: 1, 80, 128>}]} {
    %c0 = arith.constant 0 : index
    %c0_0 = arith.constant 0 : index
    %c0_1 = arith.constant 0 : index
    %0 = vector.load %arg2[%c0, %c0_0, %c0_1] : memref<1x110x128xbf16, #tpu.memory_space<vmem>>, vector<1x80x128xbf16>
    %1 = vector.shape_cast %0 : vector<1x80x128xbf16> to vector<80x128xbf16>
    %c0_2 = arith.constant 0 : index
    %c0_3 = arith.constant 0 : index
    %c0_4 = arith.constant 0 : index
    %2 = vector.load %arg3[%c0_2, %c0_3, %c0_4] : memref<9x128x128xbf16, #tpu.memory_space<vmem>>, vector<1x128x128xbf16>
    %3 = vector.shape_cast %2 : vector<1x128x128xbf16> to vector<128x128xbf16>
    %cst = arith.constant dense<0.000000e+00> : vector<80x128xf32>
    %4 = tpu.matmul %1, %3, %cst {dimension_numbers = #tpu.dot_dimension_numbers<[1], [0], [0], [1], [0, 0, 1, 1], [], []>} : vector<80x128xbf16>, vector<128x128xbf16>, vector<80x128xf32> -> vector<80x128xf32>
    %c0_5 = arith.constant 0 : index
    %c1 = arith.constant 1 : index
    %c0_6 = arith.constant 0 : index
    %5 = vector.load %arg2[%c0_5, %c1, %c0_6] : memref<1x110x128xbf16, #tpu.memory_space<vmem>>, vector<1x80x128xbf16>
    %6 = vector.shape_cast %5 : vector<1x80x128xbf16> to vector<80x128xbf16>
    %c1_7 = arith.constant 1 : index
    %c0_8 = arith.constant 0 : index
    %c0_9 = arith.constant 0 : index
    %7 = vector.load %arg3[%c1_7, %c0_8, %c0_9] : memref<9x128x128xbf16, #tpu.memory_space<vmem>>, vector<1x128x128xbf16>
    %8 = vector.shape_cast %7 : vector<1x128x128xbf16> to vector<128x128xbf16>
    %cst_10 = arith.constant dense<0.000000e+00> : vector<80x128xf32>
    %9 = tpu.matmul %6, %8, %cst_10 {dimension_numbers = #tpu.dot_dimension_numbers<[1], [0], [0], [1], [0, 0, 1, 1], [], []>} : vector<80x128xbf16>, vector<128x128xbf16>, vector<80x128xf32> -> vector<80x128xf32>
    %10 = arith.addf %4, %9 : vector<80x128xf32>
    %c0_11 = arith.constant 0 : index
    %c2 = arith.constant 2 : index
    %c0_12 = arith.constant 0 : index
    %11 = vector.load %arg2[%c0_11, %c2, %c0_12] : memref<1x110x128xbf16, #tpu.memory_space<vmem>>, vector<1x80x128xbf16>
    %12 = vector.shape_cast %11 : vector<1x80x128xbf16> to vector<80x128xbf16>
    %c2_13 = arith.constant 2 : index
    %c0_14 = arith.constant 0 : index
    %c0_15 = arith.constant 0 : index
    %13 = vector.load %arg3[%c2_13, %c0_14, %c0_15] : memref<9x128x128xbf16, #tpu.memory_space<vmem>>, vector<1x128x128xbf16>
    %14 = vector.shape_cast %13 : vector<1x128x128xbf16> to vector<128x128xbf16>
    %cst_16 = arith.constant dense<0.000000e+00> : vector<80x128xf32>
    %15 = tpu.matmul %12, %14, %cst_16 {dimension_numbers = #tpu.dot_dimension_numbers<[1], [0], [0], [1], [0, 0, 1, 1], [], []>} : vector<80x128xbf16>, vector<128x128xbf16>, vector<80x128xf32> -> vector<80x128xf32>
    %16 = arith.addf %10, %15 : vector<80x128xf32>
    %c0_17 = arith.constant 0 : index
    %c10 = arith.constant 10 : index
    %c0_18 = arith.constant 0 : index
    %17 = vector.load %arg2[%c0_17, %c10, %c0_18] : memref<1x110x128xbf16, #tpu.memory_space<vmem>>, vector<1x80x128xbf16>
    %18 = vector.shape_cast %17 : vector<1x80x128xbf16> to vector<80x128xbf16>
    %c3 = arith.constant 3 : index
    %c0_19 = arith.constant 0 : index
    %c0_20 = arith.constant 0 : index
    %19 = vector.load %arg3[%c3, %c0_19, %c0_20] : memref<9x128x128xbf16, #tpu.memory_space<vmem>>, vector<1x128x128xbf16>
    %20 = vector.shape_cast %19 : vector<1x128x128xbf16> to vector<128x128xbf16>
    %cst_21 = arith.constant dense<0.000000e+00> : vector<80x128xf32>
    %21 = tpu.matmul %18, %20, %cst_21 {dimension_numbers = #tpu.dot_dimension_numbers<[1], [0], [0], [1], [0, 0, 1, 1], [], []>} : vector<80x128xbf16>, vector<128x128xbf16>, vector<80x128xf32> -> vector<80x128xf32>
    %22 = arith.addf %16, %21 : vector<80x128xf32>
    %c0_22 = arith.constant 0 : index
    %c11 = arith.constant 11 : index
    %c0_23 = arith.constant 0 : index
    %23 = vector.load %arg2[%c0_22, %c11, %c0_23] : memref<1x110x128xbf16, #tpu.memory_space<vmem>>, vector<1x80x128xbf16>
    %24 = vector.shape_cast %23 : vector<1x80x128xbf16> to vector<80x128xbf16>
    %c4 = arith.constant 4 : index
    %c0_24 = arith.constant 0 : index
    %c0_25 = arith.constant 0 : index
    %25 = vector.load %arg3[%c4, %c0_24, %c0_25] : memref<9x128x128xbf16, #tpu.memory_space<vmem>>, vector<1x128x128xbf16>
    %26 = vector.shape_cast %25 : vector<1x128x128xbf16> to vector<128x128xbf16>
    %cst_26 = arith.constant dense<0.000000e+00> : vector<80x128xf32>
    %27 = tpu.matmul %24, %26, %cst_26 {dimension_numbers = #tpu.dot_dimension_numbers<[1], [0], [0], [1], [0, 0, 1, 1], [], []>} : vector<80x128xbf16>, vector<128x128xbf16>, vector<80x128xf32> -> vector<80x128xf32>
    %28 = arith.addf %22, %27 : vector<80x128xf32>
    %c0_27 = arith.constant 0 : index
    %c12 = arith.constant 12 : index
    %c0_28 = arith.constant 0 : index
    %29 = vector.load %arg2[%c0_27, %c12, %c0_28] : memref<1x110x128xbf16, #tpu.memory_space<vmem>>, vector<1x80x128xbf16>
    %30 = vector.shape_cast %29 : vector<1x80x128xbf16> to vector<80x128xbf16>
    %c5 = arith.constant 5 : index
    %c0_29 = arith.constant 0 : index
    %c0_30 = arith.constant 0 : index
    %31 = vector.load %arg3[%c5, %c0_29, %c0_30] : memref<9x128x128xbf16, #tpu.memory_space<vmem>>, vector<1x128x128xbf16>
    %32 = vector.shape_cast %31 : vector<1x128x128xbf16> to vector<128x128xbf16>
    %cst_31 = arith.constant dense<0.000000e+00> : vector<80x128xf32>
    %33 = tpu.matmul %30, %32, %cst_31 {dimension_numbers = #tpu.dot_dimension_numbers<[1], [0], [0], [1], [0, 0, 1, 1], [], []>} : vector<80x128xbf16>, vector<128x128xbf16>, vector<80x128xf32> -> vector<80x128xf32>
    %34 = arith.addf %28, %33 : vector<80x128xf32>
    %c0_32 = arith.constant 0 : index
    %c20 = arith.constant 20 : index
    %c0_33 = arith.constant 0 : index
    %35 = vector.load %arg2[%c0_32, %c20, %c0_33] : memref<1x110x128xbf16, #tpu.memory_space<vmem>>, vector<1x80x128xbf16>
    %36 = vector.shape_cast %35 : vector<1x80x128xbf16> to vector<80x128xbf16>
    %c6 = arith.constant 6 : index
    %c0_34 = arith.constant 0 : index
    %c0_35 = arith.constant 0 : index
    %37 = vector.load %arg3[%c6, %c0_34, %c0_35] : memref<9x128x128xbf16, #tpu.memory_space<vmem>>, vector<1x128x128xbf16>
    %38 = vector.shape_cast %37 : vector<1x128x128xbf16> to vector<128x128xbf16>
    %cst_36 = arith.constant dense<0.000000e+00> : vector<80x128xf32>
    %39 = tpu.matmul %36, %38, %cst_36 {dimension_numbers = #tpu.dot_dimension_numbers<[1], [0], [0], [1], [0, 0, 1, 1], [], []>} : vector<80x128xbf16>, vector<128x128xbf16>, vector<80x128xf32> -> vector<80x128xf32>
    %40 = arith.addf %34, %39 : vector<80x128xf32>
    %c0_37 = arith.constant 0 : index
    %c21 = arith.constant 21 : index
    %c0_38 = arith.constant 0 : index
    %41 = vector.load %arg2[%c0_37, %c21, %c0_38] : memref<1x110x128xbf16, #tpu.memory_space<vmem>>, vector<1x80x128xbf16>
    %42 = vector.shape_cast %41 : vector<1x80x128xbf16> to vector<80x128xbf16>
    %c7 = arith.constant 7 : index
    %c0_39 = arith.constant 0 : index
    %c0_40 = arith.constant 0 : index
    %43 = vector.load %arg3[%c7, %c0_39, %c0_40] : memref<9x128x128xbf16, #tpu.memory_space<vmem>>, vector<1x128x128xbf16>
    %44 = vector.shape_cast %43 : vector<1x128x128xbf16> to vector<128x128xbf16>
    %cst_41 = arith.constant dense<0.000000e+00> : vector<80x128xf32>
    %45 = tpu.matmul %42, %44, %cst_41 {dimension_numbers = #tpu.dot_dimension_numbers<[1], [0], [0], [1], [0, 0, 1, 1], [], []>} : vector<80x128xbf16>, vector<128x128xbf16>, vector<80x128xf32> -> vector<80x128xf32>
    %46 = arith.addf %40, %45 : vector<80x128xf32>
    %c0_42 = arith.constant 0 : index
    %c22 = arith.constant 22 : index
    %c0_43 = arith.constant 0 : index
    %47 = vector.load %arg2[%c0_42, %c22, %c0_43] : memref<1x110x128xbf16, #tpu.memory_space<vmem>>, vector<1x80x128xbf16>
    %48 = vector.shape_cast %47 : vector<1x80x128xbf16> to vector<80x128xbf16>
    %c8 = arith.constant 8 : index
    %c0_44 = arith.constant 0 : index
    %c0_45 = arith.constant 0 : index
    %49 = vector.load %arg3[%c8, %c0_44, %c0_45] : memref<9x128x128xbf16, #tpu.memory_space<vmem>>, vector<1x128x128xbf16>
    %50 = vector.shape_cast %49 : vector<1x128x128xbf16> to vector<128x128xbf16>
    %cst_46 = arith.constant dense<0.000000e+00> : vector<80x128xf32>
    %51 = tpu.matmul %48, %50, %cst_46 {dimension_numbers = #tpu.dot_dimension_numbers<[1], [0], [0], [1], [0, 0, 1, 1], [], []>} : vector<80x128xbf16>, vector<128x128xbf16>, vector<80x128xf32> -> vector<80x128xf32>
    %52 = arith.addf %46, %51 : vector<80x128xf32>
    %c0_47 = arith.constant 0 : index
    %c0_48 = arith.constant 0 : index
    %c0_49 = arith.constant 0 : index
    %53 = vector.load %arg5[%c0_47, %c0_48, %c0_49] : memref<1x80x128xf32, #tpu.memory_space<vmem>>, vector<1x80x128xf32>
    %54 = vector.shape_cast %53 : vector<1x80x128xf32> to vector<80x128xf32>
    %55 = arith.addf %52, %54 : vector<80x128xf32>
    %c0_50 = arith.constant 0 : index
    %c0_51 = arith.constant 0 : index
    %56 = vector.load %arg4[%c0_50, %c0_51] : memref<80x1xf32, #tpu.memory_space<vmem>>, vector<80x1xf32>
    %57 = vector.broadcast %56 : vector<80x1xf32> to vector<80x128xf32>
    %58 = arith.mulf %55, %57 : vector<80x128xf32>
    %c0_52 = arith.constant 0 : index
    %c0_53 = arith.constant 0 : index
    %c0_54 = arith.constant 0 : index
    %59 = vector.load %arg6[%c0_52, %c0_53, %c0_54] : memref<1x80x128xf32, #tpu.memory_space<vmem>>, vector<1x80x128xf32>
    %60 = vector.shape_cast %59 : vector<1x80x128xf32> to vector<80x128xf32>
    %61 = vector.shape_cast %58 : vector<80x128xf32> to vector<1x80x128xf32>
    tpu.vector_store %arg6[%c0_52, %c0_53, %c0_54], %61 {strides = array<i32>} : memref<1x80x128xf32, #tpu.memory_space<vmem>>, vector<1x80x128xf32>,
    return
  }
  func.func @transform_0(%arg0: i32, %arg1: i32) -> (i32, i32, i32) {
    %c0_i32 = arith.constant 0 : i32
    %c0_i32_0 = arith.constant 0 : i32
    %c0_i32_1 = arith.constant 0 : i32
    return %arg0, %c0_i32, %c0_i32_0 : i32, i32, i32
  }
  func.func @transform_1(%arg0: i32, %arg1: i32) -> (i32, i32, i32) {
    %c0_i32 = arith.constant 0 : i32
    %c0_i32_0 = arith.constant 0 : i32
    %c0_i32_1 = arith.constant 0 : i32
    return %c0_i32, %c0_i32_0, %arg1 : i32, i32, i32
  }
  func.func @transform_2(%arg0: i32, %arg1: i32) -> (i32, i32) {
    %c0_i32 = arith.constant 0 : i32
    %c0_i32_0 = arith.constant 0 : i32
    %c0_i32_1 = arith.constant 0 : i32
    return %c0_i32, %c0_i32_0 : i32, i32
  }
  func.func @transform_3(%arg0: i32, %arg1: i32) -> (i32, i32, i32) {
    %c0_i32 = arith.constant 0 : i32
    %c0_i32_0 = arith.constant 0 : i32
    return %arg0, %c0_i32, %arg1 : i32, i32, i32
  }
  func.func @transform_4(%arg0: i32, %arg1: i32) -> (i32, i32, i32) {
    %c0_i32 = arith.constant 0 : i32
    %c0_i32_0 = arith.constant 0 : i32
    return %arg0, %c0_i32, %arg1 : i32, i32, i32
  }
}

</mosaic_0001>

<llo_original>
// kernel: basic_block_forward.6
$region0: #{basic_block_forward.6}
  #allocation0 [shape = 'u32[]', space=smem, size = 0x4, offset = 0x4, fixed_abs, tag = 'smem constant byte address 0x4 - core index']
  #allocation1 [shape = 'u32[72,128]{1,0:T(1,128)}', space=vmem, size = 0x9000, scoped, tag = 'internal scratch']
  #allocation2 [shape = 'f32[64,128]{1,0:T(8,128)}', space=vmem, size = 0x8000, scoped, tag = 'scratch operand']
  %s0 = inlined_call_operand.vmem [shape: bf16[128,128], index: 0, kind: input, shape index: {}]
  %s1 = inlined_call_operand.vmem [shape: bf16[128,128], index: 1, kind: input, shape index: {}]
  %s2 = inlined_call_operand.vmem [shape: f32[128,128], index: 2, kind: output, shape index: {}]
  %s3 = sld [smem:[#allocation0]]
  $region49: #{basic_block_forward.6} parent=0
    _
  %s5 = ssub.s32 1, %s3
  %s6 = scalar_select 0, %s5, %s3
  loop: start=0, step=1, limit=4
  $region2: #{basic_block_forward.6} parent=0 // loop_pre_header
    _
  $region3: #{basic_block_forward.6} parent=0 // loop_header
    %s8 = sphi 0, %s12
    %p9 = scmp.ge.s32.totalorder %s8, 4
    %s15 = sphi 0, %s34
    %s16 = sphi 0, %s30
    %s17 = sphi 0, %s26
    %s18 = sphi 0, %s15
    %s19 = sphi 0, %s16
    %s20 = sphi 0, %s17
    %s21 = sphi 0, %s18
    %s22 = sphi 0, %s19
    %s23 = sphi 0, %s20
    %s39 = sphi 0, %s41
    %s42 = sphi 0, %s39
    %s43 = sphi 0, %s42
    %s59 = sphi 0, %s43
    %s67 = sphi 0, %s69
    %s70 = sphi 0, %s67
    %s71 = sphi 0, %s70
    %s87 = sphi 0, %s71
    %s95 = sphi 0, %s97
    %s98 = sphi 0, %s95
    %s99 = sphi 0, %s98
    %s115 = sphi 0, %s99
  $region4: #{basic_block_forward.6} parent=0 // loop_header_branch
    %11 = sbr.rel (%p9) target = $region8
  $region5: #{basic_block_forward.6} parent=0 // loop_body
    %s13 = ssub.s32 %s8, 1
    %s14 = ssub.s32 %s8, 2
    %s24 = sadd.s32 1, %s17
    %p25 = scmp.ge.s32.totalorder %s24, 1
    %s26 = scalar_select %p25, 0, %s24
    %s27 = sadd.s32 1, %s16
    %s28 = scalar_select %p25, %s27, %s16
    %p29 = scmp.ge.s32.totalorder %s28, 1
    %s30 = scalar_select %p29, 0, %s28
    %s31 = sadd.s32 1, %s15
    %s32 = scalar_select %p29, %s31, %s15
    %p33 = scmp.ge.s32.totalorder %s32, 2
    %s34 = scalar_select %p33, 0, %s32
    %s35 = ssub.s32 %s15, %s34
    %s36 = ssub.s32 %s17, %s26
    %s37 = sor.u32 %s35, %s36
    %p38 = scmp.eq.s32.totalorder %s37, 0
    %s40 = sadd.s32 %s39, 1
    %s41 = scalar_select %p38, %s39, %s40
    %p44 = pneg %p38
    %p45 = scmp.eq.s32.totalorder %s8, 1
    %p46 = por %p44, %p45
    %p47 = scmp.ne.s32.totalorder %s39, %s42
    %p48 = scmp.eq.s32.totalorder %s8, 0
    %p49 = por %p47, %p48
    %p50 = scmp.ne.s32.totalorder %s39, %s42
    %p51 = scmp.eq.s32.totalorder %s13, 1
    %p52 = por %p50, %p51
    %p53 = scmp.ne.s32.totalorder %s42, %s43
    %p54 = scmp.eq.s32.totalorder %s13, 0
    %p55 = por %p53, %p54
    %p56 = scmp.ne.s32.totalorder %s42, %s43
    %p57 = scmp.eq.s32.totalorder %s14, 1
    %p58 = por %p56, %p57
    %p60 = scmp.ne.s32.totalorder %s43, %s59
    %p61 = scmp.eq.s32.totalorder %s14, 0
    %p62 = por %p60, %p61
    %s63 = ssub.s32 %s17, %s26
    %s64 = ssub.s32 %s16, %s30
    %s65 = sor.u32 %s63, %s64
    %p66 = scmp.eq.s32.totalorder %s65, 0
    %s68 = sadd.s32 %s67, 1
    %s69 = scalar_select %p66, %s67, %s68
    %p72 = pneg %p66
    %p73 = scmp.eq.s32.totalorder %s8, 1
    %p74 = por %p72, %p73
    %p75 = scmp.ne.s32.totalorder %s67, %s70
    %p76 = scmp.eq.s32.totalorder %s8, 0
    %p77 = por %p75, %p76
    %p78 = scmp.ne.s32.totalorder %s67, %s70
    %p79 = scmp.eq.s32.totalorder %s13, 1
    %p80 = por %p78, %p79
    %p81 = scmp.ne.s32.totalorder %s70, %s71
    %p82 = scmp.eq.s32.totalorder %s13, 0
    %p83 = por %p81, %p82
    %p84 = scmp.ne.s32.totalorder %s70, %s71
    %p85 = scmp.eq.s32.totalorder %s14, 1
    %p86 = por %p84, %p85
    %p88 = scmp.ne.s32.totalorder %s71, %s87
    %p89 = scmp.eq.s32.totalorder %s14, 0
    %p90 = por %p88, %p89
    %s91 = ssub.s32 %s15, %s34
    %s92 = ssub.s32 %s16, %s30
    %s93 = sor.u32 %s91, %s92
    %p94 = scmp.eq.s32.totalorder %s93, 0
    %s96 = sadd.s32 %s95, 1
    %s97 = scalar_select %p94, %s95, %s96
    %p100 = pneg %p94
    %p101 = scmp.eq.s32.totalorder %s8, 1
    %p102 = por %p100, %p101
    %p103 = scmp.ne.s32.totalorder %s95, %s98
    %p104 = scmp.eq.s32.totalorder %s8, 0
    %p105 = por %p103, %p104
    %p106 = scmp.ne.s32.totalorder %s95, %s98
    %p107 = scmp.eq.s32.totalorder %s13, 1
    %p108 = por %p106, %p107
    %p109 = scmp.ne.s32.totalorder %s98, %s99
    %p110 = scmp.eq.s32.totalorder %s13, 0
    %p111 = por %p109, %p110
    %p112 = scmp.ne.s32.totalorder %s98, %s99
    %p113 = scmp.eq.s32.totalorder %s14, 1
    %p114 = por %p112, %p113
    %p116 = scmp.ne.s32.totalorder %s99, %s115
    %p117 = scmp.eq.s32.totalorder %s14, 0
    %p118 = por %p116, %p117
    %p119 = scmp.le.s32.totalorder 1, %s8
    %p120 = scmp.lt.s32.totalorder %s8, 3
    %p121 = pnand %p119, %p120
    %p122 = pneg %p121
    // Predicated region
    $region9: #{basic_block_forward.6} parent=5 // pred_check
      _
    $region10: #{basic_block_forward.6} parent=5 // pred_check_branch
      %124 = sbr.rel (%p121) target = $region12
    $region11: #{basic_block_forward.6} parent=5 // pred_region
      %s125 = ssub.s32 %s8, 1
      // Predicated region
      $region13: #{basic_block_forward.6} parent=11 // pred_check
        %p126 = pneg %p83
      $region14: #{basic_block_forward.6} parent=11 // pred_check_branch
        %128 = sbr.rel (%p126) target = $region16
      $region15: #{basic_block_forward.6} parent=11 // pred_region
        %s129 = smul.u32 16, %s20
        %p130 = scmp.lt.s32.totalorder %s129, 15
        %s131 = scalar_select %p130, %s129, 15
        %p132 = scmp.lt.s32.totalorder %s19, 0
        %s133 = scalar_select %p132, %s19, 0
        %s134 = sadd.s32 %s133, %s131
        %s135 = smul.addr %s134, 4
        %s136 = scalar_lea.vmem %s1, %s135
        %s137 = smul.u32 16, %s20
      $region16: #{basic_block_forward.6} parent=11 // pred_fallthru
        _
    $region12: #{basic_block_forward.6} parent=5 // pred_fallthru
      _
    %p138 = scmp.lt.s32.totalorder %s8, 2
    // Predicated region
    $region17: #{basic_block_forward.6} parent=5 // pred_check
      %p139 = pneg %p138
    $region18: #{basic_block_forward.6} parent=5 // pred_check_branch
      %141 = sbr.rel (%p139) target = $region20
    $region19: #{basic_block_forward.6} parent=5 // pred_region
      // Predicated region
      $region21: #{basic_block_forward.6} parent=19 // pred_check
        %p142 = pneg %p49
      $region22: #{basic_block_forward.6} parent=19 // pred_check_branch
        %144 = sbr.rel (%p142) target = $region24
      $region23: #{basic_block_forward.6} parent=19 // pred_region
        %s145 = smul.u32 8, %s15
        %p146 = scmp.lt.s32.totalorder %s145, 15
        %s147 = scalar_select %p146, %s145, 15
        %p148 = scmp.lt.s32.totalorder %s17, 0
        %s149 = scalar_select %p148, %s17, 0
        %s150 = sadd.s32 %s149, %s147
        %s151 = smul.addr %s150, 4
        %s152 = scalar_lea.vmem %s0, %s151
        %s153 = smul.u32 8, %s15
      $region24: #{basic_block_forward.6} parent=19 // pred_fallthru
        _
    $region20: #{basic_block_forward.6} parent=5 // pred_fallthru
      _
    %p154 = scmp.le.s32.totalorder 1, %s8
    %p155 = scmp.lt.s32.totalorder %s8, 3
    %p156 = pnand %p154, %p155
    %p157 = pneg %p156
    // Predicated region
    $region25: #{basic_block_forward.6} parent=5 // pred_check
      _
    $region26: #{basic_block_forward.6} parent=5 // pred_check_branch
      %159 = sbr.rel (%p156) target = $region28
    $region27: #{basic_block_forward.6} parent=5 // pred_region
      %s160 = ssub.s32 %s8, 1
      %s161 = smul.u32 8, %s18
      %p162 = scmp.lt.s32.totalorder %s161, 15
      %s163 = scalar_select %p162, %s161, 15
      %p164 = scmp.lt.s32.totalorder %s20, 0
      %s165 = scalar_select %p164, %s20, 0
      %s166 = sadd.s32 %s165, %s163
      %s167 = smul.addr %s166, 4
      %s168 = scalar_lea.vmem %s0, %s167
      %p169 = pneg %p55
      %p170 = pneg %p52
      %s171 = smul.u32 16, %s20
      %p172 = scmp.lt.s32.totalorder %s171, 15
      %s173 = scalar_select %p172, %s171, 15
      %p174 = scmp.lt.s32.totalorder %s19, 0
      %s175 = scalar_select %p174, %s19, 0
      %s176 = sadd.s32 %s175, %s173
      %s177 = smul.addr %s176, 4
      %s178 = scalar_lea.vmem %s1, %s177
      %p179 = pneg %p83
      %p180 = pneg %p80
      %p181 = pneg %p111
      %p182 = pneg %p108
      %s183 = smul.u32 8, %s18
      %p184 = scmp.lt.s32.totalorder %s183, 15
      %s185 = scalar_select %p184, %s183, 15
      %p186 = scmp.lt.s32.totalorder %s19, 0
      %s187 = scalar_select %p186, %s19, 0
      %s188 = sadd.s32 %s187, %s185
      %s189 = smul.addr %s188, 8
      %s190 = scalar_lea.vmem %s2, %s189
      %s191 = smul.u32 8, %s18
      %p192 = scmp.lt.s32.totalorder %s191, 15
      %s193 = scalar_select %p192, %s191, 15
      %p194 = scmp.lt.s32.totalorder %s20, 0
      %s195 = scalar_select %p194, %s20, 0
      %s196 = sadd.s32 %s195, %s193
      %s197 = smul.addr %s196, 4
      %s198 = scalar_lea.vmem %s0, %s197
      %s199 = smul.u32 8, %s18
      %s200 = smul.u32 16, %s20
      %p201 = scmp.lt.s32.totalorder %s200, 15
      %s202 = scalar_select %p201, %s200, 15
      %p203 = scmp.lt.s32.totalorder %s19, 0
      %s204 = scalar_select %p203, %s19, 0
      %s205 = sadd.s32 %s204, %s202
      %s206 = smul.addr %s205, 4
      %s207 = scalar_lea.vmem %s1, %s206
      %s208 = smul.u32 16, %s20
      %s209 = smul.u32 8, %s18
      %p210 = scmp.lt.s32.totalorder %s209, 15
      %s211 = scalar_select %p210, %s209, 15
      %p212 = scmp.lt.s32.totalorder %s19, 0
      %s213 = scalar_select %p212, %s19, 0
      %s214 = sadd.s32 %s213, %s211
      %s215 = smul.addr %s214, 8
      %s216 = scalar_lea.vmem %s2, %s215
      %s217 = smul.u32 8, %s18
      %p218 = scmp.eq.s32.totalorder %s20, 0
      // Predicated region
      $region29: #{basic_block_forward.6} parent=27 // pred_check
        %p219 = pneg %p218
      $region30: #{basic_block_forward.6} parent=27 // pred_check_branch
        %221 = sbr.rel (%p219) target = $region32
      $region31: #{basic_block_forward.6} parent=27 // pred_region
        %222 = vst [vmem:[#allocation2] sm:$0xff] 0.0
        %223 = vst [vmem:[#allocation2 + $0x8] sm:$0xff] 0.0
        %224 = vst [vmem:[#allocation2 + $0x10] sm:$0xff] 0.0
        %225 = vst [vmem:[#allocation2 + $0x18] sm:$0xff] 0.0
        %226 = vst [vmem:[#allocation2 + $0x20] sm:$0xff] 0.0
        %227 = vst [vmem:[#allocation2 + $0x28] sm:$0xff] 0.0
        %228 = vst [vmem:[#allocation2 + $0x30] sm:$0xff] 0.0
        %229 = vst [vmem:[#allocation2 + $0x38] sm:$0xff] 0.0
      $region32: #{basic_block_forward.6} parent=27 // pred_fallthru
        _
      %v230 = vld [vmem:[#allocation2] sm:$0xff]
      %v231 = vld [vmem:[#allocation2 + $0x8] sm:$0xff]
      %v232 = vld [vmem:[#allocation2 + $0x10] sm:$0xff]
      %v233 = vld [vmem:[#allocation2 + $0x18] sm:$0xff]
      %v234 = vld [vmem:[#allocation2 + $0x20] sm:$0xff]
      %v235 = vld [vmem:[#allocation2 + $0x28] sm:$0xff]
      %v236 = vld [vmem:[#allocation2 + $0x30] sm:$0xff]
      %v237 = vld [vmem:[#allocation2 + $0x38] sm:$0xff]
      %v238 = vld [vmem:[%s198] sm:$0xf]
      %v239 = vld [vmem:[%s198 + $0x4] sm:$0xf]
      %v240 = vld [vmem:[%s198 + $0x8] sm:$0xf]
      %v241 = vld [vmem:[%s198 + $0xc] sm:$0xf]
      %v242 = vld [vmem:[%s198 + $0x10] sm:$0xf]
      %v243 = vld [vmem:[%s198 + $0x14] sm:$0xf]
      %v244 = vld [vmem:[%s198 + $0x18] sm:$0xf]
      %v245 = vld [vmem:[%s198 + $0x1c] sm:$0xf]
      %v246 = vld [vmem:[%s207] sm:$0xf]
      %v247 = vld [vmem:[%s207 + $0x4] sm:$0xf]
      %v248 = vld [vmem:[%s207 + $0x8] sm:$0xf]
      %v249 = vld [vmem:[%s207 + $0xc] sm:$0xf]
      %v250 = vld [vmem:[%s207 + $0x10] sm:$0xf]
      %v251 = vld [vmem:[%s207 + $0x14] sm:$0xf]
      %v252 = vld [vmem:[%s207 + $0x18] sm:$0xf]
      %v253 = vld [vmem:[%s207 + $0x1c] sm:$0xf]
      %v254 = vld [vmem:[%s207 + $0x20] sm:$0xf]
      %v255 = vld [vmem:[%s207 + $0x24] sm:$0xf]
      %v256 = vld [vmem:[%s207 + $0x28] sm:$0xf]
      %v257 = vld [vmem:[%s207 + $0x2c] sm:$0xf]
      %v258 = vld [vmem:[%s207 + $0x30] sm:$0xf]
      %v259 = vld [vmem:[%s207 + $0x34] sm:$0xf]
      %v260 = vld [vmem:[%s207 + $0x38] sm:$0xf]
      %v261 = vld [vmem:[%s207 + $0x3c] sm:$0xf]
      %v270 = vunpack.c.l.b16 %v238
      %v271 = vunpack.c.l.b16 %v239
      %v272 = vunpack.c.l.b16 %v240
      %v273 = vunpack.c.l.b16 %v241
      %v274 = vunpack.c.l.b16 %v242
      %v275 = vunpack.c.l.b16 %v243
      %v276 = vunpack.c.l.b16 %v244
      %v277 = vunpack.c.l.b16 %v245
      %v278 = vpack.c.b16 %v271, %v270
      %v279 = vpack.c.b16 %v273, %v272
      %v280 = vpack.c.b16 %v275, %v274
      %v281 = vpack.c.b16 %v277, %v276
      %v302 = vunpack.c.l.b16 %v246
      %v303 = vunpack.c.l.b16 %v247
      %v304 = vunpack.c.l.b16 %v248
      %v305 = vunpack.c.l.b16 %v249
      %v306 = vunpack.c.l.b16 %v250
      %v307 = vunpack.c.l.b16 %v251
      %v308 = vunpack.c.l.b16 %v252
      %v309 = vunpack.c.l.b16 %v253
      %v310 = vunpack.c.l.b16 %v254
      %v311 = vunpack.c.l.b16 %v255
      %v312 = vunpack.c.l.b16 %v256
      %v313 = vunpack.c.l.b16 %v257
      %v314 = vunpack.c.l.b16 %v258
      %v315 = vunpack.c.l.b16 %v259
      %v316 = vunpack.c.l.b16 %v260
      %v317 = vunpack.c.l.b16 %v261
      %v318 = vpack.c.b16 %v303, %v302
      %v319 = vpack.c.b16 %v305, %v304
      %v320 = vpack.c.b16 %v307, %v306
      %v321 = vpack.c.b16 %v309, %v308
      %v322 = vpack.c.b16 %v311, %v310
      %v323 = vpack.c.b16 %v313, %v312
      %v324 = vpack.c.b16 %v315, %v314
      %v325 = vpack.c.b16 %v317, %v316
      %334 = vmatpush.bf16.msra.mxu0 %v325
      %335 = vmatpush.bf16.msra.mxu0 %v324
      %336 = vmatpush.bf16.msra.mxu0 %v323
      %337 = vmatpush.bf16.msra.mxu0 %v322
      %338 = vmatpush.bf16.msra.mxu0 %v321
      %339 = vmatpush.bf16.msra.mxu0 %v320
      %340 = vmatpush.bf16.msra.mxu0 %v319
      %341 = vmatpush.bf16.msra.mxu0 %v318
      %342 = vmatmul.bf16.gmra.mxu0 %v278
      %v343 = vpop.f32.mrf.mxu0
      %v344 = vadd.f32 0.0, %v343
      %v345 = vpop.f32.mrf.mxu0
      %v346 = vadd.f32 0.0, %v345
      %347 = vmatmul.bf16.gmra.mxu0 %v279
      %v348 = vpop.f32.mrf.mxu0
      %v349 = vadd.f32 0.0, %v348
      %v350 = vpop.f32.mrf.mxu0
      %v351 = vadd.f32 0.0, %v350
      %352 = vmatmul.bf16.gmra.mxu0 %v280
      %v353 = vpop.f32.mrf.mxu0
      %v354 = vadd.f32 0.0, %v353
      %v355 = vpop.f32.mrf.mxu0
      %v356 = vadd.f32 0.0, %v355
      %357 = vmatmul.bf16.gmra.mxu0 %v281
      %v358 = vpop.f32.mrf.mxu0
      %v359 = vadd.f32 0.0, %v358
      %v360 = vpop.f32.mrf.mxu0
      %v361 = vadd.f32 0.0, %v360
      %362 = vdwg.mxu0
      %v363 = vadd.f32 %v230, %v344
      %v364 = vadd.f32 %v231, %v346
      %v365 = vadd.f32 %v232, %v349
      %v366 = vadd.f32 %v233, %v351
      %v367 = vadd.f32 %v234, %v354
      %v368 = vadd.f32 %v235, %v356
      %v369 = vadd.f32 %v236, %v359
      %v370 = vadd.f32 %v237, %v361
      %371 = vst [vmem:[#allocation2] sm:$0xff] %v363
      %372 = vst [vmem:[#allocation2 + $0x8] sm:$0xff] %v364
      %373 = vst [vmem:[#allocation2 + $0x10] sm:$0xff] %v365
      %374 = vst [vmem:[#allocation2 + $0x18] sm:$0xff] %v366
      %375 = vst [vmem:[#allocation2 + $0x20] sm:$0xff] %v367
      %376 = vst [vmem:[#allocation2 + $0x28] sm:$0xff] %v368
      %377 = vst [vmem:[#allocation2 + $0x30] sm:$0xff] %v369
      %378 = vst [vmem:[#allocation2 + $0x38] sm:$0xff] %v370
      // Predicated region
      $region33: #{basic_block_forward.6} parent=27 // pred_check
        %p379 = pneg %p218
      $region34: #{basic_block_forward.6} parent=27 // pred_check_branch
        %381 = sbr.rel (%p379) target = $region36
      $region35: #{basic_block_forward.6} parent=27 // pred_region
        %v382 = vld [vmem:[#allocation2] sm:$0xff]
        %v383 = vld [vmem:[#allocation2 + $0x8] sm:$0xff]
        %v384 = vld [vmem:[#allocation2 + $0x10] sm:$0xff]
        %v385 = vld [vmem:[#allocation2 + $0x18] sm:$0xff]
        %v386 = vld [vmem:[#allocation2 + $0x20] sm:$0xff]
        %v387 = vld [vmem:[#allocation2 + $0x28] sm:$0xff]
        %v388 = vld [vmem:[#allocation2 + $0x30] sm:$0xff]
        %v389 = vld [vmem:[#allocation2 + $0x38] sm:$0xff]
        %390 = vst [vmem:[%s216] sm:$0xff] %v382
        %391 = vst [vmem:[%s216 + $0x8] sm:$0xff] %v383
        %392 = vst [vmem:[%s216 + $0x10] sm:$0xff] %v384
        %393 = vst [vmem:[%s216 + $0x18] sm:$0xff] %v385
        %394 = vst [vmem:[%s216 + $0x20] sm:$0xff] %v386
        %395 = vst [vmem:[%s216 + $0x28] sm:$0xff] %v387
        %396 = vst [vmem:[%s216 + $0x30] sm:$0xff] %v388
        %397 = vst [vmem:[%s216 + $0x38] sm:$0xff] %v389
      $region36: #{basic_block_forward.6} parent=27 // pred_fallthru
        _
      %s398 = smul.u32 8, %s18
      %p399 = scmp.lt.s32.totalorder %s398, 15
      %s400 = scalar_select %p399, %s398, 15
      %p401 = scmp.lt.s32.totalorder %s19, 0
      %s402 = scalar_select %p401, %s19, 0
      %s403 = sadd.s32 %s402, %s400
      %s404 = smul.addr %s403, 8
      %s405 = scalar_lea.vmem %s2, %s404
      // Predicated region
      $region37: #{basic_block_forward.6} parent=27 // pred_check
        %p406 = pneg %p108
      $region38: #{basic_block_forward.6} parent=27 // pred_check_branch
        %408 = sbr.rel (%p406) target = $region40
      $region39: #{basic_block_forward.6} parent=27 // pred_region
        %s409 = smul.u32 8, %s18
      $region40: #{basic_block_forward.6} parent=27 // pred_fallthru
        _
    $region28: #{basic_block_forward.6} parent=5 // pred_fallthru
      _
    %p410 = scmp.le.s32.totalorder 2, %s8
    // Predicated region
    $region41: #{basic_block_forward.6} parent=5 // pred_check
      %p411 = pneg %p410
    $region42: #{basic_block_forward.6} parent=5 // pred_check_branch
      %413 = sbr.rel (%p411) target = $region44
    $region43: #{basic_block_forward.6} parent=5 // pred_region
      %s414 = ssub.s32 %s8, 2
      // Predicated region
      $region45: #{basic_block_forward.6} parent=43 // pred_check
        %p415 = pneg %p114
      $region46: #{basic_block_forward.6} parent=43 // pred_check_branch
        %417 = sbr.rel (%p415) target = $region48
      $region47: #{basic_block_forward.6} parent=43 // pred_region
        %s418 = smul.u32 8, %s21
        %p419 = scmp.lt.s32.totalorder %s418, 15
        %s420 = scalar_select %p419, %s418, 15
        %p421 = scmp.lt.s32.totalorder %s22, 0
        %s422 = scalar_select %p421, %s22, 0
        %s423 = sadd.s32 %s422, %s420
        %s424 = smul.addr %s423, 8
        %s425 = scalar_lea.vmem %s2, %s424
      $region48: #{basic_block_forward.6} parent=43 // pred_fallthru
        _
    $region44: #{basic_block_forward.6} parent=5 // pred_fallthru
      _
  $region6: #{basic_block_forward.6} parent=0 // loop_footer
    %s12 = sadd.s32 1, %s8
  $region7: #{basic_block_forward.6} parent=0 // loop_footer_branch
    %7 = sbr.rel target = $region3
  $region8: #{basic_block_forward.6} parent=0 // loop_exit
    _

// kernel: basic_block_forward.5
$region0: #{basic_block_forward.5}
  #allocation0 [shape = 'u32[]', space=smem, size = 0x4, offset = 0x4, fixed_abs, tag = 'smem constant byte address 0x4 - core index']
  #allocation1 [shape = 'u32[72,128]{1,0:T(1,128)}', space=vmem, size = 0x9000, scoped, tag = 'internal scratch']
  #allocation2 [shape = 'f32[64,128]{1,0:T(8,128)}', space=vmem, size = 0x8000, scoped, tag = 'scratch operand']
  %s0 = inlined_call_operand.vmem [shape: bf16[128,1152], index: 0, kind: input, shape index: {}]
  %s1 = inlined_call_operand.vmem [shape: bf16[1152,128], index: 1, kind: input, shape index: {}]
  %s2 = inlined_call_operand.vmem [shape: f32[1,128], index: 2, kind: input, shape index: {}]
  %s3 = inlined_call_operand.vmem [shape: bf16[128,128], index: 3, kind: output, shape index: {}]
  %s4 = sld [smem:[#allocation0]]
  $region79: #{basic_block_forward.5} parent=0
    _
  %s6 = ssub.s32 1, %s4
  %s7 = scalar_select 0, %s6, %s4
  $region1: #{basic_block_forward.5} parent=0
    #allocation3 [shape = 'u8[98304]{0}', space=vmem, size = 0x18000, scoped, tag = 'input window, operand 0']
    loop: start=0, step=1, limit=8
    $region2: #{basic_block_forward.5} parent=1 // loop_pre_header
      _
    $region3: #{basic_block_forward.5} parent=1 // loop_header
      %s9 = sphi 0, %s13
      %p10 = scmp.ge.s32.totalorder %s9, 8
      %s16 = sphi 0, %s35
      %s17 = sphi 0, %s31
      %s18 = sphi 0, %s27
      %s19 = sphi 0, %s16
      %s20 = sphi 0, %s17
      %s21 = sphi 0, %s18
      %s22 = sphi 0, %s19
      %s23 = sphi 0, %s20
      %s24 = sphi 0, %s21
      %s40 = sphi 0, %s42
      %s43 = sphi 0, %s40
      %s44 = sphi 0, %s43
      %s60 = sphi 0, %s44
      %s68 = sphi 0, %s70
      %s71 = sphi 0, %s68
      %s72 = sphi 0, %s71
      %s88 = sphi 0, %s72
      %s94 = sphi 0, %s96
      %s97 = sphi 0, %s94
      %s98 = sphi 0, %s97
      %s114 = sphi 0, %s98
      %s122 = sphi 0, %s124
      %s125 = sphi 0, %s122
      %s126 = sphi 0, %s125
      %s142 = sphi 0, %s126
    $region4: #{basic_block_forward.5} parent=1 // loop_header_branch
      %12 = sbr.rel (%p10) target = $region8
    $region5: #{basic_block_forward.5} parent=1 // loop_body
      %s14 = ssub.s32 %s9, 1
      %s15 = ssub.s32 %s9, 2
      %s25 = sadd.s32 1, %s18
      %p26 = scmp.ge.s32.totalorder %s25, 3
      %s27 = scalar_select %p26, 0, %s25
      %s28 = sadd.s32 1, %s17
      %s29 = scalar_select %p26, %s28, %s17
      %p30 = scmp.ge.s32.totalorder %s29, 1
      %s31 = scalar_select %p30, 0, %s29
      %s32 = sadd.s32 1, %s16
      %s33 = scalar_select %p30, %s32, %s16
      %p34 = scmp.ge.s32.totalorder %s33, 2
      %s35 = scalar_select %p34, 0, %s33
      %s36 = ssub.s32 %s16, %s35
      %s37 = ssub.s32 %s18, %s27
      %s38 = sor.u32 %s36, %s37
      %p39 = scmp.eq.s32.totalorder %s38, 0
      %s41 = sadd.s32 %s40, 1
      %s42 = scalar_select %p39, %s40, %s41
      %p45 = pneg %p39
      %p46 = scmp.eq.s32.totalorder %s9, 5
      %p47 = por %p45, %p46
      %p48 = scmp.ne.s32.totalorder %s40, %s43
      %p49 = scmp.eq.s32.totalorder %s9, 0
      %p50 = por %p48, %p49
      %p51 = scmp.ne.s32.totalorder %s40, %s43
      %p52 = scmp.eq.s32.totalorder %s14, 5
      %p53 = por %p51, %p52
      %p54 = scmp.ne.s32.totalorder %s43, %s44
      %p55 = scmp.eq.s32.totalorder %s14, 0
      %p56 = por %p54, %p55
      %p57 = scmp.ne.s32.totalorder %s43, %s44
      %p58 = scmp.eq.s32.totalorder %s15, 5
      %p59 = por %p57, %p58
      %p61 = scmp.ne.s32.totalorder %s44, %s60
      %p62 = scmp.eq.s32.totalorder %s15, 0
      %p63 = por %p61, %p62
      %s64 = ssub.s32 %s18, %s27
      %s65 = ssub.s32 %s17, %s31
      %s66 = sor.u32 %s64, %s65
      %p67 = scmp.eq.s32.totalorder %s66, 0
      %s69 = sadd.s32 %s68, 1
      %s70 = scalar_select %p67, %s68, %s69
      %p73 = pneg %p67
      %p74 = scmp.eq.s32.totalorder %s9, 5
      %p75 = por %p73, %p74
      %p76 = scmp.ne.s32.totalorder %s68, %s71
      %p77 = scmp.eq.s32.totalorder %s9, 0
      %p78 = por %p76, %p77
      %p79 = scmp.ne.s32.totalorder %s68, %s71
      %p80 = scmp.eq.s32.totalorder %s14, 5
      %p81 = por %p79, %p80
      %p82 = scmp.ne.s32.totalorder %s71, %s72
      %p83 = scmp.eq.s32.totalorder %s14, 0
      %p84 = por %p82, %p83
      %p85 = scmp.ne.s32.totalorder %s71, %s72
      %p86 = scmp.eq.s32.totalorder %s15, 5
      %p87 = por %p85, %p86
      %p89 = scmp.ne.s32.totalorder %s72, %s88
      %p90 = scmp.eq.s32.totalorder %s15, 0
      %p91 = por %p89, %p90
      %s92 = ssub.s32 %s17, %s31
      %p93 = scmp.eq.s32.totalorder %s92, 0
      %s95 = sadd.s32 %s94, 1
      %s96 = scalar_select %p93, %s94, %s95
      %p99 = pneg %p93
      %p100 = scmp.eq.s32.totalorder %s9, 5
      %p101 = por %p99, %p100
      %p102 = scmp.ne.s32.totalorder %s94, %s97
      %p103 = scmp.eq.s32.totalorder %s9, 0
      %p104 = por %p102, %p103
      %p105 = scmp.ne.s32.totalorder %s94, %s97
      %p106 = scmp.eq.s32.totalorder %s14, 5
      %p107 = por %p105, %p106
      %p108 = scmp.ne.s32.totalorder %s97, %s98
      %p109 = scmp.eq.s32.totalorder %s14, 0
      %p110 = por %p108, %p109
      %p111 = scmp.ne.s32.totalorder %s97, %s98
      %p112 = scmp.eq.s32.totalorder %s15, 5
      %p113 = por %p111, %p112
      %p115 = scmp.ne.s32.totalorder %s98, %s114
      %p116 = scmp.eq.s32.totalorder %s15, 0
      %p117 = por %p115, %p116
      %s118 = ssub.s32 %s16, %s35
      %s119 = ssub.s32 %s17, %s31
      %s120 = sor.u32 %s118, %s119
      %p121 = scmp.eq.s32.totalorder %s120, 0
      %s123 = sadd.s32 %s122, 1
      %s124 = scalar_select %p121, %s122, %s123
      %p127 = pneg %p121
      %p128 = scmp.eq.s32.totalorder %s9, 5
      %p129 = por %p127, %p128
      %p130 = scmp.ne.s32.totalorder %s122, %s125
      %p131 = scmp.eq.s32.totalorder %s9, 0
      %p132 = por %p130, %p131
      %p133 = scmp.ne.s32.totalorder %s122, %s125
      %p134 = scmp.eq.s32.totalorder %s14, 5
      %p135 = por %p133, %p134
      %p136 = scmp.ne.s32.totalorder %s125, %s126
      %p137 = scmp.eq.s32.totalorder %s14, 0
      %p138 = por %p136, %p137
      %p139 = scmp.ne.s32.totalorder %s125, %s126
      %p140 = scmp.eq.s32.totalorder %s15, 5
      %p141 = por %p139, %p140
      %p143 = scmp.ne.s32.totalorder %s126, %s142
      %p144 = scmp.eq.s32.totalorder %s15, 0
      %p145 = por %p143, %p144
      %p146 = scmp.le.s32.totalorder 1, %s9
      %p147 = scmp.lt.s32.totalorder %s9, 7
      %p148 = pnand %p146, %p147
      %p149 = pneg %p148
      // Predicated region
      $region9: #{basic_block_forward.5} parent=5 // pred_check
        _
      $region10: #{basic_block_forward.5} parent=5 // pred_check_branch
        %151 = sbr.rel (%p148) target = $region12
      $region11: #{basic_block_forward.5} parent=5 // pred_region
        %s152 = ssub.s32 %s9, 1
        // Predicated region
        $region13: #{basic_block_forward.5} parent=11 // pred_check
          %p153 = pneg %p110
        $region14: #{basic_block_forward.5} parent=11 // pred_check_branch
          %155 = sbr.rel (%p153) target = $region16
        $region15: #{basic_block_forward.5} parent=11 // pred_region
          %p156 = scmp.lt.s32.totalorder %s20, 0
          %s157 = scalar_select %p156, %s20, 0
          %s158 = scalar_lea.vmem %s2, %s157
        $region16: #{basic_block_forward.5} parent=11 // pred_fallthru
          _
      $region12: #{basic_block_forward.5} parent=5 // pred_fallthru
        _
      %p159 = scmp.lt.s32.totalorder %s9, 6
      // Predicated region
      $region17: #{basic_block_forward.5} parent=5 // pred_check
        %p160 = pneg %p159
      $region18: #{basic_block_forward.5} parent=5 // pred_check_branch
        %162 = sbr.rel (%p160) target = $region20
      $region19: #{basic_block_forward.5} parent=5 // pred_region
        // Predicated region
        $region21: #{basic_block_forward.5} parent=19 // pred_check
          %p163 = pneg %p50
        $region22: #{basic_block_forward.5} parent=19 // pred_check_branch
          %165 = sbr.rel (%p163) target = $region24
        $region23: #{basic_block_forward.5} parent=19 // pred_region
          %s166 = sand.u32 %s40, 1
          %s167 = sand.u32 %s40, 1
          %s168 = smul.addr %s167, 96
          %s169 = scalar_lea.vmem [#allocation3], %s168
          %s170 = smul.u32 8, %s16
          %s171 = smul.u32 3, %s18
          %s172 = smul.addr %s170, 9
          %s173 = sadd.s32 %s171, %s172
          %s174 = smul.addr %s173, 4
          %s175 = scalar_lea.vmem %s0, %s174
          // Predicated region
          $region25: #{basic_block_forward.5} parent=23 // pred_check
            _
          $region26: #{basic_block_forward.5} parent=23 // pred_check_branch
            %177 = sbr.rel (0) target = $region28
          $region27: #{basic_block_forward.5} parent=23 // pred_region
            // Predicated region
            $region29: #{basic_block_forward.5} parent=27 // pred_check
              _
            $region30: #{basic_block_forward.5} parent=27 // pred_check_branch
              %179 = sbr.rel (0) target = $region32
            $region31: #{basic_block_forward.5} parent=27 // pred_region
              %s180 = scalar_lea.vmem %s175, 8
              %s181 = scalar_lea.vmem %s169, 8 [#allocation3]
              loop: start=0, step=1, limit=1
              $region33: #{basic_block_forward.5} parent=31 // loop_pre_header
                _
              $region34: #{basic_block_forward.5} parent=31 // loop_header
                %s183 = sphi 0, %s187
                %p184 = scmp.ge.s32.totalorder %s183, 1
                %s188 = sphi %s175, %s175
                %s189 = sphi %s169, %s169
              $region35: #{basic_block_forward.5} parent=31 // loop_header_branch
                %186 = sbr.rel (%p184) target = $region39
              $region36: #{basic_block_forward.5} parent=31 // loop_body
                %v190 = vld [vmem:[%s188] sm:$0xff]
                %191 = vst [vmem:[%s189] sm:$0xff] %v190
                %v192 = vld [vmem:[%s188 + $0x24] sm:$0xff]
                %193 = vst [vmem:[%s189 + $0xc] sm:$0xff] %v192
                %v194 = vld [vmem:[%s188 + $0x48] sm:$0xff]
                %195 = vst [vmem:[%s189 + $0x18] sm:$0xff] %v194
                %v196 = vld [vmem:[%s188 + $0x6c] sm:$0xff]
                %197 = vst [vmem:[%s189 + $0x24] sm:$0xff] %v196
                %v198 = vld [vmem:[%s188 + $0x90] sm:$0xff]
                %199 = vst [vmem:[%s189 + $0x30] sm:$0xff] %v198
                %v200 = vld [vmem:[%s188 + $0xb4] sm:$0xff]
                %201 = vst [vmem:[%s189 + $0x3c] sm:$0xff] %v200
                %v202 = vld [vmem:[%s188 + $0xd8] sm:$0xff]
                %203 = vst [vmem:[%s189 + $0x48] sm:$0xff] %v202
                %v204 = vld [vmem:[%s188 + $0xfc] sm:$0xff]
                %205 = vst [vmem:[%s189 + $0x54] sm:$0xff] %v204
              $region37: #{basic_block_forward.5} parent=31 // loop_footer
                %s187 = sadd.s32 1, %s183
              $region38: #{basic_block_forward.5} parent=31 // loop_footer_branch
                %182 = sbr.rel target = $region34
              $region39: #{basic_block_forward.5} parent=31 // loop_exit
                _
              %s207 = ssub.s32 16, 1
              loop: start=0, step=1, limit=1
              $region40: #{basic_block_forward.5} parent=31 // loop_pre_header
                _
              $region41: #{basic_block_forward.5} parent=31 // loop_header
                %s209 = sphi 0, %s213
                %p210 = scmp.ge.s32.totalorder %s209, 1
                %s214 = sphi %s180, %s180
                %s215 = sphi %s181, %s181
              $region42: #{basic_block_forward.5} parent=31 // loop_header_branch
                %212 = sbr.rel (%p210) target = $region46
              $region43: #{basic_block_forward.5} parent=31 // loop_body
                %v216 = vld [vmem:[%s214] sm:%s207]
                %217 = vst [vmem:[%s215] sm:%s207] %v216
                %v218 = vld [vmem:[%s214 + $0x24] sm:%s207]
                %219 = vst [vmem:[%s215 + $0xc] sm:%s207] %v218
                %v220 = vld [vmem:[%s214 + $0x48] sm:%s207]
                %221 = vst [vmem:[%s215 + $0x18] sm:%s207] %v220
                %v222 = vld [vmem:[%s214 + $0x6c] sm:%s207]
                %223 = vst [vmem:[%s215 + $0x24] sm:%s207] %v222
                %v224 = vld [vmem:[%s214 + $0x90] sm:%s207]
                %225 = vst [vmem:[%s215 + $0x30] sm:%s207] %v224
                %v226 = vld [vmem:[%s214 + $0xb4] sm:%s207]
                %227 = vst [vmem:[%s215 + $0x3c] sm:%s207] %v226
                %v228 = vld [vmem:[%s214 + $0xd8] sm:%s207]
                %229 = vst [vmem:[%s215 + $0x48] sm:%s207] %v228
                %v230 = vld [vmem:[%s214 + $0xfc] sm:%s207]
                %231 = vst [vmem:[%s215 + $0x54] sm:%s207] %v230
              $region44: #{basic_block_forward.5} parent=31 // loop_footer
                %s213 = sadd.s32 1, %s209
              $region45: #{basic_block_forward.5} parent=31 // loop_footer_branch
                %208 = sbr.rel target = $region41
              $region46: #{basic_block_forward.5} parent=31 // loop_exit
                _
            $region32: #{basic_block_forward.5} parent=27 // pred_fallthru
              _
          $region28: #{basic_block_forward.5} parent=23 // pred_fallthru
            _
          %232 = vnop
        $region24: #{basic_block_forward.5} parent=19 // pred_fallthru
          _
        // Predicated region
        $region47: #{basic_block_forward.5} parent=19 // pred_check
          %p233 = pneg %p78
        $region48: #{basic_block_forward.5} parent=19 // pred_check_branch
          %235 = sbr.rel (%p233) target = $region50
        $region49: #{basic_block_forward.5} parent=19 // pred_region
          %s236 = smul.u32 48, %s18
          %p237 = scmp.lt.s32.totalorder %s236, 143
          %s238 = scalar_select %p237, %s236, 143
          %p239 = scmp.lt.s32.totalorder %s17, 0
          %s240 = scalar_select %p239, %s17, 0
          %s241 = sadd.s32 %s240, %s238
          %s242 = smul.addr %s241, 4
          %s243 = scalar_lea.vmem %s1, %s242
          %s244 = smul.u32 48, %s18
        $region50: #{basic_block_forward.5} parent=19 // pred_fallthru
          _
      $region20: #{basic_block_forward.5} parent=5 // pred_fallthru
        _
      %p245 = scmp.le.s32.totalorder 1, %s9
      %p246 = scmp.lt.s32.totalorder %s9, 7
      %p247 = pnand %p245, %p246
      %p248 = pneg %p247
      // Predicated region
      $region51: #{basic_block_forward.5} parent=5 // pred_check
        _
      $region52: #{basic_block_forward.5} parent=5 // pred_check_branch
        %250 = sbr.rel (%p247) target = $region54
      $region53: #{basic_block_forward.5} parent=5 // pred_region
        %s251 = ssub.s32 %s9, 1
        %s252 = sand.u32 %s43, 1
        %s253 = sand.u32 %s43, 1
        %s254 = smul.addr %s253, 96
        %s255 = scalar_lea.vmem [#allocation3], %s254
        // Predicated region
        $region55: #{basic_block_forward.5} parent=53 // pred_check
          %p256 = pneg %p56
        $region56: #{basic_block_forward.5} parent=53 // pred_check_branch
          %258 = sbr.rel (%p256) target = $region58
        $region57: #{basic_block_forward.5} parent=53 // pred_region
          _
        $region58: #{basic_block_forward.5} parent=53 // pred_fallthru
          _
        %s259 = sand.u32 %s43, 1
        %s260 = sand.u32 %s43, 1
        %s261 = smul.addr %s260, 96
        %s262 = scalar_lea.vmem [#allocation3], %s261
        %p263 = pneg %p56
        %p264 = pneg %p53
        %s265 = smul.u32 48, %s21
        %p266 = scmp.lt.s32.totalorder %s265, 143
        %s267 = scalar_select %p266, %s265, 143
        %p268 = scmp.lt.s32.totalorder %s20, 0
        %s269 = scalar_select %p268, %s20, 0
        %s270 = sadd.s32 %s269, %s267
        %s271 = smul.addr %s270, 4
        %s272 = scalar_lea.vmem %s1, %s271
        %p273 = pneg %p84
        %p274 = pneg %p81
        %p275 = scmp.lt.s32.totalorder %s20, 0
        %s276 = scalar_select %p275, %s20, 0
        %s277 = scalar_lea.vmem %s2, %s276
        %p278 = pneg %p110
        %p279 = pneg %p107
        %p280 = pneg %p138
        %p281 = pneg %p135
        %s282 = smul.u32 8, %s19
        %p283 = scmp.lt.s32.totalorder %s282, 15
        %s284 = scalar_select %p283, %s282, 15
        %p285 = scmp.lt.s32.totalorder %s20, 0
        %s286 = scalar_select %p285, %s20, 0
        %s287 = sadd.s32 %s286, %s284
        %s288 = smul.addr %s287, 4
        %s289 = scalar_lea.vmem %s3, %s288
        %s290 = smul.u32 8, %s19
        %s291 = smul.u32 3, %s21
        %s292 = smul.u32 48, %s21
        %p293 = scmp.lt.s32.totalorder %s292, 143
        %s294 = scalar_select %p293, %s292, 143
        %p295 = scmp.lt.s32.totalorder %s20, 0
        %s296 = scalar_select %p295, %s20, 0
        %s297 = sadd.s32 %s296, %s294
        %s298 = smul.addr %s297, 4
        %s299 = scalar_lea.vmem %s1, %s298
        %s300 = smul.u32 48, %s21
        %p301 = scmp.lt.s32.totalorder %s20, 0
        %s302 = scalar_select %p301, %s20, 0
        %s303 = scalar_lea.vmem %s2, %s302
        %s304 = smul.u32 8, %s19
        %p305 = scmp.lt.s32.totalorder %s304, 15
        %s306 = scalar_select %p305, %s304, 15
        %p307 = scmp.lt.s32.totalorder %s20, 0
        %s308 = scalar_select %p307, %s20, 0
        %s309 = sadd.s32 %s308, %s306
        %s310 = smul.addr %s309, 4
        %s311 = scalar_lea.vmem %s3, %s310
        %s312 = smul.u32 8, %s19
        %p313 = scmp.eq.s32.totalorder %s21, 0
        // Predicated region
        $region59: #{basic_block_forward.5} parent=53 // pred_check
          %p314 = pneg %p313
        $region60: #{basic_block_forward.5} parent=53 // pred_check_branch
          %316 = sbr.rel (%p314) target = $region62
        $region61: #{basic_block_forward.5} parent=53 // pred_region
          %317 = vst [vmem:[#allocation2] sm:$0xff] 0.0
          %318 = vst [vmem:[#allocation2 + $0x8] sm:$0xff] 0.0
          %319 = vst [vmem:[#allocation2 + $0x10] sm:$0xff] 0.0
          %320 = vst [vmem:[#allocation2 + $0x18] sm:$0xff] 0.0
          %321 = vst [vmem:[#allocation2 + $0x20] sm:$0xff] 0.0
          %322 = vst [vmem:[#allocation2 + $0x28] sm:$0xff] 0.0
          %323 = vst [vmem:[#allocation2 + $0x30] sm:$0xff] 0.0
          %324 = vst [vmem:[#allocation2 + $0x38] sm:$0xff] 0.0
        $region62: #{basic_block_forward.5} parent=53 // pred_fallthru
          _
        %v325 = vld [vmem:[#allocation2] sm:$0xff]
        %v326 = vld [vmem:[#allocation2 + $0x8] sm:$0xff]
        %v327 = vld [vmem:[#allocation2 + $0x10] sm:$0xff]
        %v328 = vld [vmem:[#allocation2 + $0x18] sm:$0xff]
        %v329 = vld [vmem:[#allocation2 + $0x20] sm:$0xff]
        %v330 = vld [vmem:[#allocation2 + $0x28] sm:$0xff]
        %v331 = vld [vmem:[#allocation2 + $0x30] sm:$0xff]
        %v332 = vld [vmem:[#allocation2 + $0x38] sm:$0xff]
        %v333 = vld [vmem:[%s255] sm:$0xff]
        %v334 = vld [vmem:[%s255 + $0x8] sm:$0xf]
        %v335 = vld [vmem:[%s255 + $0xc] sm:$0xff]
        %v336 = vld [vmem:[%s255 + $0x14] sm:$0xf]
        %v337 = vld [vmem:[%s255 + $0x18] sm:$0xff]
        %v338 = vld [vmem:[%s255 + $0x20] sm:$0xf]
        %v339 = vld [vmem:[%s255 + $0x24] sm:$0xff]
        %v340 = vld [vmem:[%s255 + $0x2c] sm:$0xf]
        %v341 = vld [vmem:[%s255 + $0x30] sm:$0xff]
        %v342 = vld [vmem:[%s255 + $0x38] sm:$0xf]
        %v343 = vld [vmem:[%s255 + $0x3c] sm:$0xff]
        %v344 = vld [vmem:[%s255 + $0x44] sm:$0xf]
        %v345 = vld [vmem:[%s255 + $0x48] sm:$0xff]
        %v346 = vld [vmem:[%s255 + $0x50] sm:$0xf]
        %v347 = vld [vmem:[%s255 + $0x54] sm:$0xff]
        %v348 = vld [vmem:[%s255 + $0x5c] sm:$0xf]
        %v349 = vld [vmem:[%s299] sm:$0xf]
        %v350 = vld [vmem:[%s299 + $0x4] sm:$0xf]
        %v351 = vld [vmem:[%s299 + $0x8] sm:$0xf]
        %v352 = vld [vmem:[%s299 + $0xc] sm:$0xf]
        %v353 = vld [vmem:[%s299 + $0x10] sm:$0xf]
        %v354 = vld [vmem:[%s299 + $0x14] sm:$0xf]
        %v355 = vld [vmem:[%s299 + $0x18] sm:$0xf]
        %v356 = vld [vmem:[%s299 + $0x1c] sm:$0xf]
        %v357 = vld [vmem:[%s299 + $0x20] sm:$0xf]
        %v358 = vld [vmem:[%s299 + $0x24] sm:$0xf]
        %v359 = vld [vmem:[%s299 + $0x28] sm:$0xf]
        %v360 = vld [vmem:[%s299 + $0x2c] sm:$0xf]
        %v361 = vld [vmem:[%s299 + $0x30] sm:$0xf]
        %v362 = vld [vmem:[%s299 + $0x34] sm:$0xf]
        %v363 = vld [vmem:[%s299 + $0x38] sm:$0xf]
        %v364 = vld [vmem:[%s299 + $0x3c] sm:$0xf]
        %v365 = vld [vmem:[%s299 + $0x40] sm:$0xf]
        %v366 = vld [vmem:[%s299 + $0x44] sm:$0xf]
        %v367 = vld [vmem:[%s299 + $0x48] sm:$0xf]
        %v368 = vld [vmem:[%s299 + $0x4c] sm:$0xf]
        %v369 = vld [vmem:[%s299 + $0x50] sm:$0xf]
        %v370 = vld [vmem:[%s299 + $0x54] sm:$0xf]
        %v371 = vld [vmem:[%s299 + $0x58] sm:$0xf]
        %v372 = vld [vmem:[%s299 + $0x5c] sm:$0xf]
        %v373 = vld [vmem:[%s299 + $0x60] sm:$0xf]
        %v374 = vld [vmem:[%s299 + $0x64] sm:$0xf]
        %v375 = vld [vmem:[%s299 + $0x68] sm:$0xf]
        %v376 = vld [vmem:[%s299 + $0x6c] sm:$0xf]
        %v377 = vld [vmem:[%s299 + $0x70] sm:$0xf]
        %v378 = vld [vmem:[%s299 + $0x74] sm:$0xf]
        %v379 = vld [vmem:[%s299 + $0x78] sm:$0xf]
        %v380 = vld [vmem:[%s299 + $0x7c] sm:$0xf]
        %v381 = vld [vmem:[%s299 + $0x80] sm:$0xf]
        %v382 = vld [vmem:[%s299 + $0x84] sm:$0xf]
        %v383 = vld [vmem:[%s299 + $0x88] sm:$0xf]
        %v384 = vld [vmem:[%s299 + $0x8c] sm:$0xf]
        %v385 = vld [vmem:[%s299 + $0x90] sm:$0xf]
        %v386 = vld [vmem:[%s299 + $0x94] sm:$0xf]
        %v387 = vld [vmem:[%s299 + $0x98] sm:$0xf]
        %v388 = vld [vmem:[%s299 + $0x9c] sm:$0xf]
        %v389 = vld [vmem:[%s299 + $0xa0] sm:$0xf]
        %v390 = vld [vmem:[%s299 + $0xa4] sm:$0xf]
        %v391 = vld [vmem:[%s299 + $0xa8] sm:$0xf]
        %v392 = vld [vmem:[%s299 + $0xac] sm:$0xf]
        %v393 = vld [vmem:[%s299 + $0xb0] sm:$0xf]
        %v394 = vld [vmem:[%s299 + $0xb4] sm:$0xf]
        %v395 = vld [vmem:[%s299 + $0xb8] sm:$0xf]
        %v396 = vld [vmem:[%s299 + $0xbc] sm:$0xf]
        %v413 = vunpack.c.l.b16 %v333
        %v414 = vunpack.c.h.b16 %v333
        %v415 = vunpack.c.l.b16 %v334
        %v416 = vunpack.c.l.b16 %v335
        %v417 = vunpack.c.h.b16 %v335
        %v418 = vunpack.c.l.b16 %v336
        %v419 = vunpack.c.l.b16 %v337
        %v420 = vunpack.c.h.b16 %v337
        %v421 = vunpack.c.l.b16 %v338
        %v422 = vunpack.c.l.b16 %v339
        %v423 = vunpack.c.h.b16 %v339
        %v424 = vunpack.c.l.b16 %v340
        %v425 = vunpack.c.l.b16 %v341
        %v426 = vunpack.c.h.b16 %v341
        %v427 = vunpack.c.l.b16 %v342
        %v428 = vunpack.c.l.b16 %v343
        %v429 = vunpack.c.h.b16 %v343
        %v430 = vunpack.c.l.b16 %v344
        %v431 = vunpack.c.l.b16 %v345
        %v432 = vunpack.c.h.b16 %v345
        %v433 = vunpack.c.l.b16 %v346
        %v434 = vunpack.c.l.b16 %v347
        %v435 = vunpack.c.h.b16 %v347
        %v436 = vunpack.c.l.b16 %v348
        %v437 = vpack.c.b16 %v416, %v413
        %v438 = vpack.c.b16 %v417, %v414
        %v439 = vpack.c.b16 %v418, %v415
        %v440 = vpack.c.b16 %v422, %v419
        %v441 = vpack.c.b16 %v423, %v420
        %v442 = vpack.c.b16 %v424, %v421
        %v443 = vpack.c.b16 %v428, %v425
        %v444 = vpack.c.b16 %v429, %v426
        %v445 = vpack.c.b16 %v430, %v427
        %v446 = vpack.c.b16 %v434, %v431
        %v447 = vpack.c.b16 %v435, %v432
        %v448 = vpack.c.b16 %v436, %v433
        %v509 = vunpack.c.l.b16 %v349
        %v510 = vunpack.c.l.b16 %v350
        %v511 = vunpack.c.l.b16 %v351
        %v512 = vunpack.c.l.b16 %v352
        %v513 = vunpack.c.l.b16 %v353
        %v514 = vunpack.c.l.b16 %v354
        %v515 = vunpack.c.l.b16 %v355
        %v516 = vunpack.c.l.b16 %v356
        %v517 = vunpack.c.l.b16 %v357
        %v518 = vunpack.c.l.b16 %v358
        %v519 = vunpack.c.l.b16 %v359
        %v520 = vunpack.c.l.b16 %v360
        %v521 = vunpack.c.l.b16 %v361
        %v522 = vunpack.c.l.b16 %v362
        %v523 = vunpack.c.l.b16 %v363
        %v524 = vunpack.c.l.b16 %v364
        %v525 = vunpack.c.l.b16 %v365
        %v526 = vunpack.c.l.b16 %v366
        %v527 = vunpack.c.l.b16 %v367
        %v528 = vunpack.c.l.b16 %v368
        %v529 = vunpack.c.l.b16 %v369
        %v530 = vunpack.c.l.b16 %v370
        %v531 = vunpack.c.l.b16 %v371
        %v532 = vunpack.c.l.b16 %v372
        %v533 = vunpack.c.l.b16 %v373
        %v534 = vunpack.c.l.b16 %v374
        %v535 = vunpack.c.l.b16 %v375
        %v536 = vunpack.c.l.b16 %v376
        %v537 = vunpack.c.l.b16 %v377
        %v538 = vunpack.c.l.b16 %v378
        %v539 = vunpack.c.l.b16 %v379
        %v540 = vunpack.c.l.b16 %v380
        %v541 = vunpack.c.l.b16 %v381
        %v542 = vunpack.c.l.b16 %v382
        %v543 = vunpack.c.l.b16 %v383
        %v544 = vunpack.c.l.b16 %v384
        %v545 = vunpack.c.l.b16 %v385
        %v546 = vunpack.c.l.b16 %v386
        %v547 = vunpack.c.l.b16 %v387
        %v548 = vunpack.c.l.b16 %v388
        %v549 = vunpack.c.l.b16 %v389
        %v550 = vunpack.c.l.b16 %v390
        %v551 = vunpack.c.l.b16 %v391
        %v552 = vunpack.c.l.b16 %v392
        %v553 = vunpack.c.l.b16 %v393
        %v554 = vunpack.c.l.b16 %v394
        %v555 = vunpack.c.l.b16 %v395
        %v556 = vunpack.c.l.b16 %v396
        %v557 = vpack.c.b16 %v510, %v509
        %v558 = vpack.c.b16 %v512, %v511
        %v559 = vpack.c.b16 %v514, %v513
        %v560 = vpack.c.b16 %v516, %v515
        %v561 = vpack.c.b16 %v518, %v517
        %v562 = vpack.c.b16 %v520, %v519
        %v563 = vpack.c.b16 %v522, %v521
        %v564 = vpack.c.b16 %v524, %v523
        %v565 = vpack.c.b16 %v526, %v525
        %v566 = vpack.c.b16 %v528, %v527
        %v567 = vpack.c.b16 %v530, %v529
        %v568 = vpack.c.b16 %v532, %v531
        %v569 = vpack.c.b16 %v534, %v533
        %v570 = vpack.c.b16 %v536, %v535
        %v571 = vpack.c.b16 %v538, %v537
        %v572 = vpack.c.b16 %v540, %v539
        %v573 = vpack.c.b16 %v542, %v541
        %v574 = vpack.c.b16 %v544, %v543
        %v575 = vpack.c.b16 %v546, %v545
        %v576 = vpack.c.b16 %v548, %v547
        %v577 = vpack.c.b16 %v550, %v549
        %v578 = vpack.c.b16 %v552, %v551
        %v579 = vpack.c.b16 %v554, %v553
        %v580 = vpack.c.b16 %v556, %v555
        %605 = vmatpush.bf16.msra.mxu0 %v564
        %606 = vmatpush.bf16.msra.mxu0 %v563
        %607 = vmatpush.bf16.msra.mxu0 %v562
        %608 = vmatpush.bf16.msra.mxu0 %v561
        %609 = vmatpush.bf16.msra.mxu0 %v560
        %610 = vmatpush.bf16.msra.mxu0 %v559
        %611 = vmatpush.bf16.msra.mxu0 %v558
        %612 = vmatpush.bf16.msra.mxu0 %v557
        %613 = vmatmul.bf16.gmra.mxu0 %v437
        %v614 = vpop.f32.mrf.mxu0
        %v615 = vadd.f32 0.0, %v614
        %v616 = vpop.f32.mrf.mxu0
        %v617 = vadd.f32 0.0, %v616
        %618 = vmatmul.bf16.gmra.mxu0 %v440
        %v619 = vpop.f32.mrf.mxu0
        %v620 = vadd.f32 0.0, %v619
        %v621 = vpop.f32.mrf.mxu0
        %v622 = vadd.f32 0.0, %v621
        %623 = vmatmul.bf16.gmra.mxu0 %v443
        %v624 = vpop.f32.mrf.mxu0
        %v625 = vadd.f32 0.0, %v624
        %v626 = vpop.f32.mrf.mxu0
        %v627 = vadd.f32 0.0, %v626
        %628 = vmatmul.bf16.gmra.mxu0 %v446
        %v629 = vpop.f32.mrf.mxu0
        %v630 = vadd.f32 0.0, %v629
        %v631 = vpop.f32.mrf.mxu0
        %v632 = vadd.f32 0.0, %v631
        %633 = vdwg.mxu0
        %634 = vmatpush.bf16.msra.mxu0 %v572
        %635 = vmatpush.bf16.msra.mxu0 %v571
        %636 = vmatpush.bf16.msra.mxu0 %v570
        %637 = vmatpush.bf16.msra.mxu0 %v569
        %638 = vmatpush.bf16.msra.mxu0 %v568
        %639 = vmatpush.bf16.msra.mxu0 %v567
        %640 = vmatpush.bf16.msra.mxu0 %v566
        %641 = vmatpush.bf16.msra.mxu0 %v565
        %642 = vmatmul.bf16.gmra.mxu0 %v438
        %v643 = vpop.f32.mrf.mxu0
        %v644 = vadd.f32 %v615, %v643
        %v645 = vpop.f32.mrf.mxu0
        %v646 = vadd.f32 %v617, %v645
        %647 = vmatmul.bf16.gmra.mxu0 %v441
        %v648 = vpop.f32.mrf.mxu0
        %v649 = vadd.f32 %v620, %v648
        %v650 = vpop.f32.mrf.mxu0
        %v651 = vadd.f32 %v622, %v650
        %652 = vmatmul.bf16.gmra.mxu0 %v444
        %v653 = vpop.f32.mrf.mxu0
        %v654 = vadd.f32 %v625, %v653
        %v655 = vpop.f32.mrf.mxu0
        %v656 = vadd.f32 %v627, %v655
        %657 = vmatmul.bf16.gmra.mxu0 %v447
        %v658 = vpop.f32.mrf.mxu0
        %v659 = vadd.f32 %v630, %v658
        %v660 = vpop.f32.mrf.mxu0
        %v661 = vadd.f32 %v632, %v660
        %662 = vdwg.mxu0
        %663 = vmatpush.bf16.msra.mxu0 %v580
        %664 = vmatpush.bf16.msra.mxu0 %v579
        %665 = vmatpush.bf16.msra.mxu0 %v578
        %666 = vmatpush.bf16.msra.mxu0 %v577
        %667 = vmatpush.bf16.msra.mxu0 %v576
        %668 = vmatpush.bf16.msra.mxu0 %v575
        %669 = vmatpush.bf16.msra.mxu0 %v574
        %670 = vmatpush.bf16.msra.mxu0 %v573
        %671 = vmatmul.bf16.gmra.mxu0 %v439
        %v672 = vpop.f32.mrf.mxu0
        %v673 = vadd.f32 %v644, %v672
        %v674 = vpop.f32.mrf.mxu0
        %v675 = vadd.f32 %v646, %v674
        %676 = vmatmul.bf16.gmra.mxu0 %v442
        %v677 = vpop.f32.mrf.mxu0
        %v678 = vadd.f32 %v649, %v677
        %v679 = vpop.f32.mrf.mxu0
        %v680 = vadd.f32 %v651, %v679
        %681 = vmatmul.bf16.gmra.mxu0 %v445
        %v682 = vpop.f32.mrf.mxu0
        %v683 = vadd.f32 %v654, %v682
        %v684 = vpop.f32.mrf.mxu0
        %v685 = vadd.f32 %v656, %v684
        %686 = vmatmul.bf16.gmra.mxu0 %v448
        %v687 = vpop.f32.mrf.mxu0
        %v688 = vadd.f32 %v659, %v687
        %v689 = vpop.f32.mrf.mxu0
        %v690 = vadd.f32 %v661, %v689
        %691 = vdwg.mxu0
        %v692 = vadd.f32 %v325, %v673
        %v693 = vadd.f32 %v326, %v675
        %v694 = vadd.f32 %v327, %v678
        %v695 = vadd.f32 %v328, %v680
        %v696 = vadd.f32 %v329, %v683
        %v697 = vadd.f32 %v330, %v685
        %v698 = vadd.f32 %v331, %v688
        %v699 = vadd.f32 %v332, %v690
        %700 = vst [vmem:[#allocation2] sm:$0xff] %v692
        %701 = vst [vmem:[#allocation2 + $0x8] sm:$0xff] %v693
        %702 = vst [vmem:[#allocation2 + $0x10] sm:$0xff] %v694
        %703 = vst [vmem:[#allocation2 + $0x18] sm:$0xff] %v695
        %704 = vst [vmem:[#allocation2 + $0x20] sm:$0xff] %v696
        %705 = vst [vmem:[#allocation2 + $0x28] sm:$0xff] %v697
        %706 = vst [vmem:[#allocation2 + $0x30] sm:$0xff] %v698
        %707 = vst [vmem:[#allocation2 + $0x38] sm:$0xff] %v699
        %p708 = scmp.eq.s32.totalorder %s21, 2
        // Predicated region
        $region63: #{basic_block_forward.5} parent=53 // pred_check
          %p709 = pneg %p708
        $region64: #{basic_block_forward.5} parent=53 // pred_check_branch
          %711 = sbr.rel (%p709) target = $region66
        $region65: #{basic_block_forward.5} parent=53 // pred_region
          %v712 = vld [vmem:[#allocation2] sm:$0xff]
          %v713 = vld [vmem:[#allocation2 + $0x8] sm:$0xff]
          %v714 = vld [vmem:[#allocation2 + $0x10] sm:$0xff]
          %v715 = vld [vmem:[#allocation2 + $0x18] sm:$0xff]
          %v716 = vld [vmem:[#allocation2 + $0x20] sm:$0xff]
          %v717 = vld [vmem:[#allocation2 + $0x28] sm:$0xff]
          %v718 = vld [vmem:[#allocation2 + $0x30] sm:$0xff]
          %v719 = vld [vmem:[#allocation2 + $0x38] sm:$0xff]
          %v720 = vld [vmem:[%s303] sm:$0x1]
          %v722 = vperm.slane %v720, 0
          %v724 = vadd.f32 %v712, %v722
          %v725 = vadd.f32 %v713, %v722
          %v726 = vadd.f32 %v714, %v722
          %v727 = vadd.f32 %v715, %v722
          %v728 = vadd.f32 %v716, %v722
          %v729 = vadd.f32 %v717, %v722
          %v730 = vadd.f32 %v718, %v722
          %v731 = vadd.f32 %v719, %v722
          %v732 = vmax.f32 %v724, 0.0
          %v733 = vmax.f32 %v725, 0.0
          %v734 = vmax.f32 %v726, 0.0
          %v735 = vmax.f32 %v727, 0.0
          %v736 = vmax.f32 %v728, 0.0
          %v737 = vmax.f32 %v729, 0.0
          %v738 = vmax.f32 %v730, 0.0
          %v739 = vmax.f32 %v731, 0.0
          %v740 = vpack.c.bf16 %v732, %v732
          %v741 = vpack.c.bf16 %v733, %v733
          %v742 = vpack.c.bf16 %v734, %v734
          %v743 = vpack.c.bf16 %v735, %v735
          %v744 = vpack.c.bf16 %v736, %v736
          %v745 = vpack.c.bf16 %v737, %v737
          %v746 = vpack.c.bf16 %v738, %v738
          %v747 = vpack.c.bf16 %v739, %v739
          %748 = vst [vmem:[%s311] sm:$0xf] %v740
          %749 = vst [vmem:[%s311 + $0x4] sm:$0xf] %v741
          %750 = vst [vmem:[%s311 + $0x8] sm:$0xf] %v742
          %751 = vst [vmem:[%s311 + $0xc] sm:$0xf] %v743
          %752 = vst [vmem:[%s311 + $0x10] sm:$0xf] %v744
          %753 = vst [vmem:[%s311 + $0x14] sm:$0xf] %v745
          %754 = vst [vmem:[%s311 + $0x18] sm:$0xf] %v746
          %755 = vst [vmem:[%s311 + $0x1c] sm:$0xf] %v747
        $region66: #{basic_block_forward.5} parent=53 // pred_fallthru
          _
        %s756 = smul.u32 8, %s19
        %p757 = scmp.lt.s32.totalorder %s756, 15
        %s758 = scalar_select %p757, %s756, 15
        %p759 = scmp.lt.s32.totalorder %s20, 0
        %s760 = scalar_select %p759, %s20, 0
        %s761 = sadd.s32 %s760, %s758
        %s762 = smul.addr %s761, 4
        %s763 = scalar_lea.vmem %s3, %s762
        // Predicated region
        $region67: #{basic_block_forward.5} parent=53 // pred_check
          %p764 = pneg %p135
        $region68: #{basic_block_forward.5} parent=53 // pred_check_branch
          %766 = sbr.rel (%p764) target = $region70
        $region69: #{basic_block_forward.5} parent=53 // pred_region
          %s767 = smul.u32 8, %s19
        $region70: #{basic_block_forward.5} parent=53 // pred_fallthru
          _
      $region54: #{basic_block_forward.5} parent=5 // pred_fallthru
        _
      %p768 = scmp.le.s32.totalorder 2, %s9
      // Predicated region
      $region71: #{basic_block_forward.5} parent=5 // pred_check
        %p769 = pneg %p768
      $region72: #{basic_block_forward.5} parent=5 // pred_check_branch
        %771 = sbr.rel (%p769) target = $region74
      $region73: #{basic_block_forward.5} parent=5 // pred_region
        %s772 = ssub.s32 %s9, 2
        // Predicated region
        $region75: #{basic_block_forward.5} parent=73 // pred_check
          %p773 = pneg %p141
        $region76: #{basic_block_forward.5} parent=73 // pred_check_branch
          %775 = sbr.rel (%p773) target = $region78
        $region77: #{basic_block_forward.5} parent=73 // pred_region
          %s776 = smul.u32 8, %s22
          %p777 = scmp.lt.s32.totalorder %s776, 15
          %s778 = scalar_select %p777, %s776, 15
          %p779 = scmp.lt.s32.totalorder %s23, 0
          %s780 = scalar_select %p779, %s23, 0
          %s781 = sadd.s32 %s780, %s778
          %s782 = smul.addr %s781, 4
          %s783 = scalar_lea.vmem %s3, %s782
        $region78: #{basic_block_forward.5} parent=73 // pred_fallthru
          _
      $region74: #{basic_block_forward.5} parent=5 // pred_fallthru
        _
    $region6: #{basic_block_forward.5} parent=1 // loop_footer
      %s13 = sadd.s32 1, %s9
    $region7: #{basic_block_forward.5} parent=1 // loop_footer_branch
      %8 = sbr.rel target = $region3
    $region8: #{basic_block_forward.5} parent=1 // loop_exit
      _

// kernel: basic_block_forward.4
$region0: #{basic_block_forward.4}
  #allocation0 [shape = 'u32[]', space=smem, size = 0x4, offset = 0x4, fixed_abs, tag = 'smem constant byte address 0x4 - core index']
  #allocation1 [shape = 'u32[72,128]{1,0:T(1,128)}', space=vmem, size = 0x9000, scoped, tag = 'internal scratch']
  %s0 = inlined_call_operand.vmem [shape: f32[2,16,16,128], index: 0, kind: input, shape index: {}]
  %s1 = inlined_call_operand.vmem [shape: f32[1,1,1,128], index: 1, kind: input, shape index: {}]
  %s2 = inlined_call_operand.vmem [shape: f32[1,1,1,128], index: 2, kind: input, shape index: {}]
  %s3 = inlined_call_operand.vmem [shape: bf16[2,19,18,128], index: 3, kind: output, shape index: {}]
  %s4 = sld [smem:[#allocation0]]
  $region45: #{basic_block_forward.4} parent=0
    _
  %s6 = ssub.s32 1, %s4
  %s7 = scalar_select 0, %s6, %s4
  loop: start=0, step=1, limit=4
  $region2: #{basic_block_forward.4} parent=0 // loop_pre_header
    _
  $region3: #{basic_block_forward.4} parent=0 // loop_header
    %s9 = sphi 0, %s13
    %p10 = scmp.ge.s32.totalorder %s9, 4
    %s19 = sphi 0, %s21
    %s22 = sphi 0, %s19
    %s23 = sphi 0, %s22
    %s39 = sphi 0, %s23
    %s43 = sphi 0, %s43
    %s45 = sphi 0, %s43
    %s46 = sphi 0, %s45
    %s60 = sphi 0, %s46
    %s64 = sphi 0, %s64
    %s66 = sphi 0, %s64
    %s67 = sphi 0, %s66
    %s81 = sphi 0, %s67
    %s87 = sphi 0, %s89
    %s90 = sphi 0, %s87
    %s91 = sphi 0, %s90
    %s107 = sphi 0, %s91
  $region4: #{basic_block_forward.4} parent=0 // loop_header_branch
    %12 = sbr.rel (%p10) target = $region8
  $region5: #{basic_block_forward.4} parent=0 // loop_body
    %s14 = ssub.s32 %s9, 1
    %s15 = ssub.s32 %s9, 2
    %s16 = sadd.s32 %s9, 1
    %s17 = ssub.s32 %s9, %s16
    %p18 = scmp.eq.s32.totalorder %s17, 0
    %s20 = sadd.s32 %s19, 1
    %s21 = scalar_select %p18, %s19, %s20
    %p24 = pneg %p18
    %p25 = scmp.eq.s32.totalorder %s9, 1
    %p26 = por %p24, %p25
    %p27 = scmp.ne.s32.totalorder %s19, %s22
    %p28 = scmp.eq.s32.totalorder %s9, 0
    %p29 = por %p27, %p28
    %p30 = scmp.ne.s32.totalorder %s19, %s22
    %p31 = scmp.eq.s32.totalorder %s14, 1
    %p32 = por %p30, %p31
    %p33 = scmp.ne.s32.totalorder %s22, %s23
    %p34 = scmp.eq.s32.totalorder %s14, 0
    %p35 = por %p33, %p34
    %p36 = scmp.ne.s32.totalorder %s22, %s23
    %p37 = scmp.eq.s32.totalorder %s15, 1
    %p38 = por %p36, %p37
    %p40 = scmp.ne.s32.totalorder %s23, %s39
    %p41 = scmp.eq.s32.totalorder %s15, 0
    %p42 = por %p40, %p41
    %s44 = sadd.s32 %s43, 1
    %p47 = scmp.eq.s32.totalorder %s9, 1
    %p48 = scmp.ne.s32.totalorder %s43, %s45
    %p49 = scmp.eq.s32.totalorder %s9, 0
    %p50 = por %p48, %p49
    %p51 = scmp.ne.s32.totalorder %s43, %s45
    %p52 = scmp.eq.s32.totalorder %s14, 1
    %p53 = por %p51, %p52
    %p54 = scmp.ne.s32.totalorder %s45, %s46
    %p55 = scmp.eq.s32.totalorder %s14, 0
    %p56 = por %p54, %p55
    %p57 = scmp.ne.s32.totalorder %s45, %s46
    %p58 = scmp.eq.s32.totalorder %s15, 1
    %p59 = por %p57, %p58
    %p61 = scmp.ne.s32.totalorder %s46, %s60
    %p62 = scmp.eq.s32.totalorder %s15, 0
    %p63 = por %p61, %p62
    %s65 = sadd.s32 %s64, 1
    %p68 = scmp.eq.s32.totalorder %s9, 1
    %p69 = scmp.ne.s32.totalorder %s64, %s66
    %p70 = scmp.eq.s32.totalorder %s9, 0
    %p71 = por %p69, %p70
    %p72 = scmp.ne.s32.totalorder %s64, %s66
    %p73 = scmp.eq.s32.totalorder %s14, 1
    %p74 = por %p72, %p73
    %p75 = scmp.ne.s32.totalorder %s66, %s67
    %p76 = scmp.eq.s32.totalorder %s14, 0
    %p77 = por %p75, %p76
    %p78 = scmp.ne.s32.totalorder %s66, %s67
    %p79 = scmp.eq.s32.totalorder %s15, 1
    %p80 = por %p78, %p79
    %p82 = scmp.ne.s32.totalorder %s67, %s81
    %p83 = scmp.eq.s32.totalorder %s15, 0
    %p84 = por %p82, %p83
    %s85 = ssub.s32 %s9, %s16
    %p86 = scmp.eq.s32.totalorder %s85, 0
    %s88 = sadd.s32 %s87, 1
    %s89 = scalar_select %p86, %s87, %s88
    %p92 = pneg %p86
    %p93 = scmp.eq.s32.totalorder %s9, 1
    %p94 = por %p92, %p93
    %p95 = scmp.ne.s32.totalorder %s87, %s90
    %p96 = scmp.eq.s32.totalorder %s9, 0
    %p97 = por %p95, %p96
    %p98 = scmp.ne.s32.totalorder %s87, %s90
    %p99 = scmp.eq.s32.totalorder %s14, 1
    %p100 = por %p98, %p99
    %p101 = scmp.ne.s32.totalorder %s90, %s91
    %p102 = scmp.eq.s32.totalorder %s14, 0
    %p103 = por %p101, %p102
    %p104 = scmp.ne.s32.totalorder %s90, %s91
    %p105 = scmp.eq.s32.totalorder %s15, 1
    %p106 = por %p104, %p105
    %p108 = scmp.ne.s32.totalorder %s91, %s107
    %p109 = scmp.eq.s32.totalorder %s15, 0
    %p110 = por %p108, %p109
    %p111 = scmp.le.s32.totalorder 1, %s9
    %p112 = scmp.lt.s32.totalorder %s9, 3
    %p113 = pnand %p111, %p112
    %p114 = pneg %p113
    // Predicated region
    $region9: #{basic_block_forward.4} parent=5 // pred_check
      _
    $region10: #{basic_block_forward.4} parent=5 // pred_check_branch
      %116 = sbr.rel (%p113) target = $region12
    $region11: #{basic_block_forward.4} parent=5 // pred_region
      %s117 = ssub.s32 %s9, 1
      // Predicated region
      $region13: #{basic_block_forward.4} parent=11 // pred_check
        %p118 = pneg %p56
      $region14: #{basic_block_forward.4} parent=11 // pred_check_branch
        %120 = sbr.rel (%p118) target = $region16
      $region15: #{basic_block_forward.4} parent=11 // pred_region
        _
      $region16: #{basic_block_forward.4} parent=11 // pred_fallthru
        _
      // Predicated region
      $region17: #{basic_block_forward.4} parent=11 // pred_check
        %p121 = pneg %p77
      $region18: #{basic_block_forward.4} parent=11 // pred_check_branch
        %123 = sbr.rel (%p121) target = $region20
      $region19: #{basic_block_forward.4} parent=11 // pred_region
        _
      $region20: #{basic_block_forward.4} parent=11 // pred_fallthru
        _
    $region12: #{basic_block_forward.4} parent=5 // pred_fallthru
      _
    %p124 = scmp.lt.s32.totalorder %s9, 2
    // Predicated region
    $region21: #{basic_block_forward.4} parent=5 // pred_check
      %p125 = pneg %p124
    $region22: #{basic_block_forward.4} parent=5 // pred_check_branch
      %127 = sbr.rel (%p125) target = $region24
    $region23: #{basic_block_forward.4} parent=5 // pred_region
      // Predicated region
      $region25: #{basic_block_forward.4} parent=23 // pred_check
        %p128 = pneg %p29
      $region26: #{basic_block_forward.4} parent=23 // pred_check_branch
        %130 = sbr.rel (%p128) target = $region28
      $region27: #{basic_block_forward.4} parent=23 // pred_region
        %p131 = scmp.lt.s32.totalorder %s9, 1
        %s132 = scalar_select %p131, %s9, 1
        %s133 = smul.addr %s132, 32
        %s134 = smul.addr %s133, 8
        %s135 = scalar_lea.vmem %s0, %s134
      $region28: #{basic_block_forward.4} parent=23 // pred_fallthru
        _
    $region24: #{basic_block_forward.4} parent=5 // pred_fallthru
      _
    %p136 = scmp.le.s32.totalorder 1, %s9
    %p137 = scmp.lt.s32.totalorder %s9, 3
    %p138 = pnand %p136, %p137
    %p139 = pneg %p138
    // Predicated region
    $region29: #{basic_block_forward.4} parent=5 // pred_check
      _
    $region30: #{basic_block_forward.4} parent=5 // pred_check_branch
      %141 = sbr.rel (%p138) target = $region32
    $region31: #{basic_block_forward.4} parent=5 // pred_region
      %s142 = ssub.s32 %s9, 1
      %p143 = scmp.lt.s32.totalorder %s14, 1
      %s144 = scalar_select %p143, %s14, 1
      %s145 = smul.addr %s144, 32
      %s146 = smul.addr %s145, 8
      %s147 = scalar_lea.vmem %s0, %s146
      %p148 = pneg %p35
      %p149 = pneg %p32
      %p150 = pneg %p56
      %p151 = pneg %p53
      %p152 = pneg %p77
      %p153 = pneg %p74
      %p154 = pneg %p103
      %p155 = pneg %p100
      %p156 = scmp.lt.s32.totalorder %s14, 1
      %s157 = scalar_select %p156, %s14, 1
      %s158 = smul.addr %s157, 57
      %s159 = smul.addr %s158, 4
      %s160 = scalar_lea.vmem %s3, %s159
      %p161 = scmp.lt.s32.totalorder %s14, 1
      %s162 = scalar_select %p161, %s14, 1
      %s163 = smul.addr %s162, 32
      %s164 = smul.addr %s163, 8
      %s165 = scalar_lea.vmem %s0, %s164
      %p166 = scmp.lt.s32.totalorder %s14, 1
      %s167 = scalar_select %p166, %s14, 1
      %s168 = smul.addr %s167, 57
      %s169 = smul.addr %s168, 4
      %s170 = scalar_lea.vmem %s3, %s169
      %v172 = vld [vmem:[%s165] sm:$0xff]
      %v173 = vld [vmem:[%s165 + $0x8] sm:$0xff]
      %v174 = vld [vmem:[%s165 + $0x10] sm:$0xff]
      %v175 = vld [vmem:[%s165 + $0x18] sm:$0xff]
      %v176 = vld [vmem:[%s165 + $0x20] sm:$0xff]
      %v177 = vld [vmem:[%s165 + $0x28] sm:$0xff]
      %v178 = vld [vmem:[%s165 + $0x30] sm:$0xff]
      %v179 = vld [vmem:[%s165 + $0x38] sm:$0xff]
      %v180 = vld [vmem:[%s165 + $0x40] sm:$0xff]
      %v181 = vld [vmem:[%s165 + $0x48] sm:$0xff]
      %v182 = vld [vmem:[%s165 + $0x50] sm:$0xff]
      %v183 = vld [vmem:[%s165 + $0x58] sm:$0xff]
      %v184 = vld [vmem:[%s165 + $0x60] sm:$0xff]
      %v185 = vld [vmem:[%s165 + $0x68] sm:$0xff]
      %v186 = vld [vmem:[%s165 + $0x70] sm:$0xff]
      %v187 = vld [vmem:[%s165 + $0x78] sm:$0xff]
      %v188 = vld [vmem:[%s165 + $0x80] sm:$0xff]
      %v189 = vld [vmem:[%s165 + $0x88] sm:$0xff]
      %v190 = vld [vmem:[%s165 + $0x90] sm:$0xff]
      %v191 = vld [vmem:[%s165 + $0x98] sm:$0xff]
      %v192 = vld [vmem:[%s165 + $0xa0] sm:$0xff]
      %v193 = vld [vmem:[%s165 + $0xa8] sm:$0xff]
      %v194 = vld [vmem:[%s165 + $0xb0] sm:$0xff]
      %v195 = vld [vmem:[%s165 + $0xb8] sm:$0xff]
      %v196 = vld [vmem:[%s165 + $0xc0] sm:$0xff]
      %v197 = vld [vmem:[%s165 + $0xc8] sm:$0xff]
      %v198 = vld [vmem:[%s165 + $0xd0] sm:$0xff]
      %v199 = vld [vmem:[%s165 + $0xd8] sm:$0xff]
      %v200 = vld [vmem:[%s165 + $0xe0] sm:$0xff]
      %v201 = vld [vmem:[%s165 + $0xe8] sm:$0xff]
      %v202 = vld [vmem:[%s165 + $0xf0] sm:$0xff]
      %v203 = vld [vmem:[%s165 + $0xf8] sm:$0xff]
      %v204 = vld [vmem:[%s1] sm:$0x1]
      %v206 = vperm.slane %v204, 0
      %v208 = vmul.f32 %v172, %v206
      %v209 = vmul.f32 %v173, %v206
      %v210 = vmul.f32 %v174, %v206
      %v211 = vmul.f32 %v175, %v206
      %v212 = vmul.f32 %v176, %v206
      %v213 = vmul.f32 %v177, %v206
      %v214 = vmul.f32 %v178, %v206
      %v215 = vmul.f32 %v179, %v206
      %v216 = vmul.f32 %v180, %v206
      %v217 = vmul.f32 %v181, %v206
      %v218 = vmul.f32 %v182, %v206
      %v219 = vmul.f32 %v183, %v206
      %v220 = vmul.f32 %v184, %v206
      %v221 = vmul.f32 %v185, %v206
      %v222 = vmul.f32 %v186, %v206
      %v223 = vmul.f32 %v187, %v206
      %v224 = vmul.f32 %v188, %v206
      %v225 = vmul.f32 %v189, %v206
      %v226 = vmul.f32 %v190, %v206
      %v227 = vmul.f32 %v191, %v206
      %v228 = vmul.f32 %v192, %v206
      %v229 = vmul.f32 %v193, %v206
      %v230 = vmul.f32 %v194, %v206
      %v231 = vmul.f32 %v195, %v206
      %v232 = vmul.f32 %v196, %v206
      %v233 = vmul.f32 %v197, %v206
      %v234 = vmul.f32 %v198, %v206
      %v235 = vmul.f32 %v199, %v206
      %v236 = vmul.f32 %v200, %v206
      %v237 = vmul.f32 %v201, %v206
      %v238 = vmul.f32 %v202, %v206
      %v239 = vmul.f32 %v203, %v206
      %v240 = vld [vmem:[%s2] sm:$0x1]
      %v242 = vperm.slane %v240, 0
      %v244 = vadd.f32 %v208, %v242
      %v245 = vadd.f32 %v209, %v242
      %v246 = vadd.f32 %v210, %v242
      %v247 = vadd.f32 %v211, %v242
      %v248 = vadd.f32 %v212, %v242
      %v249 = vadd.f32 %v213, %v242
      %v250 = vadd.f32 %v214, %v242
      %v251 = vadd.f32 %v215, %v242
      %v252 = vadd.f32 %v216, %v242
      %v253 = vadd.f32 %v217, %v242
      %v254 = vadd.f32 %v218, %v242
      %v255 = vadd.f32 %v219, %v242
      %v256 = vadd.f32 %v220, %v242
      %v257 = vadd.f32 %v221, %v242
      %v258 = vadd.f32 %v222, %v242
      %v259 = vadd.f32 %v223, %v242
      %v260 = vadd.f32 %v224, %v242
      %v261 = vadd.f32 %v225, %v242
      %v262 = vadd.f32 %v226, %v242
      %v263 = vadd.f32 %v227, %v242
      %v264 = vadd.f32 %v228, %v242
      %v265 = vadd.f32 %v229, %v242
      %v266 = vadd.f32 %v230, %v242
      %v267 = vadd.f32 %v231, %v242
      %v268 = vadd.f32 %v232, %v242
      %v269 = vadd.f32 %v233, %v242
      %v270 = vadd.f32 %v234, %v242
      %v271 = vadd.f32 %v235, %v242
      %v272 = vadd.f32 %v236, %v242
      %v273 = vadd.f32 %v237, %v242
      %v274 = vadd.f32 %v238, %v242
      %v275 = vadd.f32 %v239, %v242
      %v276 = vmax.f32 %v244, 0.0
      %v277 = vmax.f32 %v245, 0.0
      %v278 = vmax.f32 %v246, 0.0
      %v279 = vmax.f32 %v247, 0.0
      %v280 = vmax.f32 %v248, 0.0
      %v281 = vmax.f32 %v249, 0.0
      %v282 = vmax.f32 %v250, 0.0
      %v283 = vmax.f32 %v251, 0.0
      %v284 = vmax.f32 %v252, 0.0
      %v285 = vmax.f32 %v253, 0.0
      %v286 = vmax.f32 %v254, 0.0
      %v287 = vmax.f32 %v255, 0.0
      %v288 = vmax.f32 %v256, 0.0
      %v289 = vmax.f32 %v257, 0.0
      %v290 = vmax.f32 %v258, 0.0
      %v291 = vmax.f32 %v259, 0.0
      %v292 = vmax.f32 %v260, 0.0
      %v293 = vmax.f32 %v261, 0.0
      %v294 = vmax.f32 %v262, 0.0
      %v295 = vmax.f32 %v263, 0.0
      %v296 = vmax.f32 %v264, 0.0
      %v297 = vmax.f32 %v265, 0.0
      %v298 = vmax.f32 %v266, 0.0
      %v299 = vmax.f32 %v267, 0.0
      %v300 = vmax.f32 %v268, 0.0
      %v301 = vmax.f32 %v269, 0.0
      %v302 = vmax.f32 %v270, 0.0
      %v303 = vmax.f32 %v271, 0.0
      %v304 = vmax.f32 %v272, 0.0
      %v305 = vmax.f32 %v273, 0.0
      %v306 = vmax.f32 %v274, 0.0
      %v307 = vmax.f32 %v275, 0.0
      %308 = vst [vmem:[%s170] sm:$0xf] 0
      %309 = vst [vmem:[%s170 + $0x4] sm:$0xf] 0
      %310 = vst [vmem:[%s170 + $0x8] sm:$0x1] 0
      %311 = vst [vmem:[%s170 + $0xc] sm:$0xf] 0
      %312 = vst [vmem:[%s170 + $0x10] sm:$0xf] 0
      %313 = vst [vmem:[%s170 + $0x14] sm:$0x1] 0
      %314 = vst [vmem:[%s170 + $0x18] sm:$0xf] 0
      %315 = vst [vmem:[%s170 + $0x1c] sm:$0xf] 0
      %316 = vst [vmem:[%s170 + $0x20] sm:$0x1] 0
      %317 = vst [vmem:[%s170 + $0x24] sm:$0xf] 0
      %318 = vst [vmem:[%s170 + $0x28] sm:$0xf] 0
      %319 = vst [vmem:[%s170 + $0x2c] sm:$0x1] 0
      %320 = vst [vmem:[%s170 + $0x30] sm:$0xf] 0
      %321 = vst [vmem:[%s170 + $0x34] sm:$0xf] 0
      %322 = vst [vmem:[%s170 + $0x38] sm:$0x1] 0
      %323 = vst [vmem:[%s170 + $0x3c] sm:$0xf] 0
      %324 = vst [vmem:[%s170 + $0x40] sm:$0xf] 0
      %325 = vst [vmem:[%s170 + $0x44] sm:$0x1] 0
      %326 = vst [vmem:[%s170 + $0x48] sm:$0xf] 0
      %327 = vst [vmem:[%s170 + $0x4c] sm:$0xf] 0
      %328 = vst [vmem:[%s170 + $0x50] sm:$0x1] 0
      %329 = vst [vmem:[%s170 + $0x54] sm:$0xf] 0
      %330 = vst [vmem:[%s170 + $0x58] sm:$0xf] 0
      %331 = vst [vmem:[%s170 + $0x5c] sm:$0x1] 0
      %332 = vst [vmem:[%s170 + $0x60] sm:$0xf] 0
      %333 = vst [vmem:[%s170 + $0x64] sm:$0xf] 0
      %334 = vst [vmem:[%s170 + $0x68] sm:$0x1] 0
      %335 = vst [vmem:[%s170 + $0x6c] sm:$0xf] 0
      %336 = vst [vmem:[%s170 + $0x70] sm:$0xf] 0
      %337 = vst [vmem:[%s170 + $0x74] sm:$0x1] 0
      %338 = vst [vmem:[%s170 + $0x78] sm:$0xf] 0
      %339 = vst [vmem:[%s170 + $0x7c] sm:$0xf] 0
      %340 = vst [vmem:[%s170 + $0x80] sm:$0x1] 0
      %341 = vst [vmem:[%s170 + $0x84] sm:$0xf] 0
      %342 = vst [vmem:[%s170 + $0x88] sm:$0xf] 0
      %343 = vst [vmem:[%s170 + $0x8c] sm:$0x1] 0
      %344 = vst [vmem:[%s170 + $0x90] sm:$0xf] 0
      %345 = vst [vmem:[%s170 + $0x94] sm:$0xf] 0
      %346 = vst [vmem:[%s170 + $0x98] sm:$0x1] 0
      %347 = vst [vmem:[%s170 + $0x9c] sm:$0xf] 0
      %348 = vst [vmem:[%s170 + $0xa0] sm:$0xf] 0
      %349 = vst [vmem:[%s170 + $0xa4] sm:$0x1] 0
      %350 = vst [vmem:[%s170 + $0xa8] sm:$0xf] 0
      %351 = vst [vmem:[%s170 + $0xac] sm:$0xf] 0
      %352 = vst [vmem:[%s170 + $0xb0] sm:$0x1] 0
      %353 = vst [vmem:[%s170 + $0xb4] sm:$0xf] 0
      %354 = vst [vmem:[%s170 + $0xb8] sm:$0xf] 0
      %355 = vst [vmem:[%s170 + $0xbc] sm:$0x1] 0
      %356 = vst [vmem:[%s170 + $0xc0] sm:$0xf] 0
      %357 = vst [vmem:[%s170 + $0xc4] sm:$0xf] 0
      %358 = vst [vmem:[%s170 + $0xc8] sm:$0x1] 0
      %359 = vst [vmem:[%s170 + $0xcc] sm:$0xf] 0
      %360 = vst [vmem:[%s170 + $0xd0] sm:$0xf] 0
      %361 = vst [vmem:[%s170 + $0xd4] sm:$0x1] 0
      %362 = vst [vmem:[%s170 + $0xd8] sm:$0xf] 0
      %363 = vst [vmem:[%s170 + $0xdc] sm:$0xf] 0
      %364 = vst [vmem:[%s170 + $0xe0] sm:$0x1] 0
      %v365 = vpack.c.bf16 %v276, %v276
      %v366 = vpack.c.bf16 %v277, %v277
      %v367 = vpack.c.bf16 %v278, %v278
      %v368 = vpack.c.bf16 %v279, %v279
      %v369 = vpack.c.bf16 %v280, %v280
      %v370 = vpack.c.bf16 %v281, %v281
      %v371 = vpack.c.bf16 %v282, %v282
      %v372 = vpack.c.bf16 %v283, %v283
      %v373 = vpack.c.bf16 %v284, %v284
      %v374 = vpack.c.bf16 %v285, %v285
      %v375 = vpack.c.bf16 %v286, %v286
      %v376 = vpack.c.bf16 %v287, %v287
      %v377 = vpack.c.bf16 %v288, %v288
      %v378 = vpack.c.bf16 %v289, %v289
      %v379 = vpack.c.bf16 %v290, %v290
      %v380 = vpack.c.bf16 %v291, %v291
      %v381 = vpack.c.bf16 %v292, %v292
      %v382 = vpack.c.bf16 %v293, %v293
      %v383 = vpack.c.bf16 %v294, %v294
      %v384 = vpack.c.bf16 %v295, %v295
      %v385 = vpack.c.bf16 %v296, %v296
      %v386 = vpack.c.bf16 %v297, %v297
      %v387 = vpack.c.bf16 %v298, %v298
      %v388 = vpack.c.bf16 %v299, %v299
      %v389 = vpack.c.bf16 %v300, %v300
      %v390 = vpack.c.bf16 %v301, %v301
      %v391 = vpack.c.bf16 %v302, %v302
      %v392 = vpack.c.bf16 %v303, %v303
      %v393 = vpack.c.bf16 %v304, %v304
      %v394 = vpack.c.bf16 %v305, %v305
      %v395 = vpack.c.bf16 %v306, %v306
      %v396 = vpack.c.bf16 %v307, %v307
      %vm397 = vsmask.f32 256
      %vm398 = vsmask.f32 4368
      %vm399 = vmor %vm397, %vm398
      %v401 = vshrl.u32 %v365, 16
      %v403 = vrot.slane %v401, 7
      %v404 = vshll.u32 %v365, 16
      %v406 = vor.u32 %v403, %v404
      %v407 = vrot.slane %v403, 4
      %v409 = vshrl.u32 %v366, 16
      %v411 = vrot.slane %v409, 7
      %v412 = vshll.u32 %v366, 16
      %v414 = vor.u32 %v411, %v412
      %v415 = vsel %vm399, %v407, %v414
      %v416 = vrot.slane %v411, 4
      %v418 = vshrl.u32 %v367, 16
      %v420 = vrot.slane %v418, 7
      %v421 = vshll.u32 %v367, 16
      %v423 = vor.u32 %v420, %v421
      %v424 = vrot.slane %v420, 4
      %v426 = vshrl.u32 %v368, 16
      %v428 = vrot.slane %v426, 7
      %v429 = vshll.u32 %v368, 16
      %v431 = vor.u32 %v428, %v429
      %v432 = vsel %vm399, %v424, %v431
      %v433 = vrot.slane %v428, 4
      %v435 = vshrl.u32 %v369, 16
      %v437 = vrot.slane %v435, 7
      %v438 = vshll.u32 %v369, 16
      %v440 = vor.u32 %v437, %v438
      %v441 = vrot.slane %v437, 4
      %v443 = vshrl.u32 %v370, 16
      %v445 = vrot.slane %v443, 7
      %v446 = vshll.u32 %v370, 16
      %v448 = vor.u32 %v445, %v446
      %v449 = vsel %vm399, %v441, %v448
      %v450 = vrot.slane %v445, 4
      %v452 = vshrl.u32 %v371, 16
      %v454 = vrot.slane %v452, 7
      %v455 = vshll.u32 %v371, 16
      %v457 = vor.u32 %v454, %v455
      %v458 = vrot.slane %v454, 4
      %v460 = vshrl.u32 %v372, 16
      %v462 = vrot.slane %v460, 7
      %v463 = vshll.u32 %v372, 16
      %v465 = vor.u32 %v462, %v463
      %v466 = vsel %vm399, %v458, %v465
      %v467 = vrot.slane %v462, 4
      %v469 = vshrl.u32 %v373, 16
      %v471 = vrot.slane %v469, 7
      %v472 = vshll.u32 %v373, 16
      %v474 = vor.u32 %v471, %v472
      %v475 = vrot.slane %v471, 4
      %v477 = vshrl.u32 %v374, 16
      %v479 = vrot.slane %v477, 7
      %v480 = vshll.u32 %v374, 16
      %v482 = vor.u32 %v479, %v480
      %v483 = vsel %vm399, %v475, %v482
      %v484 = vrot.slane %v479, 4
      %v486 = vshrl.u32 %v375, 16
      %v488 = vrot.slane %v486, 7
      %v489 = vshll.u32 %v375, 16
      %v491 = vor.u32 %v488, %v489
      %v492 = vrot.slane %v488, 4
      %v494 = vshrl.u32 %v376, 16
      %v496 = vrot.slane %v494, 7
      %v497 = vshll.u32 %v376, 16
      %v499 = vor.u32 %v496, %v497
      %v500 = vsel %vm399, %v492, %v499
      %v501 = vrot.slane %v496, 4
      %v503 = vshrl.u32 %v377, 16
      %v505 = vrot.slane %v503, 7
      %v506 = vshll.u32 %v377, 16
      %v508 = vor.u32 %v505, %v506
      %v509 = vrot.slane %v505, 4
      %v511 = vshrl.u32 %v378, 16
      %v513 = vrot.slane %v511, 7
      %v514 = vshll.u32 %v378, 16
      %v516 = vor.u32 %v513, %v514
      %v517 = vsel %vm399, %v509, %v516
      %v518 = vrot.slane %v513, 4
      %v520 = vshrl.u32 %v379, 16
      %v522 = vrot.slane %v520, 7
      %v523 = vshll.u32 %v379, 16
      %v525 = vor.u32 %v522, %v523
      %v526 = vrot.slane %v522, 4
      %v528 = vshrl.u32 %v380, 16
      %v530 = vrot.slane %v528, 7
      %v531 = vshll.u32 %v380, 16
      %v533 = vor.u32 %v530, %v531
      %v534 = vsel %vm399, %v526, %v533
      %v535 = vrot.slane %v530, 4
      %v537 = vshrl.u32 %v381, 16
      %v539 = vrot.slane %v537, 7
      %v540 = vshll.u32 %v381, 16
      %v542 = vor.u32 %v539, %v540
      %v543 = vrot.slane %v539, 4
      %v545 = vshrl.u32 %v382, 16
      %v547 = vrot.slane %v545, 7
      %v548 = vshll.u32 %v382, 16
      %v550 = vor.u32 %v547, %v548
      %v551 = vsel %vm399, %v543, %v550
      %v552 = vrot.slane %v547, 4
      %v554 = vshrl.u32 %v383, 16
      %v556 = vrot.slane %v554, 7
      %v557 = vshll.u32 %v383, 16
      %v559 = vor.u32 %v556, %v557
      %v560 = vrot.slane %v556, 4
      %v562 = vshrl.u32 %v384, 16
      %v564 = vrot.slane %v562, 7
      %v565 = vshll.u32 %v384, 16
      %v567 = vor.u32 %v564, %v565
      %v568 = vsel %vm399, %v560, %v567
      %v569 = vrot.slane %v564, 4
      %v571 = vshrl.u32 %v385, 16
      %v573 = vrot.slane %v571, 7
      %v574 = vshll.u32 %v385, 16
      %v576 = vor.u32 %v573, %v574
      %v577 = vrot.slane %v573, 4
      %v579 = vshrl.u32 %v386, 16
      %v581 = vrot.slane %v579, 7
      %v582 = vshll.u32 %v386, 16
      %v584 = vor.u32 %v581, %v582
      %v585 = vsel %vm399, %v577, %v584
      %v586 = vrot.slane %v581, 4
      %v588 = vshrl.u32 %v387, 16
      %v590 = vrot.slane %v588, 7
      %v591 = vshll.u32 %v387, 16
      %v593 = vor.u32 %v590, %v591
      %v594 = vrot.slane %v590, 4
      %v596 = vshrl.u32 %v388, 16
      %v598 = vrot.slane %v596, 7
      %v599 = vshll.u32 %v388, 16
      %v601 = vor.u32 %v598, %v599
      %v602 = vsel %vm399, %v594, %v601
      %v603 = vrot.slane %v598, 4
      %v605 = vshrl.u32 %v389, 16
      %v607 = vrot.slane %v605, 7
      %v608 = vshll.u32 %v389, 16
      %v610 = vor.u32 %v607, %v608
      %v611 = vrot.slane %v607, 4
      %v613 = vshrl.u32 %v390, 16
      %v615 = vrot.slane %v613, 7
      %v616 = vshll.u32 %v390, 16
      %v618 = vor.u32 %v615, %v616
      %v619 = vsel %vm399, %v611, %v618
      %v620 = vrot.slane %v615, 4
      %v622 = vshrl.u32 %v391, 16
      %v624 = vrot.slane %v622, 7
      %v625 = vshll.u32 %v391, 16
      %v627 = vor.u32 %v624, %v625
      %v628 = vrot.slane %v624, 4
      %v630 = vshrl.u32 %v392, 16
      %v632 = vrot.slane %v630, 7
      %v633 = vshll.u32 %v392, 16
      %v635 = vor.u32 %v632, %v633
      %v636 = vsel %vm399, %v628, %v635
      %v637 = vrot.slane %v632, 4
      %v639 = vshrl.u32 %v393, 16
      %v641 = vrot.slane %v639, 7
      %v642 = vshll.u32 %v393, 16
      %v644 = vor.u32 %v641, %v642
      %v645 = vrot.slane %v641, 4
      %v647 = vshrl.u32 %v394, 16
      %v649 = vrot.slane %v647, 7
      %v650 = vshll.u32 %v394, 16
      %v652 = vor.u32 %v649, %v650
      %v653 = vsel %vm399, %v645, %v652
      %v654 = vrot.slane %v649, 4
      %v656 = vshrl.u32 %v395, 16
      %v658 = vrot.slane %v656, 7
      %v659 = vshll.u32 %v395, 16
      %v661 = vor.u32 %v658, %v659
      %v662 = vrot.slane %v658, 4
      %v664 = vshrl.u32 %v396, 16
      %v666 = vrot.slane %v664, 7
      %v667 = vshll.u32 %v396, 16
      %v669 = vor.u32 %v666, %v667
      %v670 = vsel %vm399, %v662, %v669
      %v671 = vrot.slane %v666, 4
      %s720 = scalar_lea.vmem %s170, 12
      %vm721 = vcmask 1043456
      %vm722 = vsmask.f32 7938
      %vm723 = vmand %vm721, %vm722
      %v724 = vld [vmem:[%s720] sm:$0xf]
      %v725 = vsel %vm723, %v406, %v724
      %726 = vst [vmem:[%s720] sm:$0xf] %v725
      %727 = vst [vmem:[%s720 + $0x4] sm:$0xf] %v415
      %vm728 = vcmask 1040384
      %vm729 = vmand %vm728, %vm397
      %v730 = vld [vmem:[%s720 + $0x8] sm:$0x1]
      %v731 = vsel %vm729, %v416, %v730
      %732 = vst [vmem:[%s720 + $0x8] sm:$0x1] %v731
      %v733 = vld [vmem:[%s720 + $0xc] sm:$0xf]
      %v734 = vsel %vm723, %v423, %v733
      %735 = vst [vmem:[%s720 + $0xc] sm:$0xf] %v734
      %736 = vst [vmem:[%s720 + $0x10] sm:$0xf] %v432
      %v737 = vld [vmem:[%s720 + $0x14] sm:$0x1]
      %v738 = vsel %vm729, %v433, %v737
      %739 = vst [vmem:[%s720 + $0x14] sm:$0x1] %v738
      %v740 = vld [vmem:[%s720 + $0x18] sm:$0xf]
      %v741 = vsel %vm723, %v440, %v740
      %742 = vst [vmem:[%s720 + $0x18] sm:$0xf] %v741
      %743 = vst [vmem:[%s720 + $0x1c] sm:$0xf] %v449
      %v744 = vld [vmem:[%s720 + $0x20] sm:$0x1]
      %v745 = vsel %vm729, %v450, %v744
      %746 = vst [vmem:[%s720 + $0x20] sm:$0x1] %v745
      %v747 = vld [vmem:[%s720 + $0x24] sm:$0xf]
      %v748 = vsel %vm723, %v457, %v747
      %749 = vst [vmem:[%s720 + $0x24] sm:$0xf] %v748
      %750 = vst [vmem:[%s720 + $0x28] sm:$0xf] %v466
      %v751 = vld [vmem:[%s720 + $0x2c] sm:$0x1]
      %v752 = vsel %vm729, %v467, %v751
      %753 = vst [vmem:[%s720 + $0x2c] sm:$0x1] %v752
      %v754 = vld [vmem:[%s720 + $0x30] sm:$0xf]
      %v755 = vsel %vm723, %v474, %v754
      %756 = vst [vmem:[%s720 + $0x30] sm:$0xf] %v755
      %757 = vst [vmem:[%s720 + $0x34] sm:$0xf] %v483
      %v758 = vld [vmem:[%s720 + $0x38] sm:$0x1]
      %v759 = vsel %vm729, %v484, %v758
      %760 = vst [vmem:[%s720 + $0x38] sm:$0x1] %v759
      %v761 = vld [vmem:[%s720 + $0x3c] sm:$0xf]
      %v762 = vsel %vm723, %v491, %v761
      %763 = vst [vmem:[%s720 + $0x3c] sm:$0xf] %v762
      %764 = vst [vmem:[%s720 + $0x40] sm:$0xf] %v500
      %v765 = vld [vmem:[%s720 + $0x44] sm:$0x1]
      %v766 = vsel %vm729, %v501, %v765
      %767 = vst [vmem:[%s720 + $0x44] sm:$0x1] %v766
      %v768 = vld [vmem:[%s720 + $0x48] sm:$0xf]
      %v769 = vsel %vm723, %v508, %v768
      %770 = vst [vmem:[%s720 + $0x48] sm:$0xf] %v769
      %771 = vst [vmem:[%s720 + $0x4c] sm:$0xf] %v517
      %v772 = vld [vmem:[%s720 + $0x50] sm:$0x1]
      %v773 = vsel %vm729, %v518, %v772
      %774 = vst [vmem:[%s720 + $0x50] sm:$0x1] %v773
      %v775 = vld [vmem:[%s720 + $0x54] sm:$0xf]
      %v776 = vsel %vm723, %v525, %v775
      %777 = vst [vmem:[%s720 + $0x54] sm:$0xf] %v776
      %778 = vst [vmem:[%s720 + $0x58] sm:$0xf] %v534
      %v779 = vld [vmem:[%s720 + $0x5c] sm:$0x1]
      %v780 = vsel %vm729, %v535, %v779
      %781 = vst [vmem:[%s720 + $0x5c] sm:$0x1] %v780
      %v782 = vld [vmem:[%s720 + $0x60] sm:$0xf]
      %v783 = vsel %vm723, %v542, %v782
      %784 = vst [vmem:[%s720 + $0x60] sm:$0xf] %v783
      %785 = vst [vmem:[%s720 + $0x64] sm:$0xf] %v551
      %v786 = vld [vmem:[%s720 + $0x68] sm:$0x1]
      %v787 = vsel %vm729, %v552, %v786
      %788 = vst [vmem:[%s720 + $0x68] sm:$0x1] %v787
      %v789 = vld [vmem:[%s720 + $0x6c] sm:$0xf]
      %v790 = vsel %vm723, %v559, %v789
      %791 = vst [vmem:[%s720 + $0x6c] sm:$0xf] %v790
      %792 = vst [vmem:[%s720 + $0x70] sm:$0xf] %v568
      %v793 = vld [vmem:[%s720 + $0x74] sm:$0x1]
      %v794 = vsel %vm729, %v569, %v793
      %795 = vst [vmem:[%s720 + $0x74] sm:$0x1] %v794
      %v796 = vld [vmem:[%s720 + $0x78] sm:$0xf]
      %v797 = vsel %vm723, %v576, %v796
      %798 = vst [vmem:[%s720 + $0x78] sm:$0xf] %v797
      %799 = vst [vmem:[%s720 + $0x7c] sm:$0xf] %v585
      %v800 = vld [vmem:[%s720 + $0x80] sm:$0x1]
      %v801 = vsel %vm729, %v586, %v800
      %802 = vst [vmem:[%s720 + $0x80] sm:$0x1] %v801
      %v803 = vld [vmem:[%s720 + $0x84] sm:$0xf]
      %v804 = vsel %vm723, %v593, %v803
      %805 = vst [vmem:[%s720 + $0x84] sm:$0xf] %v804
      %806 = vst [vmem:[%s720 + $0x88] sm:$0xf] %v602
      %v807 = vld [vmem:[%s720 + $0x8c] sm:$0x1]
      %v808 = vsel %vm729, %v603, %v807
      %809 = vst [vmem:[%s720 + $0x8c] sm:$0x1] %v808
      %v810 = vld [vmem:[%s720 + $0x90] sm:$0xf]
      %v811 = vsel %vm723, %v610, %v810
      %812 = vst [vmem:[%s720 + $0x90] sm:$0xf] %v811
      %813 = vst [vmem:[%s720 + $0x94] sm:$0xf] %v619
      %v814 = vld [vmem:[%s720 + $0x98] sm:$0x1]
      %v815 = vsel %vm729, %v620, %v814
      %816 = vst [vmem:[%s720 + $0x98] sm:$0x1] %v815
      %v817 = vld [vmem:[%s720 + $0x9c] sm:$0xf]
      %v818 = vsel %vm723, %v627, %v817
      %819 = vst [vmem:[%s720 + $0x9c] sm:$0xf] %v818
      %820 = vst [vmem:[%s720 + $0xa0] sm:$0xf] %v636
      %v821 = vld [vmem:[%s720 + $0xa4] sm:$0x1]
      %v822 = vsel %vm729, %v637, %v821
      %823 = vst [vmem:[%s720 + $0xa4] sm:$0x1] %v822
      %v824 = vld [vmem:[%s720 + $0xa8] sm:$0xf]
      %v825 = vsel %vm723, %v644, %v824
      %826 = vst [vmem:[%s720 + $0xa8] sm:$0xf] %v825
      %827 = vst [vmem:[%s720 + $0xac] sm:$0xf] %v653
      %v828 = vld [vmem:[%s720 + $0xb0] sm:$0x1]
      %v829 = vsel %vm729, %v654, %v828
      %830 = vst [vmem:[%s720 + $0xb0] sm:$0x1] %v829
      %v831 = vld [vmem:[%s720 + $0xb4] sm:$0xf]
      %v832 = vsel %vm723, %v661, %v831
      %833 = vst [vmem:[%s720 + $0xb4] sm:$0xf] %v832
      %834 = vst [vmem:[%s720 + $0xb8] sm:$0xf] %v670
      %v835 = vld [vmem:[%s720 + $0xbc] sm:$0x1]
      %v836 = vsel %vm729, %v671, %v835
      %837 = vst [vmem:[%s720 + $0xbc] sm:$0x1] %v836
      %p838 = scmp.lt.s32.totalorder %s14, 1
      %s839 = scalar_select %p838, %s14, 1
      %s840 = smul.addr %s839, 57
      %s841 = smul.addr %s840, 4
      %s842 = scalar_lea.vmem %s3, %s841
      // Predicated region
      $region33: #{basic_block_forward.4} parent=31 // pred_check
        %p843 = pneg %p100
      $region34: #{basic_block_forward.4} parent=31 // pred_check_branch
        %845 = sbr.rel (%p843) target = $region36
      $region35: #{basic_block_forward.4} parent=31 // pred_region
        _
      $region36: #{basic_block_forward.4} parent=31 // pred_fallthru
        _
    $region32: #{basic_block_forward.4} parent=5 // pred_fallthru
      _
    %p846 = scmp.le.s32.totalorder 2, %s9
    // Predicated region
    $region37: #{basic_block_forward.4} parent=5 // pred_check
      %p847 = pneg %p846
    $region38: #{basic_block_forward.4} parent=5 // pred_check_branch
      %849 = sbr.rel (%p847) target = $region40
    $region39: #{basic_block_forward.4} parent=5 // pred_region
      %s850 = ssub.s32 %s9, 2
      // Predicated region
      $region41: #{basic_block_forward.4} parent=39 // pred_check
        %p851 = pneg %p106
      $region42: #{basic_block_forward.4} parent=39 // pred_check_branch
        %853 = sbr.rel (%p851) target = $region44
      $region43: #{basic_block_forward.4} parent=39 // pred_region
        %p854 = scmp.lt.s32.totalorder %s15, 1
        %s855 = scalar_select %p854, %s15, 1
        %s856 = smul.addr %s855, 57
        %s857 = smul.addr %s856, 4
        %s858 = scalar_lea.vmem %s3, %s857
      $region44: #{basic_block_forward.4} parent=39 // pred_fallthru
        _
    $region40: #{basic_block_forward.4} parent=5 // pred_fallthru
      _
  $region6: #{basic_block_forward.4} parent=0 // loop_footer
    %s13 = sadd.s32 1, %s9
  $region7: #{basic_block_forward.4} parent=0 // loop_footer_branch
    %8 = sbr.rel target = $region3
  $region8: #{basic_block_forward.4} parent=0 // loop_exit
    _

// kernel: basic_block_forward.7
$region0: #{basic_block_forward.7}
  #allocation0 [shape = 'u32[]', space=smem, size = 0x4, offset = 0x4, fixed_abs, tag = 'smem constant byte address 0x4 - core index']
  #allocation1 [shape = 'u32[72,128]{1,0:T(1,128)}', space=vmem, size = 0x9000, scoped, tag = 'internal scratch']
  %s0 = inlined_call_operand.vmem [shape: bf16[2,110,128], index: 0, kind: input, shape index: {}]
  %s1 = inlined_call_operand.vmem [shape: bf16[9,128,128], index: 1, kind: input, shape index: {}]
  %s2 = inlined_call_operand.vmem [shape: f32[80,1], index: 2, kind: input, shape index: {}]
  %s3 = inlined_call_operand.vmem [shape: f32[2,80,128], index: 3, kind: input, shape index: {}]
  %s4 = inlined_call_operand.vmem [shape: f32[2,80,128], index: 4, kind: output, shape index: {}]
  %s5 = sld [smem:[#allocation0]]
  $region49: #{basic_block_forward.7} parent=0
    _
  %s7 = ssub.s32 1, %s5
  %s8 = scalar_select 0, %s7, %s5
  loop: start=0, step=1, limit=4
  $region2: #{basic_block_forward.7} parent=0 // loop_pre_header
    _
  $region3: #{basic_block_forward.7} parent=0 // loop_header
    %s10 = sphi 0, %s14
    %p11 = scmp.ge.s32.totalorder %s10, 4
    %s17 = sphi 0, %s29
    %s18 = sphi 0, %s25
    %s19 = sphi 0, %s17
    %s20 = sphi 0, %s18
    %s21 = sphi 0, %s19
    %s22 = sphi 0, %s20
    %s32 = sphi 0, %s34
    %s35 = sphi 0, %s32
    %s36 = sphi 0, %s35
    %s52 = sphi 0, %s36
    %s58 = sphi 0, %s60
    %s61 = sphi 0, %s58
    %s62 = sphi 0, %s61
    %s78 = sphi 0, %s62
    %s82 = sphi 0, %s82
    %s84 = sphi 0, %s82
    %s85 = sphi 0, %s84
    %s99 = sphi 0, %s85
    %s107 = sphi 0, %s109
    %s110 = sphi 0, %s107
    %s111 = sphi 0, %s110
    %s127 = sphi 0, %s111
    %s135 = sphi 0, %s137
    %s138 = sphi 0, %s135
    %s139 = sphi 0, %s138
    %s155 = sphi 0, %s139
  $region4: #{basic_block_forward.7} parent=0 // loop_header_branch
    %13 = sbr.rel (%p11) target = $region8
  $region5: #{basic_block_forward.7} parent=0 // loop_body
    %s15 = ssub.s32 %s10, 1
    %s16 = ssub.s32 %s10, 2
    %s23 = sadd.s32 1, %s18
    %p24 = scmp.ge.s32.totalorder %s23, 1
    %s25 = scalar_select %p24, 0, %s23
    %s26 = sadd.s32 1, %s17
    %s27 = scalar_select %p24, %s26, %s17
    %p28 = scmp.ge.s32.totalorder %s27, 2
    %s29 = scalar_select %p28, 0, %s27
    %s30 = ssub.s32 %s17, %s29
    %p31 = scmp.eq.s32.totalorder %s30, 0
    %s33 = sadd.s32 %s32, 1
    %s34 = scalar_select %p31, %s32, %s33
    %p37 = pneg %p31
    %p38 = scmp.eq.s32.totalorder %s10, 1
    %p39 = por %p37, %p38
    %p40 = scmp.ne.s32.totalorder %s32, %s35
    %p41 = scmp.eq.s32.totalorder %s10, 0
    %p42 = por %p40, %p41
    %p43 = scmp.ne.s32.totalorder %s32, %s35
    %p44 = scmp.eq.s32.totalorder %s15, 1
    %p45 = por %p43, %p44
    %p46 = scmp.ne.s32.totalorder %s35, %s36
    %p47 = scmp.eq.s32.totalorder %s15, 0
    %p48 = por %p46, %p47
    %p49 = scmp.ne.s32.totalorder %s35, %s36
    %p50 = scmp.eq.s32.totalorder %s16, 1
    %p51 = por %p49, %p50
    %p53 = scmp.ne.s32.totalorder %s36, %s52
    %p54 = scmp.eq.s32.totalorder %s16, 0
    %p55 = por %p53, %p54
    %s56 = ssub.s32 %s18, %s25
    %p57 = scmp.eq.s32.totalorder %s56, 0
    %s59 = sadd.s32 %s58, 1
    %s60 = scalar_select %p57, %s58, %s59
    %p63 = pneg %p57
    %p64 = scmp.eq.s32.totalorder %s10, 1
    %p65 = por %p63, %p64
    %p66 = scmp.ne.s32.totalorder %s58, %s61
    %p67 = scmp.eq.s32.totalorder %s10, 0
    %p68 = por %p66, %p67
    %p69 = scmp.ne.s32.totalorder %s58, %s61
    %p70 = scmp.eq.s32.totalorder %s15, 1
    %p71 = por %p69, %p70
    %p72 = scmp.ne.s32.totalorder %s61, %s62
    %p73 = scmp.eq.s32.totalorder %s15, 0
    %p74 = por %p72, %p73
    %p75 = scmp.ne.s32.totalorder %s61, %s62
    %p76 = scmp.eq.s32.totalorder %s16, 1
    %p77 = por %p75, %p76
    %p79 = scmp.ne.s32.totalorder %s62, %s78
    %p80 = scmp.eq.s32.totalorder %s16, 0
    %p81 = por %p79, %p80
    %s83 = sadd.s32 %s82, 1
    %p86 = scmp.eq.s32.totalorder %s10, 1
    %p87 = scmp.ne.s32.totalorder %s82, %s84
    %p88 = scmp.eq.s32.totalorder %s10, 0
    %p89 = por %p87, %p88
    %p90 = scmp.ne.s32.totalorder %s82, %s84
    %p91 = scmp.eq.s32.totalorder %s15, 1
    %p92 = por %p90, %p91
    %p93 = scmp.ne.s32.totalorder %s84, %s85
    %p94 = scmp.eq.s32.totalorder %s15, 0
    %p95 = por %p93, %p94
    %p96 = scmp.ne.s32.totalorder %s84, %s85
    %p97 = scmp.eq.s32.totalorder %s16, 1
    %p98 = por %p96, %p97
    %p100 = scmp.ne.s32.totalorder %s85, %s99
    %p101 = scmp.eq.s32.totalorder %s16, 0
    %p102 = por %p100, %p101
    %s103 = ssub.s32 %s17, %s29
    %s104 = ssub.s32 %s18, %s25
    %s105 = sor.u32 %s103, %s104
    %p106 = scmp.eq.s32.totalorder %s105, 0
    %s108 = sadd.s32 %s107, 1
    %s109 = scalar_select %p106, %s107, %s108
    %p112 = pneg %p106
    %p113 = scmp.eq.s32.totalorder %s10, 1
    %p114 = por %p112, %p113
    %p115 = scmp.ne.s32.totalorder %s107, %s110
    %p116 = scmp.eq.s32.totalorder %s10, 0
    %p117 = por %p115, %p116
    %p118 = scmp.ne.s32.totalorder %s107, %s110
    %p119 = scmp.eq.s32.totalorder %s15, 1
    %p120 = por %p118, %p119
    %p121 = scmp.ne.s32.totalorder %s110, %s111
    %p122 = scmp.eq.s32.totalorder %s15, 0
    %p123 = por %p121, %p122
    %p124 = scmp.ne.s32.totalorder %s110, %s111
    %p125 = scmp.eq.s32.totalorder %s16, 1
    %p126 = por %p124, %p125
    %p128 = scmp.ne.s32.totalorder %s111, %s127
    %p129 = scmp.eq.s32.totalorder %s16, 0
    %p130 = por %p128, %p129
    %s131 = ssub.s32 %s17, %s29
    %s132 = ssub.s32 %s18, %s25
    %s133 = sor.u32 %s131, %s132
    %p134 = scmp.eq.s32.totalorder %s133, 0
    %s136 = sadd.s32 %s135, 1
    %s137 = scalar_select %p134, %s135, %s136
    %p140 = pneg %p134
    %p141 = scmp.eq.s32.totalorder %s10, 1
    %p142 = por %p140, %p141
    %p143 = scmp.ne.s32.totalorder %s135, %s138
    %p144 = scmp.eq.s32.totalorder %s10, 0
    %p145 = por %p143, %p144
    %p146 = scmp.ne.s32.totalorder %s135, %s138
    %p147 = scmp.eq.s32.totalorder %s15, 1
    %p148 = por %p146, %p147
    %p149 = scmp.ne.s32.totalorder %s138, %s139
    %p150 = scmp.eq.s32.totalorder %s15, 0
    %p151 = por %p149, %p150
    %p152 = scmp.ne.s32.totalorder %s138, %s139
    %p153 = scmp.eq.s32.totalorder %s16, 1
    %p154 = por %p152, %p153
    %p156 = scmp.ne.s32.totalorder %s139, %s155
    %p157 = scmp.eq.s32.totalorder %s16, 0
    %p158 = por %p156, %p157
    %p159 = scmp.le.s32.totalorder 1, %s10
    %p160 = scmp.lt.s32.totalorder %s10, 3
    %p161 = pnand %p159, %p160
    %p162 = pneg %p161
    // Predicated region
    $region9: #{basic_block_forward.7} parent=5 // pred_check
      _
    $region10: #{basic_block_forward.7} parent=5 // pred_check_branch
      %164 = sbr.rel (%p161) target = $region12
    $region11: #{basic_block_forward.7} parent=5 // pred_region
      %s165 = ssub.s32 %s10, 1
      // Predicated region
      $region13: #{basic_block_forward.7} parent=11 // pred_check
        %p166 = pneg %p74
      $region14: #{basic_block_forward.7} parent=11 // pred_check_branch
        %168 = sbr.rel (%p166) target = $region16
      $region15: #{basic_block_forward.7} parent=11 // pred_region
        %p169 = scmp.lt.s32.totalorder %s20, 0
        %s170 = scalar_select %p169, %s20, 0
        %s171 = smul.addr %s170, 4
        %s172 = scalar_lea.vmem %s1, %s171
      $region16: #{basic_block_forward.7} parent=11 // pred_fallthru
        _
      // Predicated region
      $region17: #{basic_block_forward.7} parent=11 // pred_check
        %p173 = pneg %p95
      $region18: #{basic_block_forward.7} parent=11 // pred_check_branch
        %175 = sbr.rel (%p173) target = $region20
      $region19: #{basic_block_forward.7} parent=11 // pred_region
        _
      $region20: #{basic_block_forward.7} parent=11 // pred_fallthru
        _
    $region12: #{basic_block_forward.7} parent=5 // pred_fallthru
      _
    %p176 = scmp.lt.s32.totalorder %s10, 2
    // Predicated region
    $region21: #{basic_block_forward.7} parent=5 // pred_check
      %p177 = pneg %p176
    $region22: #{basic_block_forward.7} parent=5 // pred_check_branch
      %179 = sbr.rel (%p177) target = $region24
    $region23: #{basic_block_forward.7} parent=5 // pred_region
      // Predicated region
      $region25: #{basic_block_forward.7} parent=23 // pred_check
        %p180 = pneg %p42
      $region26: #{basic_block_forward.7} parent=23 // pred_check_branch
        %182 = sbr.rel (%p180) target = $region28
      $region27: #{basic_block_forward.7} parent=23 // pred_region
        %p183 = scmp.lt.s32.totalorder %s17, 1
        %s184 = scalar_select %p183, %s17, 1
        %s185 = smul.addr %s184, 14
        %s186 = smul.addr %s185, 4
        %s187 = scalar_lea.vmem %s0, %s186
      $region28: #{basic_block_forward.7} parent=23 // pred_fallthru
        _
      // Predicated region
      $region29: #{basic_block_forward.7} parent=23 // pred_check
        %p188 = pneg %p117
      $region30: #{basic_block_forward.7} parent=23 // pred_check_branch
        %190 = sbr.rel (%p188) target = $region32
      $region31: #{basic_block_forward.7} parent=23 // pred_region
        %p191 = scmp.lt.s32.totalorder %s17, 1
        %s192 = scalar_select %p191, %s17, 1
        %p193 = scmp.lt.s32.totalorder %s18, 0
        %s194 = scalar_select %p193, %s18, 0
        %s195 = smul.addr %s192, 10
        %s196 = sadd.s32 %s194, %s195
        %s197 = smul.addr %s196, 8
        %s198 = scalar_lea.vmem %s3, %s197
      $region32: #{basic_block_forward.7} parent=23 // pred_fallthru
        _
    $region24: #{basic_block_forward.7} parent=5 // pred_fallthru
      _
    %p199 = scmp.le.s32.totalorder 1, %s10
    %p200 = scmp.lt.s32.totalorder %s10, 3
    %p201 = pnand %p199, %p200
    %p202 = pneg %p201
    // Predicated region
    $region33: #{basic_block_forward.7} parent=5 // pred_check
      _
    $region34: #{basic_block_forward.7} parent=5 // pred_check_branch
      %204 = sbr.rel (%p201) target = $region36
    $region35: #{basic_block_forward.7} parent=5 // pred_region
      %s205 = ssub.s32 %s10, 1
      %p206 = scmp.lt.s32.totalorder %s19, 1
      %s207 = scalar_select %p206, %s19, 1
      %s208 = smul.addr %s207, 14
      %s209 = smul.addr %s208, 4
      %s210 = scalar_lea.vmem %s0, %s209
      %p211 = pneg %p48
      %p212 = pneg %p45
      %p213 = scmp.lt.s32.totalorder %s20, 0
      %s214 = scalar_select %p213, %s20, 0
      %s215 = smul.addr %s214, 4
      %s216 = scalar_lea.vmem %s1, %s215
      %p217 = pneg %p74
      %p218 = pneg %p71
      %p219 = pneg %p95
      %p220 = pneg %p92
      %p221 = scmp.lt.s32.totalorder %s19, 1
      %s222 = scalar_select %p221, %s19, 1
      %p223 = scmp.lt.s32.totalorder %s20, 0
      %s224 = scalar_select %p223, %s20, 0
      %s225 = smul.addr %s222, 10
      %s226 = sadd.s32 %s224, %s225
      %s227 = smul.addr %s226, 8
      %s228 = scalar_lea.vmem %s3, %s227
      %p229 = pneg %p123
      %p230 = pneg %p120
      %p231 = pneg %p151
      %p232 = pneg %p148
      %p233 = scmp.lt.s32.totalorder %s19, 1
      %s234 = scalar_select %p233, %s19, 1
      %p235 = scmp.lt.s32.totalorder %s20, 0
      %s236 = scalar_select %p235, %s20, 0
      %s237 = smul.addr %s234, 10
      %s238 = sadd.s32 %s236, %s237
      %s239 = smul.addr %s238, 8
      %s240 = scalar_lea.vmem %s4, %s239
      %p241 = scmp.lt.s32.totalorder %s19, 1
      %s242 = scalar_select %p241, %s19, 1
      %s243 = smul.addr %s242, 14
      %s244 = smul.addr %s243, 4
      %s245 = scalar_lea.vmem %s0, %s244
      %p246 = scmp.lt.s32.totalorder %s20, 0
      %s247 = scalar_select %p246, %s20, 0
      %s248 = smul.addr %s247, 4
      %s249 = scalar_lea.vmem %s1, %s248
      %p250 = scmp.lt.s32.totalorder %s19, 1
      %s251 = scalar_select %p250, %s19, 1
      %p252 = scmp.lt.s32.totalorder %s20, 0
      %s253 = scalar_select %p252, %s20, 0
      %s254 = smul.addr %s251, 10
      %s255 = sadd.s32 %s253, %s254
      %s256 = smul.addr %s255, 8
      %s257 = scalar_lea.vmem %s3, %s256
      %p258 = scmp.lt.s32.totalorder %s19, 1
      %s259 = scalar_select %p258, %s19, 1
      %p260 = scmp.lt.s32.totalorder %s20, 0
      %s261 = scalar_select %p260, %s20, 0
      %s262 = smul.addr %s259, 10
      %s263 = sadd.s32 %s261, %s262
      %s264 = smul.addr %s263, 8
      %s265 = scalar_lea.vmem %s4, %s264
      %v266 = vld [vmem:[%s245] sm:$0xf]
      %v267 = vld [vmem:[%s245 + $0x4] sm:$0xf]
      %v268 = vld [vmem:[%s245 + $0x8] sm:$0xf]
      %v269 = vld [vmem:[%s245 + $0xc] sm:$0xf]
      %v270 = vld [vmem:[%s245 + $0x10] sm:$0xf]
      %v271 = vld [vmem:[%s245 + $0x14] sm:$0xf]
      %v272 = vld [vmem:[%s245 + $0x18] sm:$0xf]
      %v273 = vld [vmem:[%s245 + $0x1c] sm:$0xf]
      %v274 = vld [vmem:[%s245 + $0x20] sm:$0xf]
      %v275 = vld [vmem:[%s245 + $0x24] sm:$0xf]
      %v276 = vld [vmem:[%s249] sm:$0xf]
      %v277 = vld [vmem:[%s249 + $0x4] sm:$0xf]
      %v278 = vld [vmem:[%s249 + $0x8] sm:$0xf]
      %v279 = vld [vmem:[%s249 + $0xc] sm:$0xf]
      %v280 = vld [vmem:[%s249 + $0x10] sm:$0xf]
      %v281 = vld [vmem:[%s249 + $0x14] sm:$0xf]
      %v282 = vld [vmem:[%s249 + $0x18] sm:$0xf]
      %v283 = vld [vmem:[%s249 + $0x1c] sm:$0xf]
      %v284 = vld [vmem:[%s249 + $0x20] sm:$0xf]
      %v285 = vld [vmem:[%s249 + $0x24] sm:$0xf]
      %v286 = vld [vmem:[%s249 + $0x28] sm:$0xf]
      %v287 = vld [vmem:[%s249 + $0x2c] sm:$0xf]
      %v288 = vld [vmem:[%s249 + $0x30] sm:$0xf]
      %v289 = vld [vmem:[%s249 + $0x34] sm:$0xf]
      %v290 = vld [vmem:[%s249 + $0x38] sm:$0xf]
      %v291 = vld [vmem:[%s249 + $0x3c] sm:$0xf]
      %v292 = vld [vmem:[%s245 + $0x28] sm:$0x1]
      %s293 = scalar_lea.vmem %s249, 64
      %v294 = vld [vmem:[%s293] sm:$0xf]
      %v295 = vld [vmem:[%s293 + $0x4] sm:$0xf]
      %v296 = vld [vmem:[%s293 + $0x8] sm:$0xf]
      %v297 = vld [vmem:[%s293 + $0xc] sm:$0xf]
      %v298 = vld [vmem:[%s293 + $0x10] sm:$0xf]
      %v299 = vld [vmem:[%s293 + $0x14] sm:$0xf]
      %v300 = vld [vmem:[%s293 + $0x18] sm:$0xf]
      %v301 = vld [vmem:[%s293 + $0x1c] sm:$0xf]
      %v302 = vld [vmem:[%s293 + $0x20] sm:$0xf]
      %v303 = vld [vmem:[%s293 + $0x24] sm:$0xf]
      %v304 = vld [vmem:[%s293 + $0x28] sm:$0xf]
      %v305 = vld [vmem:[%s293 + $0x2c] sm:$0xf]
      %v306 = vld [vmem:[%s293 + $0x30] sm:$0xf]
      %v307 = vld [vmem:[%s293 + $0x34] sm:$0xf]
      %v308 = vld [vmem:[%s293 + $0x38] sm:$0xf]
      %v309 = vld [vmem:[%s293 + $0x3c] sm:$0xf]
      %v321 = vunpack.c.l.b16 %v266
      %v322 = vunpack.c.l.b16 %v267
      %v323 = vunpack.c.l.b16 %v268
      %v324 = vunpack.c.l.b16 %v269
      %v325 = vunpack.c.l.b16 %v270
      %v326 = vunpack.c.l.b16 %v271
      %v327 = vunpack.c.l.b16 %v272
      %v328 = vunpack.c.l.b16 %v273
      %v329 = vunpack.c.l.b16 %v274
      %v330 = vunpack.c.l.b16 %v275
      %v331 = vunpack.c.l.b16 %v292
      %v332 = vpack.c.b16 %v322, %v321
      %v333 = vpack.c.b16 %v324, %v323
      %v334 = vpack.c.b16 %v326, %v325
      %v335 = vpack.c.b16 %v328, %v327
      %v336 = vpack.c.b16 %v330, %v329
      %v337 = vpack.c.b16 %v331, %v331
      %vm338 = vsmask.f32 7424
      %v340 = vshrl.u32 %v332, 16
      %v342 = vshll.u32 %v332, 16
      %v344 = vrot.slane %v342, 1
      %v345 = vor.u32 %v340, %v344
      %v347 = vshll.u32 %v333, 16
      %v349 = vrot.slane %v347, 1
      %v350 = vsel %vm338, %v345, %v349
      %v351 = vshrl.u32 %v333, 16
      %v353 = vor.u32 %v351, %v349
      %v355 = vshll.u32 %v334, 16
      %v357 = vrot.slane %v355, 1
      %v358 = vsel %vm338, %v353, %v357
      %v359 = vshrl.u32 %v334, 16
      %v361 = vor.u32 %v359, %v357
      %v363 = vshll.u32 %v335, 16
      %v365 = vrot.slane %v363, 1
      %v366 = vsel %vm338, %v361, %v365
      %v367 = vshrl.u32 %v335, 16
      %v369 = vor.u32 %v367, %v365
      %v371 = vshll.u32 %v336, 16
      %v373 = vrot.slane %v371, 1
      %v374 = vsel %vm338, %v369, %v373
      %v375 = vshrl.u32 %v336, 16
      %v377 = vor.u32 %v375, %v373
      %v379 = vshll.u32 %v337, 16
      %v381 = vrot.slane %v379, 1
      %v382 = vsel %vm338, %v377, %v381
      %v404 = vunpack.c.l.b16 %v294
      %v405 = vunpack.c.l.b16 %v295
      %v406 = vunpack.c.l.b16 %v296
      %v407 = vunpack.c.l.b16 %v297
      %v408 = vunpack.c.l.b16 %v298
      %v409 = vunpack.c.l.b16 %v299
      %v410 = vunpack.c.l.b16 %v300
      %v411 = vunpack.c.l.b16 %v301
      %v412 = vunpack.c.l.b16 %v302
      %v413 = vunpack.c.l.b16 %v303
      %v414 = vunpack.c.l.b16 %v304
      %v415 = vunpack.c.l.b16 %v305
      %v416 = vunpack.c.l.b16 %v306
      %v417 = vunpack.c.l.b16 %v307
      %v418 = vunpack.c.l.b16 %v308
      %v419 = vunpack.c.l.b16 %v309
      %v420 = vpack.c.b16 %v405, %v404
      %v421 = vpack.c.b16 %v407, %v406
      %v422 = vpack.c.b16 %v409, %v408
      %v423 = vpack.c.b16 %v411, %v410
      %v424 = vpack.c.b16 %v413, %v412
      %v425 = vpack.c.b16 %v415, %v414
      %v426 = vpack.c.b16 %v417, %v416
      %v427 = vpack.c.b16 %v419, %v418
      %436 = vmatpush.bf16.msra.mxu0 %v427
      %437 = vmatpush.bf16.msra.mxu0 %v426
      %438 = vmatpush.bf16.msra.mxu0 %v425
      %439 = vmatpush.bf16.msra.mxu0 %v424
      %440 = vmatpush.bf16.msra.mxu0 %v423
      %441 = vmatpush.bf16.msra.mxu0 %v422
      %442 = vmatpush.bf16.msra.mxu0 %v421
      %443 = vmatpush.bf16.msra.mxu0 %v420
      %444 = vmatmul.bf16.gmra.mxu0 %v350
      %v445 = vpop.f32.mrf.mxu0
      %v446 = vadd.f32 0.0, %v445
      %v447 = vpop.f32.mrf.mxu0
      %v448 = vadd.f32 0.0, %v447
      %449 = vmatmul.bf16.gmra.mxu0 %v358
      %v450 = vpop.f32.mrf.mxu0
      %v451 = vadd.f32 0.0, %v450
      %v452 = vpop.f32.mrf.mxu0
      %v453 = vadd.f32 0.0, %v452
      %454 = vmatmul.bf16.gmra.mxu0 %v366
      %v455 = vpop.f32.mrf.mxu0
      %v456 = vadd.f32 0.0, %v455
      %v457 = vpop.f32.mrf.mxu0
      %v458 = vadd.f32 0.0, %v457
      %459 = vmatmul.bf16.gmra.mxu0 %v374
      %v460 = vpop.f32.mrf.mxu0
      %v461 = vadd.f32 0.0, %v460
      %v462 = vpop.f32.mrf.mxu0
      %v463 = vadd.f32 0.0, %v462
      %464 = vmatmul.bf16.gmra.mxu0 %v382
      %v465 = vpop.f32.mrf.mxu0
      %v466 = vadd.f32 0.0, %v465
      %v467 = vpop.f32.mrf.mxu0
      %v468 = vadd.f32 0.0, %v467
      %469 = vdwg.mxu0
      %v491 = vunpack.c.l.b16 %v276
      %v492 = vunpack.c.l.b16 %v277
      %v493 = vunpack.c.l.b16 %v278
      %v494 = vunpack.c.l.b16 %v279
      %v495 = vunpack.c.l.b16 %v280
      %v496 = vunpack.c.l.b16 %v281
      %v497 = vunpack.c.l.b16 %v282
      %v498 = vunpack.c.l.b16 %v283
      %v499 = vunpack.c.l.b16 %v284
      %v500 = vunpack.c.l.b16 %v285
      %v501 = vunpack.c.l.b16 %v286
      %v502 = vunpack.c.l.b16 %v287
      %v503 = vunpack.c.l.b16 %v288
      %v504 = vunpack.c.l.b16 %v289
      %v505 = vunpack.c.l.b16 %v290
      %v506 = vunpack.c.l.b16 %v291
      %v507 = vpack.c.b16 %v492, %v491
      %v508 = vpack.c.b16 %v494, %v493
      %v509 = vpack.c.b16 %v496, %v495
      %v510 = vpack.c.b16 %v498, %v497
      %v511 = vpack.c.b16 %v500, %v499
      %v512 = vpack.c.b16 %v502, %v501
      %v513 = vpack.c.b16 %v504, %v503
      %v514 = vpack.c.b16 %v506, %v505
      %523 = vmatpush.bf16.msra.mxu0 %v514
      %524 = vmatpush.bf16.msra.mxu0 %v513
      %525 = vmatpush.bf16.msra.mxu0 %v512
      %526 = vmatpush.bf16.msra.mxu0 %v511
      %527 = vmatpush.bf16.msra.mxu0 %v510
      %528 = vmatpush.bf16.msra.mxu0 %v509
      %529 = vmatpush.bf16.msra.mxu0 %v508
      %530 = vmatpush.bf16.msra.mxu0 %v507
      %531 = vmatmul.bf16.gmra.mxu0 %v332
      %v532 = vpop.f32.mrf.mxu0
      %v533 = vadd.f32 %v446, %v532
      %v534 = vpop.f32.mrf.mxu0
      %v535 = vadd.f32 %v448, %v534
      %536 = vmatmul.bf16.gmra.mxu0 %v333
      %v537 = vpop.f32.mrf.mxu0
      %v538 = vadd.f32 %v451, %v537
      %v539 = vpop.f32.mrf.mxu0
      %v540 = vadd.f32 %v453, %v539
      %541 = vmatmul.bf16.gmra.mxu0 %v334
      %v542 = vpop.f32.mrf.mxu0
      %v543 = vadd.f32 %v456, %v542
      %v544 = vpop.f32.mrf.mxu0
      %v545 = vadd.f32 %v458, %v544
      %546 = vmatmul.bf16.gmra.mxu0 %v335
      %v547 = vpop.f32.mrf.mxu0
      %v548 = vadd.f32 %v461, %v547
      %v549 = vpop.f32.mrf.mxu0
      %v550 = vadd.f32 %v463, %v549
      %551 = vmatmul.bf16.gmra.mxu0 %v336
      %v552 = vpop.f32.mrf.mxu0
      %v553 = vadd.f32 %v466, %v552
      %v554 = vpop.f32.mrf.mxu0
      %v555 = vadd.f32 %v468, %v554
      %556 = vdwg.mxu0
      %v557 = vld [vmem:[%s245] sm:$0xe]
      %s558 = scalar_lea.vmem %s249, 128
      %v559 = vld [vmem:[%s558] sm:$0xf]
      %v560 = vld [vmem:[%s558 + $0x4] sm:$0xf]
      %v561 = vld [vmem:[%s558 + $0x8] sm:$0xf]
      %v562 = vld [vmem:[%s558 + $0xc] sm:$0xf]
      %v563 = vld [vmem:[%s558 + $0x10] sm:$0xf]
      %v564 = vld [vmem:[%s558 + $0x14] sm:$0xf]
      %v565 = vld [vmem:[%s558 + $0x18] sm:$0xf]
      %v566 = vld [vmem:[%s558 + $0x1c] sm:$0xf]
      %v567 = vld [vmem:[%s558 + $0x20] sm:$0xf]
      %v568 = vld [vmem:[%s558 + $0x24] sm:$0xf]
      %v569 = vld [vmem:[%s558 + $0x28] sm:$0xf]
      %v570 = vld [vmem:[%s558 + $0x2c] sm:$0xf]
      %v571 = vld [vmem:[%s558 + $0x30] sm:$0xf]
      %v572 = vld [vmem:[%s558 + $0x34] sm:$0xf]
      %v573 = vld [vmem:[%s558 + $0x38] sm:$0xf]
      %v574 = vld [vmem:[%s558 + $0x3c] sm:$0xf]
      %v576 = vunpack.c.l.b16 %v557
      %v577 = vpack.c.b16 %v322, %v576
      %vm578 = vcmask 1046528
      %v579 = vrot.slane %v577, 1
      %v580 = vrot.slane %v333, 1
      %v581 = vsel %vm578, %v579, %v580
      %v582 = vrot.slane %v334, 1
      %v583 = vsel %vm578, %v580, %v582
      %v584 = vrot.slane %v335, 1
      %v585 = vsel %vm578, %v582, %v584
      %v586 = vrot.slane %v336, 1
      %v587 = vsel %vm578, %v584, %v586
      %v588 = vrot.slane %v337, 1
      %v589 = vsel %vm578, %v586, %v588
      %v611 = vunpack.c.l.b16 %v559
      %v612 = vunpack.c.l.b16 %v560
      %v613 = vunpack.c.l.b16 %v561
      %v614 = vunpack.c.l.b16 %v562
      %v615 = vunpack.c.l.b16 %v563
      %v616 = vunpack.c.l.b16 %v564
      %v617 = vunpack.c.l.b16 %v565
      %v618 = vunpack.c.l.b16 %v566
      %v619 = vunpack.c.l.b16 %v567
      %v620 = vunpack.c.l.b16 %v568
      %v621 = vunpack.c.l.b16 %v569
      %v622 = vunpack.c.l.b16 %v570
      %v623 = vunpack.c.l.b16 %v571
      %v624 = vunpack.c.l.b16 %v572
      %v625 = vunpack.c.l.b16 %v573
      %v626 = vunpack.c.l.b16 %v574
      %v627 = vpack.c.b16 %v612, %v611
      %v628 = vpack.c.b16 %v614, %v613
      %v629 = vpack.c.b16 %v616, %v615
      %v630 = vpack.c.b16 %v618, %v617
      %v631 = vpack.c.b16 %v620, %v619
      %v632 = vpack.c.b16 %v622, %v621
      %v633 = vpack.c.b16 %v624, %v623
      %v634 = vpack.c.b16 %v626, %v625
      %643 = vmatpush.bf16.msra.mxu0 %v634
      %644 = vmatpush.bf16.msra.mxu0 %v633
      %645 = vmatpush.bf16.msra.mxu0 %v632
      %646 = vmatpush.bf16.msra.mxu0 %v631
      %647 = vmatpush.bf16.msra.mxu0 %v630
      %648 = vmatpush.bf16.msra.mxu0 %v629
      %649 = vmatpush.bf16.msra.mxu0 %v628
      %650 = vmatpush.bf16.msra.mxu0 %v627
      %651 = vmatmul.bf16.gmra.mxu0 %v581
      %v652 = vpop.f32.mrf.mxu0
      %v653 = vadd.f32 0.0, %v652
      %v654 = vpop.f32.mrf.mxu0
      %v655 = vadd.f32 0.0, %v654
      %656 = vmatmul.bf16.gmra.mxu0 %v583
      %v657 = vpop.f32.mrf.mxu0
      %v658 = vadd.f32 0.0, %v657
      %v659 = vpop.f32.mrf.mxu0
      %v660 = vadd.f32 0.0, %v659
      %661 = vmatmul.bf16.gmra.mxu0 %v585
      %v662 = vpop.f32.mrf.mxu0
      %v663 = vadd.f32 0.0, %v662
      %v664 = vpop.f32.mrf.mxu0
      %v665 = vadd.f32 0.0, %v664
      %666 = vmatmul.bf16.gmra.mxu0 %v587
      %v667 = vpop.f32.mrf.mxu0
      %v668 = vadd.f32 0.0, %v667
      %v669 = vpop.f32.mrf.mxu0
      %v670 = vadd.f32 0.0, %v669
      %671 = vmatmul.bf16.gmra.mxu0 %v589
      %v672 = vpop.f32.mrf.mxu0
      %v673 = vadd.f32 0.0, %v672
      %v674 = vpop.f32.mrf.mxu0
      %v675 = vadd.f32 0.0, %v674
      %676 = vdwg.mxu0
      %v677 = vadd.f32 %v533, %v653
      %v678 = vadd.f32 %v535, %v655
      %v679 = vadd.f32 %v538, %v658
      %v680 = vadd.f32 %v540, %v660
      %v681 = vadd.f32 %v543, %v663
      %v682 = vadd.f32 %v545, %v665
      %v683 = vadd.f32 %v548, %v668
      %v684 = vadd.f32 %v550, %v670
      %v685 = vadd.f32 %v553, %v673
      %v686 = vadd.f32 %v555, %v675
      %v687 = vld [vmem:[%s245 + $0x4] sm:$0xe]
      %v688 = vld [vmem:[%s245 + $0x8] sm:$0xf]
      %v689 = vld [vmem:[%s245 + $0xc] sm:$0xf]
      %v690 = vld [vmem:[%s245 + $0x10] sm:$0xf]
      %v691 = vld [vmem:[%s245 + $0x14] sm:$0xf]
      %v692 = vld [vmem:[%s245 + $0x18] sm:$0xf]
      %v693 = vld [vmem:[%s245 + $0x1c] sm:$0xf]
      %v694 = vld [vmem:[%s245 + $0x20] sm:$0xf]
      %v695 = vld [vmem:[%s245 + $0x24] sm:$0xf]
      %v696 = vld [vmem:[%s245 + $0x28] sm:$0xf]
      %v697 = vld [vmem:[%s245 + $0x2c] sm:$0x1]
      %s698 = scalar_lea.vmem %s249, 192
      %v699 = vld [vmem:[%s698] sm:$0xf]
      %v700 = vld [vmem:[%s698 + $0x4] sm:$0xf]
      %v701 = vld [vmem:[%s698 + $0x8] sm:$0xf]
      %v702 = vld [vmem:[%s698 + $0xc] sm:$0xf]
      %v703 = vld [vmem:[%s698 + $0x10] sm:$0xf]
      %v704 = vld [vmem:[%s698 + $0x14] sm:$0xf]
      %v705 = vld [vmem:[%s698 + $0x18] sm:$0xf]
      %v706 = vld [vmem:[%s698 + $0x1c] sm:$0xf]
      %v707 = vld [vmem:[%s698 + $0x20] sm:$0xf]
      %v708 = vld [vmem:[%s698 + $0x24] sm:$0xf]
      %v709 = vld [vmem:[%s698 + $0x28] sm:$0xf]
      %v710 = vld [vmem:[%s698 + $0x2c] sm:$0xf]
      %v711 = vld [vmem:[%s698 + $0x30] sm:$0xf]
      %v712 = vld [vmem:[%s698 + $0x34] sm:$0xf]
      %v713 = vld [vmem:[%s698 + $0x38] sm:$0xf]
      %v714 = vld [vmem:[%s698 + $0x3c] sm:$0xf]
      %v726 = vunpack.c.l.b16 %v687
      %v727 = vunpack.c.l.b16 %v688
      %v728 = vunpack.c.l.b16 %v689
      %v729 = vunpack.c.l.b16 %v690
      %v730 = vunpack.c.l.b16 %v691
      %v731 = vunpack.c.l.b16 %v692
      %v732 = vunpack.c.l.b16 %v693
      %v733 = vunpack.c.l.b16 %v694
      %v734 = vunpack.c.l.b16 %v695
      %v735 = vunpack.c.l.b16 %v696
      %v736 = vunpack.c.l.b16 %v697
      %v737 = vpack.c.b16 %v727, %v726
      %v738 = vpack.c.b16 %v729, %v728
      %v739 = vpack.c.b16 %v731, %v730
      %v740 = vpack.c.b16 %v733, %v732
      %v741 = vpack.c.b16 %v735, %v734
      %v742 = vpack.c.b16 %v736, %v736
      %v743 = vrot.slane %v737, 1
      %v744 = vrot.slane %v738, 1
      %v745 = vsel %vm578, %v743, %v744
      %v746 = vrot.slane %v739, 1
      %v747 = vsel %vm578, %v744, %v746
      %v748 = vrot.slane %v740, 1
      %v749 = vsel %vm578, %v746, %v748
      %v750 = vrot.slane %v741, 1
      %v751 = vsel %vm578, %v748, %v750
      %v752 = vrot.slane %v742, 1
      %v753 = vsel %vm578, %v750, %v752
      %v775 = vunpack.c.l.b16 %v699
      %v776 = vunpack.c.l.b16 %v700
      %v777 = vunpack.c.l.b16 %v701
      %v778 = vunpack.c.l.b16 %v702
      %v779 = vunpack.c.l.b16 %v703
      %v780 = vunpack.c.l.b16 %v704
      %v781 = vunpack.c.l.b16 %v705
      %v782 = vunpack.c.l.b16 %v706
      %v783 = vunpack.c.l.b16 %v707
      %v784 = vunpack.c.l.b16 %v708
      %v785 = vunpack.c.l.b16 %v709
      %v786 = vunpack.c.l.b16 %v710
      %v787 = vunpack.c.l.b16 %v711
      %v788 = vunpack.c.l.b16 %v712
      %v789 = vunpack.c.l.b16 %v713
      %v790 = vunpack.c.l.b16 %v714
      %v791 = vpack.c.b16 %v776, %v775
      %v792 = vpack.c.b16 %v778, %v777
      %v793 = vpack.c.b16 %v780, %v779
      %v794 = vpack.c.b16 %v782, %v781
      %v795 = vpack.c.b16 %v784, %v783
      %v796 = vpack.c.b16 %v786, %v785
      %v797 = vpack.c.b16 %v788, %v787
      %v798 = vpack.c.b16 %v790, %v789
      %807 = vmatpush.bf16.msra.mxu0 %v798
      %808 = vmatpush.bf16.msra.mxu0 %v797
      %809 = vmatpush.bf16.msra.mxu0 %v796
      %810 = vmatpush.bf16.msra.mxu0 %v795
      %811 = vmatpush.bf16.msra.mxu0 %v794
      %812 = vmatpush.bf16.msra.mxu0 %v793
      %813 = vmatpush.bf16.msra.mxu0 %v792
      %814 = vmatpush.bf16.msra.mxu0 %v791
      %815 = vmatmul.bf16.gmra.mxu0 %v745
      %v816 = vpop.f32.mrf.mxu0
      %v817 = vadd.f32 0.0, %v816
      %v818 = vpop.f32.mrf.mxu0
      %v819 = vadd.f32 0.0, %v818
      %820 = vmatmul.bf16.gmra.mxu0 %v747
      %v821 = vpop.f32.mrf.mxu0
      %v822 = vadd.f32 0.0, %v821
      %v823 = vpop.f32.mrf.mxu0
      %v824 = vadd.f32 0.0, %v823
      %825 = vmatmul.bf16.gmra.mxu0 %v749
      %v826 = vpop.f32.mrf.mxu0
      %v827 = vadd.f32 0.0, %v826
      %v828 = vpop.f32.mrf.mxu0
      %v829 = vadd.f32 0.0, %v828
      %830 = vmatmul.bf16.gmra.mxu0 %v751
      %v831 = vpop.f32.mrf.mxu0
      %v832 = vadd.f32 0.0, %v831
      %v833 = vpop.f32.mrf.mxu0
      %v834 = vadd.f32 0.0, %v833
      %835 = vmatmul.bf16.gmra.mxu0 %v753
      %v836 = vpop.f32.mrf.mxu0
      %v837 = vadd.f32 0.0, %v836
      %v838 = vpop.f32.mrf.mxu0
      %v839 = vadd.f32 0.0, %v838
      %840 = vdwg.mxu0
      %v841 = vadd.f32 %v677, %v817
      %v842 = vadd.f32 %v678, %v819
      %v843 = vadd.f32 %v679, %v822
      %v844 = vadd.f32 %v680, %v824
      %v845 = vadd.f32 %v681, %v827
      %v846 = vadd.f32 %v682, %v829
      %v847 = vadd.f32 %v683, %v832
      %v848 = vadd.f32 %v684, %v834
      %v849 = vadd.f32 %v685, %v837
      %v850 = vadd.f32 %v686, %v839
      %v851 = vld [vmem:[%s245 + $0x2c] sm:$0x3]
      %s852 = scalar_lea.vmem %s249, 256
      %v853 = vld [vmem:[%s852] sm:$0xf]
      %v854 = vld [vmem:[%s852 + $0x4] sm:$0xf]
      %v855 = vld [vmem:[%s852 + $0x8] sm:$0xf]
      %v856 = vld [vmem:[%s852 + $0xc] sm:$0xf]
      %v857 = vld [vmem:[%s852 + $0x10] sm:$0xf]
      %v858 = vld [vmem:[%s852 + $0x14] sm:$0xf]
      %v859 = vld [vmem:[%s852 + $0x18] sm:$0xf]
      %v860 = vld [vmem:[%s852 + $0x1c] sm:$0xf]
      %v861 = vld [vmem:[%s852 + $0x20] sm:$0xf]
      %v862 = vld [vmem:[%s852 + $0x24] sm:$0xf]
      %v863 = vld [vmem:[%s852 + $0x28] sm:$0xf]
      %v864 = vld [vmem:[%s852 + $0x2c] sm:$0xf]
      %v865 = vld [vmem:[%s852 + $0x30] sm:$0xf]
      %v866 = vld [vmem:[%s852 + $0x34] sm:$0xf]
      %v867 = vld [vmem:[%s852 + $0x38] sm:$0xf]
      %v868 = vld [vmem:[%s852 + $0x3c] sm:$0xf]
      %v870 = vunpack.c.l.b16 %v851
      %v871 = vpack.c.b16 %v870, %v870
      %vm872 = vsmask.f32 6400
      %v874 = vshrl.u32 %v737, 16
      %v876 = vrot.slane %v874, 1
      %v877 = vshll.u32 %v737, 16
      %v879 = vrot.slane %v877, 2
      %v880 = vor.u32 %v876, %v879
      %v882 = vshrl.u32 %v738, 16
      %v884 = vrot.slane %v882, 1
      %v885 = vshll.u32 %v738, 16
      %v887 = vrot.slane %v885, 2
      %v888 = vor.u32 %v884, %v887
      %v889 = vsel %vm872, %v880, %v888
      %v891 = vshrl.u32 %v739, 16
      %v893 = vrot.slane %v891, 1
      %v894 = vshll.u32 %v739, 16
      %v896 = vrot.slane %v894, 2
      %v897 = vor.u32 %v893, %v896
      %v898 = vsel %vm872, %v888, %v897
      %v900 = vshrl.u32 %v740, 16
      %v902 = vrot.slane %v900, 1
      %v903 = vshll.u32 %v740, 16
      %v905 = vrot.slane %v903, 2
      %v906 = vor.u32 %v902, %v905
      %v907 = vsel %vm872, %v897, %v906
      %v909 = vshrl.u32 %v741, 16
      %v911 = vrot.slane %v909, 1
      %v912 = vshll.u32 %v741, 16
      %v914 = vrot.slane %v912, 2
      %v915 = vor.u32 %v911, %v914
      %v916 = vsel %vm872, %v906, %v915
      %v918 = vshrl.u32 %v871, 16
      %v920 = vrot.slane %v918, 1
      %v921 = vshll.u32 %v871, 16
      %v923 = vrot.slane %v921, 2
      %v924 = vor.u32 %v920, %v923
      %v925 = vsel %vm872, %v915, %v924
      %v947 = vunpack.c.l.b16 %v853
      %v948 = vunpack.c.l.b16 %v854
      %v949 = vunpack.c.l.b16 %v855
      %v950 = vunpack.c.l.b16 %v856
      %v951 = vunpack.c.l.b16 %v857
      %v952 = vunpack.c.l.b16 %v858
      %v953 = vunpack.c.l.b16 %v859
      %v954 = vunpack.c.l.b16 %v860
      %v955 = vunpack.c.l.b16 %v861
      %v956 = vunpack.c.l.b16 %v862
      %v957 = vunpack.c.l.b16 %v863
      %v958 = vunpack.c.l.b16 %v864
      %v959 = vunpack.c.l.b16 %v865
      %v960 = vunpack.c.l.b16 %v866
      %v961 = vunpack.c.l.b16 %v867
      %v962 = vunpack.c.l.b16 %v868
      %v963 = vpack.c.b16 %v948, %v947
      %v964 = vpack.c.b16 %v950, %v949
      %v965 = vpack.c.b16 %v952, %v951
      %v966 = vpack.c.b16 %v954, %v953
      %v967 = vpack.c.b16 %v956, %v955
      %v968 = vpack.c.b16 %v958, %v957
      %v969 = vpack.c.b16 %v960, %v959
      %v970 = vpack.c.b16 %v962, %v961
      %979 = vmatpush.bf16.msra.mxu0 %v970
      %980 = vmatpush.bf16.msra.mxu0 %v969
      %981 = vmatpush.bf16.msra.mxu0 %v968
      %982 = vmatpush.bf16.msra.mxu0 %v967
      %983 = vmatpush.bf16.msra.mxu0 %v966
      %984 = vmatpush.bf16.msra.mxu0 %v965
      %985 = vmatpush.bf16.msra.mxu0 %v964
      %986 = vmatpush.bf16.msra.mxu0 %v963
      %987 = vmatmul.bf16.gmra.mxu0 %v889
      %v988 = vpop.f32.mrf.mxu0
      %v989 = vadd.f32 0.0, %v988
      %v990 = vpop.f32.mrf.mxu0
      %v991 = vadd.f32 0.0, %v990
      %992 = vmatmul.bf16.gmra.mxu0 %v898
      %v993 = vpop.f32.mrf.mxu0
      %v994 = vadd.f32 0.0, %v993
      %v995 = vpop.f32.mrf.mxu0
      %v996 = vadd.f32 0.0, %v995
      %997 = vmatmul.bf16.gmra.mxu0 %v907
      %v998 = vpop.f32.mrf.mxu0
      %v999 = vadd.f32 0.0, %v998
      %v1000 = vpop.f32.mrf.mxu0
      %v1001 = vadd.f32 0.0, %v1000
      %1002 = vmatmul.bf16.gmra.mxu0 %v916
      %v1003 = vpop.f32.mrf.mxu0
      %v1004 = vadd.f32 0.0, %v1003
      %v1005 = vpop.f32.mrf.mxu0
      %v1006 = vadd.f32 0.0, %v1005
      %1007 = vmatmul.bf16.gmra.mxu0 %v925
      %v1008 = vpop.f32.mrf.mxu0
      %v1009 = vadd.f32 0.0, %v1008
      %v1010 = vpop.f32.mrf.mxu0
      %v1011 = vadd.f32 0.0, %v1010
      %1012 = vdwg.mxu0
      %v1013 = vadd.f32 %v841, %v989
      %v1014 = vadd.f32 %v842, %v991
      %v1015 = vadd.f32 %v843, %v994
      %v1016 = vadd.f32 %v844, %v996
      %v1017 = vadd.f32 %v845, %v999
      %v1018 = vadd.f32 %v846, %v1001
      %v1019 = vadd.f32 %v847, %v1004
      %v1020 = vadd.f32 %v848, %v1006
      %v1021 = vadd.f32 %v849, %v1009
      %v1022 = vadd.f32 %v850, %v1011
      %v1023 = vld [vmem:[%s245 + $0x4] sm:$0xc]
      %s1024 = scalar_lea.vmem %s249, 320
      %v1025 = vld [vmem:[%s1024] sm:$0xf]
      %v1026 = vld [vmem:[%s1024 + $0x4] sm:$0xf]
      %v1027 = vld [vmem:[%s1024 + $0x8] sm:$0xf]
      %v1028 = vld [vmem:[%s1024 + $0xc] sm:$0xf]
      %v1029 = vld [vmem:[%s1024 + $0x10] sm:$0xf]
      %v1030 = vld [vmem:[%s1024 + $0x14] sm:$0xf]
      %v1031 = vld [vmem:[%s1024 + $0x18] sm:$0xf]
      %v1032 = vld [vmem:[%s1024 + $0x1c] sm:$0xf]
      %v1033 = vld [vmem:[%s1024 + $0x20] sm:$0xf]
      %v1034 = vld [vmem:[%s1024 + $0x24] sm:$0xf]
      %v1035 = vld [vmem:[%s1024 + $0x28] sm:$0xf]
      %v1036 = vld [vmem:[%s1024 + $0x2c] sm:$0xf]
      %v1037 = vld [vmem:[%s1024 + $0x30] sm:$0xf]
      %v1038 = vld [vmem:[%s1024 + $0x34] sm:$0xf]
      %v1039 = vld [vmem:[%s1024 + $0x38] sm:$0xf]
      %v1040 = vld [vmem:[%s1024 + $0x3c] sm:$0xf]
      %v1042 = vunpack.c.l.b16 %v1023
      %v1043 = vpack.c.b16 %v727, %v1042
      %vm1044 = vcmask 1045504
      %v1045 = vrot.slane %v1043, 2
      %v1046 = vrot.slane %v738, 2
      %v1047 = vsel %vm1044, %v1045, %v1046
      %v1048 = vrot.slane %v739, 2
      %v1049 = vsel %vm1044, %v1046, %v1048
      %v1050 = vrot.slane %v740, 2
      %v1051 = vsel %vm1044, %v1048, %v1050
      %v1052 = vrot.slane %v741, 2
      %v1053 = vsel %vm1044, %v1050, %v1052
      %v1054 = vrot.slane %v871, 2
      %v1055 = vsel %vm1044, %v1052, %v1054
      %v1077 = vunpack.c.l.b16 %v1025
      %v1078 = vunpack.c.l.b16 %v1026
      %v1079 = vunpack.c.l.b16 %v1027
      %v1080 = vunpack.c.l.b16 %v1028
      %v1081 = vunpack.c.l.b16 %v1029
      %v1082 = vunpack.c.l.b16 %v1030
      %v1083 = vunpack.c.l.b16 %v1031
      %v1084 = vunpack.c.l.b16 %v1032
      %v1085 = vunpack.c.l.b16 %v1033
      %v1086 = vunpack.c.l.b16 %v1034
      %v1087 = vunpack.c.l.b16 %v1035
      %v1088 = vunpack.c.l.b16 %v1036
      %v1089 = vunpack.c.l.b16 %v1037
      %v1090 = vunpack.c.l.b16 %v1038
      %v1091 = vunpack.c.l.b16 %v1039
      %v1092 = vunpack.c.l.b16 %v1040
      %v1093 = vpack.c.b16 %v1078, %v1077
      %v1094 = vpack.c.b16 %v1080, %v1079
      %v1095 = vpack.c.b16 %v1082, %v1081
      %v1096 = vpack.c.b16 %v1084, %v1083
      %v1097 = vpack.c.b16 %v1086, %v1085
      %v1098 = vpack.c.b16 %v1088, %v1087
      %v1099 = vpack.c.b16 %v1090, %v1089
      %v1100 = vpack.c.b16 %v1092, %v1091
      %1109 = vmatpush.bf16.msra.mxu0 %v1100
      %1110 = vmatpush.bf16.msra.mxu0 %v1099
      %1111 = vmatpush.bf16.msra.mxu0 %v1098
      %1112 = vmatpush.bf16.msra.mxu0 %v1097
      %1113 = vmatpush.bf16.msra.mxu0 %v1096
      %1114 = vmatpush.bf16.msra.mxu0 %v1095
      %1115 = vmatpush.bf16.msra.mxu0 %v1094
      %1116 = vmatpush.bf16.msra.mxu0 %v1093
      %1117 = vmatmul.bf16.gmra.mxu0 %v1047
      %v1118 = vpop.f32.mrf.mxu0
      %v1119 = vadd.f32 0.0, %v1118
      %v1120 = vpop.f32.mrf.mxu0
      %v1121 = vadd.f32 0.0, %v1120
      %1122 = vmatmul.bf16.gmra.mxu0 %v1049
      %v1123 = vpop.f32.mrf.mxu0
      %v1124 = vadd.f32 0.0, %v1123
      %v1125 = vpop.f32.mrf.mxu0
      %v1126 = vadd.f32 0.0, %v1125
      %1127 = vmatmul.bf16.gmra.mxu0 %v1051
      %v1128 = vpop.f32.mrf.mxu0
      %v1129 = vadd.f32 0.0, %v1128
      %v1130 = vpop.f32.mrf.mxu0
      %v1131 = vadd.f32 0.0, %v1130
      %1132 = vmatmul.bf16.gmra.mxu0 %v1053
      %v1133 = vpop.f32.mrf.mxu0
      %v1134 = vadd.f32 0.0, %v1133
      %v1135 = vpop.f32.mrf.mxu0
      %v1136 = vadd.f32 0.0, %v1135
      %1137 = vmatmul.bf16.gmra.mxu0 %v1055
      %v1138 = vpop.f32.mrf.mxu0
      %v1139 = vadd.f32 0.0, %v1138
      %v1140 = vpop.f32.mrf.mxu0
      %v1141 = vadd.f32 0.0, %v1140
      %1142 = vdwg.mxu0
      %v1143 = vadd.f32 %v1013, %v1119
      %v1144 = vadd.f32 %v1014, %v1121
      %v1145 = vadd.f32 %v1015, %v1124
      %v1146 = vadd.f32 %v1016, %v1126
      %v1147 = vadd.f32 %v1017, %v1129
      %v1148 = vadd.f32 %v1018, %v1131
      %v1149 = vadd.f32 %v1019, %v1134
      %v1150 = vadd.f32 %v1020, %v1136
      %v1151 = vadd.f32 %v1021, %v1139
      %v1152 = vadd.f32 %v1022, %v1141
      %v1153 = vld [vmem:[%s245 + $0x8] sm:$0xc]
      %v1154 = vld [vmem:[%s245 + $0xc] sm:$0xf]
      %v1155 = vld [vmem:[%s245 + $0x10] sm:$0xf]
      %v1156 = vld [vmem:[%s245 + $0x14] sm:$0xf]
      %v1157 = vld [vmem:[%s245 + $0x18] sm:$0xf]
      %v1158 = vld [vmem:[%s245 + $0x1c] sm:$0xf]
      %v1159 = vld [vmem:[%s245 + $0x20] sm:$0xf]
      %v1160 = vld [vmem:[%s245 + $0x24] sm:$0xf]
      %v1161 = vld [vmem:[%s245 + $0x28] sm:$0xf]
      %v1162 = vld [vmem:[%s245 + $0x2c] sm:$0xf]
      %v1163 = vld [vmem:[%s245 + $0x30] sm:$0x3]
      %s1164 = scalar_lea.vmem %s249, 384
      %v1165 = vld [vmem:[%s1164] sm:$0xf]
      %v1166 = vld [vmem:[%s1164 + $0x4] sm:$0xf]
      %v1167 = vld [vmem:[%s1164 + $0x8] sm:$0xf]
      %v1168 = vld [vmem:[%s1164 + $0xc] sm:$0xf]
      %v1169 = vld [vmem:[%s1164 + $0x10] sm:$0xf]
      %v1170 = vld [vmem:[%s1164 + $0x14] sm:$0xf]
      %v1171 = vld [vmem:[%s1164 + $0x18] sm:$0xf]
      %v1172 = vld [vmem:[%s1164 + $0x1c] sm:$0xf]
      %v1173 = vld [vmem:[%s1164 + $0x20] sm:$0xf]
      %v1174 = vld [vmem:[%s1164 + $0x24] sm:$0xf]
      %v1175 = vld [vmem:[%s1164 + $0x28] sm:$0xf]
      %v1176 = vld [vmem:[%s1164 + $0x2c] sm:$0xf]
      %v1177 = vld [vmem:[%s1164 + $0x30] sm:$0xf]
      %v1178 = vld [vmem:[%s1164 + $0x34] sm:$0xf]
      %v1179 = vld [vmem:[%s1164 + $0x38] sm:$0xf]
      %v1180 = vld [vmem:[%s1164 + $0x3c] sm:$0xf]
      %v1192 = vunpack.c.l.b16 %v1153
      %v1193 = vunpack.c.l.b16 %v1154
      %v1194 = vunpack.c.l.b16 %v1155
      %v1195 = vunpack.c.l.b16 %v1156
      %v1196 = vunpack.c.l.b16 %v1157
      %v1197 = vunpack.c.l.b16 %v1158
      %v1198 = vunpack.c.l.b16 %v1159
      %v1199 = vunpack.c.l.b16 %v1160
      %v1200 = vunpack.c.l.b16 %v1161
      %v1201 = vunpack.c.l.b16 %v1162
      %v1202 = vunpack.c.l.b16 %v1163
      %v1203 = vpack.c.b16 %v1193, %v1192
      %v1204 = vpack.c.b16 %v1195, %v1194
      %v1205 = vpack.c.b16 %v1197, %v1196
      %v1206 = vpack.c.b16 %v1199, %v1198
      %v1207 = vpack.c.b16 %v1201, %v1200
      %v1208 = vpack.c.b16 %v1202, %v1202
      %v1209 = vrot.slane %v1203, 2
      %v1210 = vrot.slane %v1204, 2
      %v1211 = vsel %vm1044, %v1209, %v1210
      %v1212 = vrot.slane %v1205, 2
      %v1213 = vsel %vm1044, %v1210, %v1212
      %v1214 = vrot.slane %v1206, 2
      %v1215 = vsel %vm1044, %v1212, %v1214
      %v1216 = vrot.slane %v1207, 2
      %v1217 = vsel %vm1044, %v1214, %v1216
      %v1218 = vrot.slane %v1208, 2
      %v1219 = vsel %vm1044, %v1216, %v1218
      %v1241 = vunpack.c.l.b16 %v1165
      %v1242 = vunpack.c.l.b16 %v1166
      %v1243 = vunpack.c.l.b16 %v1167
      %v1244 = vunpack.c.l.b16 %v1168
      %v1245 = vunpack.c.l.b16 %v1169
      %v1246 = vunpack.c.l.b16 %v1170
      %v1247 = vunpack.c.l.b16 %v1171
      %v1248 = vunpack.c.l.b16 %v1172
      %v1249 = vunpack.c.l.b16 %v1173
      %v1250 = vunpack.c.l.b16 %v1174
      %v1251 = vunpack.c.l.b16 %v1175
      %v1252 = vunpack.c.l.b16 %v1176
      %v1253 = vunpack.c.l.b16 %v1177
      %v1254 = vunpack.c.l.b16 %v1178
      %v1255 = vunpack.c.l.b16 %v1179
      %v1256 = vunpack.c.l.b16 %v1180
      %v1257 = vpack.c.b16 %v1242, %v1241
      %v1258 = vpack.c.b16 %v1244, %v1243
      %v1259 = vpack.c.b16 %v1246, %v1245
      %v1260 = vpack.c.b16 %v1248, %v1247
      %v1261 = vpack.c.b16 %v1250, %v1249
      %v1262 = vpack.c.b16 %v1252, %v1251
      %v1263 = vpack.c.b16 %v1254, %v1253
      %v1264 = vpack.c.b16 %v1256, %v1255
      %1273 = vmatpush.bf16.msra.mxu0 %v1264
      %1274 = vmatpush.bf16.msra.mxu0 %v1263
      %1275 = vmatpush.bf16.msra.mxu0 %v1262
      %1276 = vmatpush.bf16.msra.mxu0 %v1261
      %1277 = vmatpush.bf16.msra.mxu0 %v1260
      %1278 = vmatpush.bf16.msra.mxu0 %v1259
      %1279 = vmatpush.bf16.msra.mxu0 %v1258
      %1280 = vmatpush.bf16.msra.mxu0 %v1257
      %1281 = vmatmul.bf16.gmra.mxu0 %v1211
      %v1282 = vpop.f32.mrf.mxu0
      %v1283 = vadd.f32 0.0, %v1282
      %v1284 = vpop.f32.mrf.mxu0
      %v1285 = vadd.f32 0.0, %v1284
      %1286 = vmatmul.bf16.gmra.mxu0 %v1213
      %v1287 = vpop.f32.mrf.mxu0
      %v1288 = vadd.f32 0.0, %v1287
      %v1289 = vpop.f32.mrf.mxu0
      %v1290 = vadd.f32 0.0, %v1289
      %1291 = vmatmul.bf16.gmra.mxu0 %v1215
      %v1292 = vpop.f32.mrf.mxu0
      %v1293 = vadd.f32 0.0, %v1292
      %v1294 = vpop.f32.mrf.mxu0
      %v1295 = vadd.f32 0.0, %v1294
      %1296 = vmatmul.bf16.gmra.mxu0 %v1217
      %v1297 = vpop.f32.mrf.mxu0
      %v1298 = vadd.f32 0.0, %v1297
      %v1299 = vpop.f32.mrf.mxu0
      %v1300 = vadd.f32 0.0, %v1299
      %1301 = vmatmul.bf16.gmra.mxu0 %v1219
      %v1302 = vpop.f32.mrf.mxu0
      %v1303 = vadd.f32 0.0, %v1302
      %v1304 = vpop.f32.mrf.mxu0
      %v1305 = vadd.f32 0.0, %v1304
      %1306 = vdwg.mxu0
      %v1307 = vadd.f32 %v1143, %v1283
      %v1308 = vadd.f32 %v1144, %v1285
      %v1309 = vadd.f32 %v1145, %v1288
      %v1310 = vadd.f32 %v1146, %v1290
      %v1311 = vadd.f32 %v1147, %v1293
      %v1312 = vadd.f32 %v1148, %v1295
      %v1313 = vadd.f32 %v1149, %v1298
      %v1314 = vadd.f32 %v1150, %v1300
      %v1315 = vadd.f32 %v1151, %v1303
      %v1316 = vadd.f32 %v1152, %v1305
      %v1317 = vld [vmem:[%s245 + $0x30] sm:$0x7]
      %s1318 = scalar_lea.vmem %s249, 448
      %v1319 = vld [vmem:[%s1318] sm:$0xf]
      %v1320 = vld [vmem:[%s1318 + $0x4] sm:$0xf]
      %v1321 = vld [vmem:[%s1318 + $0x8] sm:$0xf]
      %v1322 = vld [vmem:[%s1318 + $0xc] sm:$0xf]
      %v1323 = vld [vmem:[%s1318 + $0x10] sm:$0xf]
      %v1324 = vld [vmem:[%s1318 + $0x14] sm:$0xf]
      %v1325 = vld [vmem:[%s1318 + $0x18] sm:$0xf]
      %v1326 = vld [vmem:[%s1318 + $0x1c] sm:$0xf]
      %v1327 = vld [vmem:[%s1318 + $0x20] sm:$0xf]
      %v1328 = vld [vmem:[%s1318 + $0x24] sm:$0xf]
      %v1329 = vld [vmem:[%s1318 + $0x28] sm:$0xf]
      %v1330 = vld [vmem:[%s1318 + $0x2c] sm:$0xf]
      %v1331 = vld [vmem:[%s1318 + $0x30] sm:$0xf]
      %v1332 = vld [vmem:[%s1318 + $0x34] sm:$0xf]
      %v1333 = vld [vmem:[%s1318 + $0x38] sm:$0xf]
      %v1334 = vld [vmem:[%s1318 + $0x3c] sm:$0xf]
      %v1336 = vunpack.c.l.b16 %v1317
      %v1337 = vpack.c.b16 %v1336, %v1336
      %vm1338 = vsmask.f32 5376
      %v1340 = vshrl.u32 %v1203, 16
      %v1342 = vrot.slane %v1340, 2
      %v1343 = vshll.u32 %v1203, 16
      %v1345 = vrot.slane %v1343, 3
      %v1346 = vor.u32 %v1342, %v1345
      %v1348 = vshrl.u32 %v1204, 16
      %v1350 = vrot.slane %v1348, 2
      %v1351 = vshll.u32 %v1204, 16
      %v1353 = vrot.slane %v1351, 3
      %v1354 = vor.u32 %v1350, %v1353
      %v1355 = vsel %vm1338, %v1346, %v1354
      %v1357 = vshrl.u32 %v1205, 16
      %v1359 = vrot.slane %v1357, 2
      %v1360 = vshll.u32 %v1205, 16
      %v1362 = vrot.slane %v1360, 3
      %v1363 = vor.u32 %v1359, %v1362
      %v1364 = vsel %vm1338, %v1354, %v1363
      %v1366 = vshrl.u32 %v1206, 16
      %v1368 = vrot.slane %v1366, 2
      %v1369 = vshll.u32 %v1206, 16
      %v1371 = vrot.slane %v1369, 3
      %v1372 = vor.u32 %v1368, %v1371
      %v1373 = vsel %vm1338, %v1363, %v1372
      %v1375 = vshrl.u32 %v1207, 16
      %v1377 = vrot.slane %v1375, 2
      %v1378 = vshll.u32 %v1207, 16
      %v1380 = vrot.slane %v1378, 3
      %v1381 = vor.u32 %v1377, %v1380
      %v1382 = vsel %vm1338, %v1372, %v1381
      %v1384 = vshrl.u32 %v1337, 16
      %v1386 = vrot.slane %v1384, 2
      %v1387 = vshll.u32 %v1337, 16
      %v1389 = vrot.slane %v1387, 3
      %v1390 = vor.u32 %v1386, %v1389
      %v1391 = vsel %vm1338, %v1381, %v1390
      %v1413 = vunpack.c.l.b16 %v1319
      %v1414 = vunpack.c.l.b16 %v1320
      %v1415 = vunpack.c.l.b16 %v1321
      %v1416 = vunpack.c.l.b16 %v1322
      %v1417 = vunpack.c.l.b16 %v1323
      %v1418 = vunpack.c.l.b16 %v1324
      %v1419 = vunpack.c.l.b16 %v1325
      %v1420 = vunpack.c.l.b16 %v1326
      %v1421 = vunpack.c.l.b16 %v1327
      %v1422 = vunpack.c.l.b16 %v1328
      %v1423 = vunpack.c.l.b16 %v1329
      %v1424 = vunpack.c.l.b16 %v1330
      %v1425 = vunpack.c.l.b16 %v1331
      %v1426 = vunpack.c.l.b16 %v1332
      %v1427 = vunpack.c.l.b16 %v1333
      %v1428 = vunpack.c.l.b16 %v1334
      %v1429 = vpack.c.b16 %v1414, %v1413
      %v1430 = vpack.c.b16 %v1416, %v1415
      %v1431 = vpack.c.b16 %v1418, %v1417
      %v1432 = vpack.c.b16 %v1420, %v1419
      %v1433 = vpack.c.b16 %v1422, %v1421
      %v1434 = vpack.c.b16 %v1424, %v1423
      %v1435 = vpack.c.b16 %v1426, %v1425
      %v1436 = vpack.c.b16 %v1428, %v1427
      %1445 = vmatpush.bf16.msra.mxu0 %v1436
      %1446 = vmatpush.bf16.msra.mxu0 %v1435
      %1447 = vmatpush.bf16.msra.mxu0 %v1434
      %1448 = vmatpush.bf16.msra.mxu0 %v1433
      %1449 = vmatpush.bf16.msra.mxu0 %v1432
      %1450 = vmatpush.bf16.msra.mxu0 %v1431
      %1451 = vmatpush.bf16.msra.mxu0 %v1430
      %1452 = vmatpush.bf16.msra.mxu0 %v1429
      %1453 = vmatmul.bf16.gmra.mxu0 %v1355
      %v1454 = vpop.f32.mrf.mxu0
      %v1455 = vadd.f32 0.0, %v1454
      %v1456 = vpop.f32.mrf.mxu0
      %v1457 = vadd.f32 0.0, %v1456
      %1458 = vmatmul.bf16.gmra.mxu0 %v1364
      %v1459 = vpop.f32.mrf.mxu0
      %v1460 = vadd.f32 0.0, %v1459
      %v1461 = vpop.f32.mrf.mxu0
      %v1462 = vadd.f32 0.0, %v1461
      %1463 = vmatmul.bf16.gmra.mxu0 %v1373
      %v1464 = vpop.f32.mrf.mxu0
      %v1465 = vadd.f32 0.0, %v1464
      %v1466 = vpop.f32.mrf.mxu0
      %v1467 = vadd.f32 0.0, %v1466
      %1468 = vmatmul.bf16.gmra.mxu0 %v1382
      %v1469 = vpop.f32.mrf.mxu0
      %v1470 = vadd.f32 0.0, %v1469
      %v1471 = vpop.f32.mrf.mxu0
      %v1472 = vadd.f32 0.0, %v1471
      %1473 = vmatmul.bf16.gmra.mxu0 %v1391
      %v1474 = vpop.f32.mrf.mxu0
      %v1475 = vadd.f32 0.0, %v1474
      %v1476 = vpop.f32.mrf.mxu0
      %v1477 = vadd.f32 0.0, %v1476
      %1478 = vdwg.mxu0
      %v1479 = vadd.f32 %v1307, %v1455
      %v1480 = vadd.f32 %v1308, %v1457
      %v1481 = vadd.f32 %v1309, %v1460
      %v1482 = vadd.f32 %v1310, %v1462
      %v1483 = vadd.f32 %v1311, %v1465
      %v1484 = vadd.f32 %v1312, %v1467
      %v1485 = vadd.f32 %v1313, %v1470
      %v1486 = vadd.f32 %v1314, %v1472
      %v1487 = vadd.f32 %v1315, %v1475
      %v1488 = vadd.f32 %v1316, %v1477
      %v1489 = vld [vmem:[%s245 + $0x8] sm:$0x8]
      %s1490 = scalar_lea.vmem %s249, 512
      %v1491 = vld [vmem:[%s1490] sm:$0xf]
      %v1492 = vld [vmem:[%s1490 + $0x4] sm:$0xf]
      %v1493 = vld [vmem:[%s1490 + $0x8] sm:$0xf]
      %v1494 = vld [vmem:[%s1490 + $0xc] sm:$0xf]
      %v1495 = vld [vmem:[%s1490 + $0x10] sm:$0xf]
      %v1496 = vld [vmem:[%s1490 + $0x14] sm:$0xf]
      %v1497 = vld [vmem:[%s1490 + $0x18] sm:$0xf]
      %v1498 = vld [vmem:[%s1490 + $0x1c] sm:$0xf]
      %v1499 = vld [vmem:[%s1490 + $0x20] sm:$0xf]
      %v1500 = vld [vmem:[%s1490 + $0x24] sm:$0xf]
      %v1501 = vld [vmem:[%s1490 + $0x28] sm:$0xf]
      %v1502 = vld [vmem:[%s1490 + $0x2c] sm:$0xf]
      %v1503 = vld [vmem:[%s1490 + $0x30] sm:$0xf]
      %v1504 = vld [vmem:[%s1490 + $0x34] sm:$0xf]
      %v1505 = vld [vmem:[%s1490 + $0x38] sm:$0xf]
      %v1506 = vld [vmem:[%s1490 + $0x3c] sm:$0xf]
      %v1508 = vunpack.c.l.b16 %v1489
      %v1509 = vpack.c.b16 %v1193, %v1508
      %vm1510 = vcmask 1044480
      %v1511 = vrot.slane %v1509, 3
      %v1512 = vrot.slane %v1204, 3
      %v1513 = vsel %vm1510, %v1511, %v1512
      %v1514 = vrot.slane %v1205, 3
      %v1515 = vsel %vm1510, %v1512, %v1514
      %v1516 = vrot.slane %v1206, 3
      %v1517 = vsel %vm1510, %v1514, %v1516
      %v1518 = vrot.slane %v1207, 3
      %v1519 = vsel %vm1510, %v1516, %v1518
      %v1520 = vrot.slane %v1337, 3
      %v1521 = vsel %vm1510, %v1518, %v1520
      %v1543 = vunpack.c.l.b16 %v1491
      %v1544 = vunpack.c.l.b16 %v1492
      %v1545 = vunpack.c.l.b16 %v1493
      %v1546 = vunpack.c.l.b16 %v1494
      %v1547 = vunpack.c.l.b16 %v1495
      %v1548 = vunpack.c.l.b16 %v1496
      %v1549 = vunpack.c.l.b16 %v1497
      %v1550 = vunpack.c.l.b16 %v1498
      %v1551 = vunpack.c.l.b16 %v1499
      %v1552 = vunpack.c.l.b16 %v1500
      %v1553 = vunpack.c.l.b16 %v1501
      %v1554 = vunpack.c.l.b16 %v1502
      %v1555 = vunpack.c.l.b16 %v1503
      %v1556 = vunpack.c.l.b16 %v1504
      %v1557 = vunpack.c.l.b16 %v1505
      %v1558 = vunpack.c.l.b16 %v1506
      %v1559 = vpack.c.b16 %v1544, %v1543
      %v1560 = vpack.c.b16 %v1546, %v1545
      %v1561 = vpack.c.b16 %v1548, %v1547
      %v1562 = vpack.c.b16 %v1550, %v1549
      %v1563 = vpack.c.b16 %v1552, %v1551
      %v1564 = vpack.c.b16 %v1554, %v1553
      %v1565 = vpack.c.b16 %v1556, %v1555
      %v1566 = vpack.c.b16 %v1558, %v1557
      %1575 = vmatpush.bf16.msra.mxu0 %v1566
      %1576 = vmatpush.bf16.msra.mxu0 %v1565
      %1577 = vmatpush.bf16.msra.mxu0 %v1564
      %1578 = vmatpush.bf16.msra.mxu0 %v1563
      %1579 = vmatpush.bf16.msra.mxu0 %v1562
      %1580 = vmatpush.bf16.msra.mxu0 %v1561
      %1581 = vmatpush.bf16.msra.mxu0 %v1560
      %1582 = vmatpush.bf16.msra.mxu0 %v1559
      %1583 = vmatmul.bf16.gmra.mxu0 %v1513
      %v1584 = vpop.f32.mrf.mxu0
      %v1585 = vadd.f32 0.0, %v1584
      %v1586 = vpop.f32.mrf.mxu0
      %v1587 = vadd.f32 0.0, %v1586
      %1588 = vmatmul.bf16.gmra.mxu0 %v1515
      %v1589 = vpop.f32.mrf.mxu0
      %v1590 = vadd.f32 0.0, %v1589
      %v1591 = vpop.f32.mrf.mxu0
      %v1592 = vadd.f32 0.0, %v1591
      %1593 = vmatmul.bf16.gmra.mxu0 %v1517
      %v1594 = vpop.f32.mrf.mxu0
      %v1595 = vadd.f32 0.0, %v1594
      %v1596 = vpop.f32.mrf.mxu0
      %v1597 = vadd.f32 0.0, %v1596
      %1598 = vmatmul.bf16.gmra.mxu0 %v1519
      %v1599 = vpop.f32.mrf.mxu0
      %v1600 = vadd.f32 0.0, %v1599
      %v1601 = vpop.f32.mrf.mxu0
      %v1602 = vadd.f32 0.0, %v1601
      %1603 = vmatmul.bf16.gmra.mxu0 %v1521
      %v1604 = vpop.f32.mrf.mxu0
      %v1605 = vadd.f32 0.0, %v1604
      %v1606 = vpop.f32.mrf.mxu0
      %v1607 = vadd.f32 0.0, %v1606
      %1608 = vdwg.mxu0
      %v1609 = vadd.f32 %v1479, %v1585
      %v1610 = vadd.f32 %v1480, %v1587
      %v1611 = vadd.f32 %v1481, %v1590
      %v1612 = vadd.f32 %v1482, %v1592
      %v1613 = vadd.f32 %v1483, %v1595
      %v1614 = vadd.f32 %v1484, %v1597
      %v1615 = vadd.f32 %v1485, %v1600
      %v1616 = vadd.f32 %v1486, %v1602
      %v1617 = vadd.f32 %v1487, %v1605
      %v1618 = vadd.f32 %v1488, %v1607
      %v1619 = vld [vmem:[%s257] sm:$0xff]
      %v1620 = vld [vmem:[%s257 + $0x8] sm:$0xff]
      %v1621 = vld [vmem:[%s257 + $0x10] sm:$0xff]
      %v1622 = vld [vmem:[%s257 + $0x18] sm:$0xff]
      %v1623 = vld [vmem:[%s257 + $0x20] sm:$0xff]
      %v1624 = vld [vmem:[%s257 + $0x28] sm:$0xff]
      %v1625 = vld [vmem:[%s257 + $0x30] sm:$0xff]
      %v1626 = vld [vmem:[%s257 + $0x38] sm:$0xff]
      %v1627 = vld [vmem:[%s257 + $0x40] sm:$0xff]
      %v1628 = vld [vmem:[%s257 + $0x48] sm:$0xff]
      %v1629 = vadd.f32 %v1609, %v1619
      %v1630 = vadd.f32 %v1610, %v1620
      %v1631 = vadd.f32 %v1611, %v1621
      %v1632 = vadd.f32 %v1612, %v1622
      %v1633 = vadd.f32 %v1613, %v1623
      %v1634 = vadd.f32 %v1614, %v1624
      %v1635 = vadd.f32 %v1615, %v1625
      %v1636 = vadd.f32 %v1616, %v1626
      %v1637 = vadd.f32 %v1617, %v1627
      %v1638 = vadd.f32 %v1618, %v1628
      %v1639 = vld [vmem:[%s2] sm:$0xff]
      %v1640 = vld [vmem:[%s2 + $0x8] sm:$0xff]
      %v1641 = vld [vmem:[%s2 + $0x10] sm:$0xff]
      %v1642 = vld [vmem:[%s2 + $0x18] sm:$0xff]
      %v1643 = vld [vmem:[%s2 + $0x20] sm:$0xff]
      %v1644 = vld [vmem:[%s2 + $0x28] sm:$0xff]
      %v1645 = vld [vmem:[%s2 + $0x30] sm:$0xff]
      %v1646 = vld [vmem:[%s2 + $0x38] sm:$0xff]
      %v1647 = vld [vmem:[%s2 + $0x40] sm:$0xff]
      %v1648 = vld [vmem:[%s2 + $0x48] sm:$0xff]
      %1650 = vset.pattern.permute.xlu0 0
      %1651 = vperm.xlu0 %1650, %v1639
      %v1652 = vpop.permute.xlu0 %1651
      %1655 = vset.pattern.permute.xlu0 0
      %1656 = vperm.xlu0 %1655, %v1640
      %v1657 = vpop.permute.xlu0 %1656
      %1660 = vset.pattern.permute.xlu0 0
      %1661 = vperm.xlu0 %1660, %v1641
      %v1662 = vpop.permute.xlu0 %1661
      %1665 = vset.pattern.permute.xlu0 0
      %1666 = vperm.xlu0 %1665, %v1642
      %v1667 = vpop.permute.xlu0 %1666
      %1670 = vset.pattern.permute.xlu0 0
      %1671 = vperm.xlu0 %1670, %v1643
      %v1672 = vpop.permute.xlu0 %1671
      %1675 = vset.pattern.permute.xlu0 0
      %1676 = vperm.xlu0 %1675, %v1644
      %v1677 = vpop.permute.xlu0 %1676
      %1680 = vset.pattern.permute.xlu0 0
      %1681 = vperm.xlu0 %1680, %v1645
      %v1682 = vpop.permute.xlu0 %1681
      %1685 = vset.pattern.permute.xlu0 0
      %1686 = vperm.xlu0 %1685, %v1646
      %v1687 = vpop.permute.xlu0 %1686
      %1690 = vset.pattern.permute.xlu0 0
      %1691 = vperm.xlu0 %1690, %v1647
      %v1692 = vpop.permute.xlu0 %1691
      %1695 = vset.pattern.permute.xlu0 0
      %1696 = vperm.xlu0 %1695, %v1648
      %v1697 = vpop.permute.xlu0 %1696
      %v1699 = vmul.f32 %v1629, %v1652
      %v1700 = vmul.f32 %v1630, %v1657
      %v1701 = vmul.f32 %v1631, %v1662
      %v1702 = vmul.f32 %v1632, %v1667
      %v1703 = vmul.f32 %v1633, %v1672
      %v1704 = vmul.f32 %v1634, %v1677
      %v1705 = vmul.f32 %v1635, %v1682
      %v1706 = vmul.f32 %v1636, %v1687
      %v1707 = vmul.f32 %v1637, %v1692
      %v1708 = vmul.f32 %v1638, %v1697
      %1709 = vst [vmem:[%s265] sm:$0xff] %v1699
      %1710 = vst [vmem:[%s265 + $0x8] sm:$0xff] %v1700
      %1711 = vst [vmem:[%s265 + $0x10] sm:$0xff] %v1701
      %1712 = vst [vmem:[%s265 + $0x18] sm:$0xff] %v1702
      %1713 = vst [vmem:[%s265 + $0x20] sm:$0xff] %v1703
      %1714 = vst [vmem:[%s265 + $0x28] sm:$0xff] %v1704
      %1715 = vst [vmem:[%s265 + $0x30] sm:$0xff] %v1705
      %1716 = vst [vmem:[%s265 + $0x38] sm:$0xff] %v1706
      %1717 = vst [vmem:[%s265 + $0x40] sm:$0xff] %v1707
      %1718 = vst [vmem:[%s265 + $0x48] sm:$0xff] %v1708
      %p1719 = scmp.lt.s32.totalorder %s19, 1
      %s1720 = scalar_select %p1719, %s19, 1
      %p1721 = scmp.lt.s32.totalorder %s20, 0
      %s1722 = scalar_select %p1721, %s20, 0
      %s1723 = smul.addr %s1720, 10
      %s1724 = sadd.s32 %s1722, %s1723
      %s1725 = smul.addr %s1724, 8
      %s1726 = scalar_lea.vmem %s4, %s1725
      // Predicated region
      $region37: #{basic_block_forward.7} parent=35 // pred_check
        %p1727 = pneg %p148
      $region38: #{basic_block_forward.7} parent=35 // pred_check_branch
        %1729 = sbr.rel (%p1727) target = $region40
      $region39: #{basic_block_forward.7} parent=35 // pred_region
        _
      $region40: #{basic_block_forward.7} parent=35 // pred_fallthru
        _
    $region36: #{basic_block_forward.7} parent=5 // pred_fallthru
      _
    %p1730 = scmp.le.s32.totalorder 2, %s10
    // Predicated region
    $region41: #{basic_block_forward.7} parent=5 // pred_check
      %p1731 = pneg %p1730
    $region42: #{basic_block_forward.7} parent=5 // pred_check_branch
      %1733 = sbr.rel (%p1731) target = $region44
    $region43: #{basic_block_forward.7} parent=5 // pred_region
      %s1734 = ssub.s32 %s10, 2
      // Predicated region
      $region45: #{basic_block_forward.7} parent=43 // pred_check
        %p1735 = pneg %p154
      $region46: #{basic_block_forward.7} parent=43 // pred_check_branch
        %1737 = sbr.rel (%p1735) target = $region48
      $region47: #{basic_block_forward.7} parent=43 // pred_region
        %p1738 = scmp.lt.s32.totalorder %s21, 1
        %s1739 = scalar_select %p1738, %s21, 1
        %p1740 = scmp.lt.s32.totalorder %s22, 0
        %s1741 = scalar_select %p1740, %s22, 0
        %s1742 = smul.addr %s1739, 10
        %s1743 = sadd.s32 %s1741, %s1742
        %s1744 = smul.addr %s1743, 8
        %s1745 = scalar_lea.vmem %s4, %s1744
      $region48: #{basic_block_forward.7} parent=43 // pred_fallthru
        _
    $region44: #{basic_block_forward.7} parent=5 // pred_fallthru
      _
  $region6: #{basic_block_forward.7} parent=0 // loop_footer
    %s14 = sadd.s32 1, %s10
  $region7: #{basic_block_forward.7} parent=0 // loop_footer_branch
    %9 = sbr.rel target = $region3
  $region8: #{basic_block_forward.7} parent=0 // loop_exit
    _

</llo_original>
